<compile_context>
chip_gen: v7x
topology: tpu7x:2x2x1
jax: 0.10.0
libtpu: 0.0.40
codegen_flags: <defaults>
</compile_context>

<pallas_src>
import jax
import jax.numpy as jnp
from jax import lax
from jax.experimental import pallas as pl
from jax.experimental.pallas import tpu as pltpu

HEX_K = 3        # hexagdly kernel_size
BN_EPS = 1e-5
TILE_P = 512     # rows (N*H*W) per grid step -- keeps DMA/compute overlapped
LANE = 128


def _round_up(x, m):
    return ((x + m - 1) // m) * m


def hex_tap_offsets(k):
    """List of (dj, dr_even, dr_odd) hex taps (odd columns shifted down)."""
    taps = []
    for dj in range(-k, k + 1):
        i = abs(dj)
        if i % 2 == 0:
            lo, hi = -(k - i // 2), (k - i // 2)
            for dr in range(lo, hi + 1):
                taps.append((dj, dr, dr))
        else:
            lo, hi = -(k - (i - 1) // 2), (k - (i + 1) // 2)
            for dr in range(lo, hi + 1):
                taps.append((dj, dr, dr + 1))
    return taps


# TODO(synk): fully eliminate the HBM im2col materialization by building the patch
# tile in-kernel from a halo-loaded NHWC x tile (manual DMA / tap-sum formulation).
def hex_patches_nhwc(a, k=HEX_K, k_pad_to=None):
    """a: (N,H,W,C) -> (N*H*W, k_pad_to) patches, tap-major / channel-minor columns.

    The MXU contraction padding (to a 128 multiple) is folded into the concat so
    the dominant operand is written to HBM exactly once, already Kp-wide.
    """
    N, H, W, C = a.shape
    taps = hex_tap_offsets(k)
    ap = jnp.pad(a, ((0, 0), (k, k), (k, k), (0, 0)))
    odd_col = ((jnp.arange(W) % 2) == 1).reshape(1, 1, W, 1)
    parts = []
    for (dj, dre, dro) in taps:
        se = ap[:, k + dre:k + dre + H, k + dj:k + dj + W, :]
        if dro == dre:
            g = se
        else:
            so = ap[:, k + dro:k + dro + H, k + dj:k + dj + W, :]
            g = jnp.where(odd_col, so, se)
        parts.append(g)
    K = len(taps) * C
    Kp = k_pad_to if k_pad_to is not None else K
    if Kp > K:
        parts.append(jnp.zeros((N, H, W, Kp - K), a.dtype))
    return jnp.concatenate(parts, axis=-1).reshape(N * H * W, Kp)


def _stats_kernel(p_ref, w_ref, sum_ref, ssq_ref):
    # p: (TILE_P, Kp) bf16, w: (Kp, Mp) bf16 -> y: (TILE_P, Mp) f32 (MXU, f32 acc).
    # Only tiny per-tile partial BatchNorm statistics leave the kernel; the full y
    # tile is never written to HBM (recomputed in pass 2).  Padded rows are zero so
    # they contribute nothing; the wrapper divides by the true row count P.
    y = jnp.dot(p_ref[...], w_ref[...], preferred_element_type=jnp.float32)
    sum_ref[...] = jnp.sum(y, axis=0, keepdims=True)[None]
    ssq_ref[...] = jnp.sum(y * y, axis=0, keepdims=True)[None]


def _matmul_bn_relu_kernel(p_ref, w_ref, scale_ref, shift_ref, o_ref):
    # Recompute the conv matmul, then fused lane-dense affine BN apply + ReLU.
    y = jnp.dot(p_ref[...], w_ref[...], preferred_element_type=jnp.float32)
    o_ref[...] = jnp.maximum(
        y * scale_ref[...] + shift_ref[...], 0.0
    ).astype(o_ref.dtype)


def conv_bn_relu_block(a, w, gamma, beta, out_dtype):
    """One (hexagdly.Conv2d -> BatchNorm2d(train) -> ReLU) block.

    a: (N,H,W,C) bf16 activations.  w: (T,C,M) conv weights.  Returns (N,H,W,M).
    """
    N, H, W, C = a.shape
    T, _, M = w.shape
    K = T * C
    Kp = _round_up(K, LANE)
    Mp = _round_up(M, LANE)
    P = N * H * W
    Pp = _round_up(P, TILE_P)
    nt = Pp // TILE_P

    patches = hex_patches_nhwc(a, HEX_K, k_pad_to=Kp)              # (P, Kp) bf16
    if Pp > P:
        patches = jnp.pad(patches, ((0, Pp - P), (0, 0)))          # zero rows: no-op for stats
    w_p = jnp.pad(w.reshape(K, M).astype(jnp.float32),
                  ((0, Kp - K), (0, Mp - M))).astype(jnp.bfloat16)
    g_p = jnp.pad(gamma.astype(jnp.float32), (0, Mp - M))
    b_p = jnp.pad(beta.astype(jnp.float32), (0, Mp - M))

    # ---- pass 1: hex-conv-as-matmul, per-tile (sum, sumsq) partial statistics ----
    psum, pssq = pl.pallas_call(
        _stats_kernel,
        grid=(nt,),
        in_specs=[pl.BlockSpec((TILE_P, Kp), lambda i: (i, 0)),
                  pl.BlockSpec((Kp, Mp), lambda i: (0, 0))],
        out_specs=[pl.BlockSpec((1, 1, Mp), lambda i: (i, 0, 0)),
                   pl.BlockSpec((1, 1, Mp), lambda i: (i, 0, 0))],
        out_shape=[jax.ShapeDtypeStruct((nt, 1, Mp), jnp.float32),
                   jax.ShapeDtypeStruct((nt, 1, Mp), jnp.float32)],
        compiler_params=pltpu.CompilerParams(
            dimension_semantics=("parallel",)),
        cost_estimate=pl.CostEstimate(
            flops=2 * Pp * Kp * Mp + 2 * Pp * Mp,
            transcendentals=0,
            bytes_accessed=Pp * Kp * 2 + Kp * Mp * 2 + 2 * nt * Mp * 4),
    )(patches, w_p)

    # Combine partial stats exactly -> batch mean / biased variance over the true P
    # rows, matching BatchNorm2d training-mode semantics; fold gamma/beta in.
    s = jnp.sum(psum[:, 0, :], axis=0)
    ss = jnp.sum(pssq[:, 0, :], axis=0)
    mean = s / float(P)
    var = jnp.maximum(ss / float(P) - mean * mean, 0.0)
    inv = lax.rsqrt(var + BN_EPS)
    scale_v = g_p * inv
    shift_v = b_p - mean * scale_v
    scale = scale_v.reshape(1, Mp)
    shift = shift_v.reshape(1, Mp)

    # ---- pass 2: recompute matmul, fused BatchNorm apply + ReLU (lane-dense) ----
    out_bytes = jnp.dtype(out_dtype).itemsize
    out = pl.pallas_call(
        _matmul_bn_relu_kernel,
        grid=(nt,),
        in_specs=[pl.BlockSpec((TILE_P, Kp), lambda i: (i, 0)),
                  pl.BlockSpec((Kp, Mp), lambda i: (0, 0)),
                  pl.BlockSpec((1, Mp), lambda i: (0, 0)),
                  pl.BlockSpec((1, Mp), lambda i: (0, 0))],
        out_specs=pl.BlockSpec((TILE_P, Mp), lambda i: (i, 0)),
        out_shape=jax.ShapeDtypeStruct((Pp, Mp), out_dtype),
        compiler_params=pltpu.CompilerParams(
            dimension_semantics=("parallel",)),
        cost_estimate=pl.CostEstimate(
            flops=2 * Pp * Kp * Mp + 2 * Pp * Mp,
            transcendentals=0,
            bytes_accessed=Pp * Kp * 2 + Kp * Mp * 2 + 2 * Mp * 4
                           + Pp * Mp * out_bytes),
    )(patches, w_p, scale, shift)

    return out[:P, :M].reshape(N, H, W, M)


def double_conv_forward(x, params):
    """x: (N, C_in, H, W) NCHW -> (N, C_out, H, W), matching DoubleConv.forward."""
    w1, g1, b1, w2, g2, b2 = params
    # single layout change in, single layout change out; bf16 activations for the
    # MXU / halved HBM traffic, all BN/elementwise math stays f32 inside kernels.
    a = jnp.transpose(x, (0, 2, 3, 1)).astype(jnp.bfloat16)            # NHWC
    h = conv_bn_relu_block(a, w1, g1, b1, out_dtype=jnp.bfloat16)      # (N,H,W,mid)
    y = conv_bn_relu_block(h, w2, g2, b2, out_dtype=jnp.float32)       # (N,H,W,Cout)
    return jnp.transpose(y, (0, 3, 1, 2))                              # back to NCHW


if __name__ == "__main__":
    N, Cin, H, W = 2, 4, 16, 16
    mid = out_ch = 8                      # mid_channels defaults to out_channels
    T = len(hex_tap_offsets(HEX_K))       # 37 taps for hex kernel_size=3

    key = jax.random.PRNGKey(0)
    kx, k1, k2 = jax.random.split(key, 3)
    x = jax.random.normal(kx, (N, Cin, H, W), jnp.float32)

    # deterministic synthetic parameters (conv weights; BN gamma=1, beta=0 defaults)
    w1 = 0.1 * jax.random.normal(k1, (T, Cin, mid), jnp.float32)
    w2 = 0.1 * jax.random.normal(k2, (T, mid, out_ch), jnp.float32)
    g1 = jnp.ones((mid,), jnp.float32)
    b1 = jnp.zeros((mid,), jnp.float32)
    g2 = jnp.ones((out_ch,), jnp.float32)
    b2 = jnp.zeros((out_ch,), jnp.float32)

    fwd = jax.jit(double_conv_forward)
    y = jax.block_until_ready(fwd(x, (w1, g1, b1, w2, g2, b2)))
    assert y.shape == (N, out_ch, H, W)
    assert bool(jnp.all(jnp.isfinite(y)))
    print("KERNEL_OK")
</pallas_src>

<mosaic_0001>
module attributes {stable_mosaic.version = 11 : i64} {
  func.func @_stats_kernel(%arg0: i32, %arg1: memref<512x256xbf16, #tpu.memory_space<vmem>>, %arg2: memref<256x128xbf16, #tpu.memory_space<vmem>>, %arg3: memref<1x1x128xf32, #tpu.memory_space<vmem>>, %arg4: memref<1x1x128xf32, #tpu.memory_space<vmem>>) attributes {dimension_semantics = [#tpu.dimension_semantics<parallel>], iteration_bounds = array<i64: 1>, scalar_prefetch = 0 : i64, scratch_operands = 0 : i64, tpu.core_type = #tpu.core_type<tc>, window_params = [{transform_indices = @transform_0, window_bounds = array<i64: 512, 256>}, {pipeline_mode = #tpu.pipeline_mode<synchronous>, transform_indices = @transform_1, window_bounds = array<i64: 256, 128>}, {transform_indices = @transform_2, window_bounds = array<i64: 1, 1, 128>}, {transform_indices = @transform_3, window_bounds = array<i64: 1, 1, 128>}]} {
    %c0 = arith.constant 0 : index
    %c0_0 = arith.constant 0 : index
    %0 = vector.load %arg1[%c0, %c0_0] : memref<512x256xbf16, #tpu.memory_space<vmem>>, vector<512x256xbf16>
    %c0_1 = arith.constant 0 : index
    %c0_2 = arith.constant 0 : index
    %1 = vector.load %arg2[%c0_1, %c0_2] : memref<256x128xbf16, #tpu.memory_space<vmem>>, vector<256x128xbf16>
    %cst = arith.constant dense<0.000000e+00> : vector<512x128xf32>
    %2 = tpu.matmul %0, %1, %cst {dimension_numbers = #tpu.dot_dimension_numbers<[1], [0], [0], [1], [0, 0, 1, 1], [], []>} : vector<512x256xbf16>, vector<256x128xbf16>, vector<512x128xf32> -> vector<512x128xf32>
    %cst_3 = arith.constant dense<0.000000e+00> : vector<128xf32>
    %3 = vector.multi_reduction <add>, %2, %cst_3 [0] : vector<512x128xf32> to vector<128xf32>
    %4 = vector.shape_cast %3 : vector<128xf32> to vector<1x128xf32>
    %5 = vector.shape_cast %4 : vector<1x128xf32> to vector<1x1x128xf32>
    %c0_4 = arith.constant 0 : index
    %c0_5 = arith.constant 0 : index
    %c0_6 = arith.constant 0 : index
    %6 = vector.load %arg3[%c0_4, %c0_5, %c0_6] : memref<1x1x128xf32, #tpu.memory_space<vmem>>, vector<1x1x128xf32>
    tpu.vector_store %arg3[%c0_4, %c0_5, %c0_6], %5 {strides = array<i32>} : memref<1x1x128xf32, #tpu.memory_space<vmem>>, vector<1x1x128xf32>,
    %7 = arith.mulf %2, %2 : vector<512x128xf32>
    %cst_7 = arith.constant dense<0.000000e+00> : vector<128xf32>
    %8 = vector.multi_reduction <add>, %7, %cst_7 [0] : vector<512x128xf32> to vector<128xf32>
    %9 = vector.shape_cast %8 : vector<128xf32> to vector<1x128xf32>
    %10 = vector.shape_cast %9 : vector<1x128xf32> to vector<1x1x128xf32>
    %c0_8 = arith.constant 0 : index
    %c0_9 = arith.constant 0 : index
    %c0_10 = arith.constant 0 : index
    %11 = vector.load %arg4[%c0_8, %c0_9, %c0_10] : memref<1x1x128xf32, #tpu.memory_space<vmem>>, vector<1x1x128xf32>
    tpu.vector_store %arg4[%c0_8, %c0_9, %c0_10], %10 {strides = array<i32>} : memref<1x1x128xf32, #tpu.memory_space<vmem>>, vector<1x1x128xf32>,
    return
  }
  func.func @transform_0(%arg0: i32) -> (i32, i32) {
    %c0_i32 = arith.constant 0 : i32
    %c0_i32_0 = arith.constant 0 : i32
    return %arg0, %c0_i32 : i32, i32
  }
  func.func @transform_1(%arg0: i32) -> (i32, i32) {
    %c0_i32 = arith.constant 0 : i32
    %c0_i32_0 = arith.constant 0 : i32
    %c0_i32_1 = arith.constant 0 : i32
    return %c0_i32, %c0_i32_0 : i32, i32
  }
  func.func @transform_2(%arg0: i32) -> (i32, i32, i32) {
    %c0_i32 = arith.constant 0 : i32
    %c0_i32_0 = arith.constant 0 : i32
    %c0_i32_1 = arith.constant 0 : i32
    return %arg0, %c0_i32, %c0_i32_0 : i32, i32, i32
  }
  func.func @transform_3(%arg0: i32) -> (i32, i32, i32) {
    %c0_i32 = arith.constant 0 : i32
    %c0_i32_0 = arith.constant 0 : i32
    %c0_i32_1 = arith.constant 0 : i32
    return %arg0, %c0_i32, %c0_i32_0 : i32, i32, i32
  }
}

module attributes {stable_mosaic.version = 11 : i64} {
  func.func @_matmul_bn_relu_kernel(%arg0: i32, %arg1: memref<512x256xbf16, #tpu.memory_space<vmem>>, %arg2: memref<256x128xbf16, #tpu.memory_space<vmem>>, %arg3: memref<1x128xf32, #tpu.memory_space<vmem>>, %arg4: memref<1x128xf32, #tpu.memory_space<vmem>>, %arg5: memref<512x128xbf16, #tpu.memory_space<vmem>>) attributes {dimension_semantics = [#tpu.dimension_semantics<parallel>], iteration_bounds = array<i64: 1>, scalar_prefetch = 0 : i64, scratch_operands = 0 : i64, tpu.core_type = #tpu.core_type<tc>, window_params = [{transform_indices = @transform_0, window_bounds = array<i64: 512, 256>}, {pipeline_mode = #tpu.pipeline_mode<synchronous>, transform_indices = @transform_1, window_bounds = array<i64: 256, 128>}, {pipeline_mode = #tpu.pipeline_mode<synchronous>, transform_indices = @transform_2, window_bounds = array<i64: 1, 128>}, {pipeline_mode = #tpu.pipeline_mode<synchronous>, transform_indices = @transform_3, window_bounds = array<i64: 1, 128>}, {transform_indices = @transform_4, window_bounds = array<i64: 512, 128>}]} {
    %c0 = arith.constant 0 : index
    %c0_0 = arith.constant 0 : index
    %0 = vector.load %arg1[%c0, %c0_0] : memref<512x256xbf16, #tpu.memory_space<vmem>>, vector<512x256xbf16>
    %c0_1 = arith.constant 0 : index
    %c0_2 = arith.constant 0 : index
    %1 = vector.load %arg2[%c0_1, %c0_2] : memref<256x128xbf16, #tpu.memory_space<vmem>>, vector<256x128xbf16>
    %cst = arith.constant dense<0.000000e+00> : vector<512x128xf32>
    %2 = tpu.matmul %0, %1, %cst {dimension_numbers = #tpu.dot_dimension_numbers<[1], [0], [0], [1], [0, 0, 1, 1], [], []>} : vector<512x256xbf16>, vector<256x128xbf16>, vector<512x128xf32> -> vector<512x128xf32>
    %c0_3 = arith.constant 0 : index
    %c0_4 = arith.constant 0 : index
    %3 = vector.load %arg3[%c0_3, %c0_4] : memref<1x128xf32, #tpu.memory_space<vmem>>, vector<1x128xf32>
    %4 = vector.broadcast %3 : vector<1x128xf32> to vector<512x128xf32>
    %5 = arith.mulf %2, %4 : vector<512x128xf32>
    %c0_5 = arith.constant 0 : index
    %c0_6 = arith.constant 0 : index
    %6 = vector.load %arg4[%c0_5, %c0_6] : memref<1x128xf32, #tpu.memory_space<vmem>>, vector<1x128xf32>
    %7 = vector.broadcast %6 : vector<1x128xf32> to vector<512x128xf32>
    %8 = arith.addf %5, %7 : vector<512x128xf32>
    %cst_7 = arith.constant 0.000000e+00 : f32
    %9 = vector.broadcast %cst_7 : f32 to vector<512x128xf32>
    %10 = arith.maximumf %8, %9 : vector<512x128xf32>
    %11 = arith.truncf %10 : vector<512x128xf32> to vector<512x128xbf16>
    %c0_8 = arith.constant 0 : index
    %c0_9 = arith.constant 0 : index
    %12 = vector.load %arg5[%c0_8, %c0_9] : memref<512x128xbf16, #tpu.memory_space<vmem>>, vector<512x128xbf16>
    tpu.vector_store %arg5[%c0_8, %c0_9], %11 {strides = array<i32>} : memref<512x128xbf16, #tpu.memory_space<vmem>>, vector<512x128xbf16>,
    return
  }
  func.func @transform_0(%arg0: i32) -> (i32, i32) {
    %c0_i32 = arith.constant 0 : i32
    %c0_i32_0 = arith.constant 0 : i32
    return %arg0, %c0_i32 : i32, i32
  }
  func.func @transform_1(%arg0: i32) -> (i32, i32) {
    %c0_i32 = arith.constant 0 : i32
    %c0_i32_0 = arith.constant 0 : i32
    %c0_i32_1 = arith.constant 0 : i32
    return %c0_i32, %c0_i32_0 : i32, i32
  }
  func.func @transform_2(%arg0: i32) -> (i32, i32) {
    %c0_i32 = arith.constant 0 : i32
    %c0_i32_0 = arith.constant 0 : i32
    %c0_i32_1 = arith.constant 0 : i32
    return %c0_i32, %c0_i32_0 : i32, i32
  }
  func.func @transform_3(%arg0: i32) -> (i32, i32) {
    %c0_i32 = arith.constant 0 : i32
    %c0_i32_0 = arith.constant 0 : i32
    %c0_i32_1 = arith.constant 0 : i32
    return %c0_i32, %c0_i32_0 : i32, i32
  }
  func.func @transform_4(%arg0: i32) -> (i32, i32) {
    %c0_i32 = arith.constant 0 : i32
    %c0_i32_0 = arith.constant 0 : i32
    return %arg0, %c0_i32 : i32, i32
  }
}

module attributes {stable_mosaic.version = 11 : i64} {
  func.func @_stats_kernel(%arg0: i32, %arg1: memref<512x384xbf16, #tpu.memory_space<vmem>>, %arg2: memref<384x128xbf16, #tpu.memory_space<vmem>>, %arg3: memref<1x1x128xf32, #tpu.memory_space<vmem>>, %arg4: memref<1x1x128xf32, #tpu.memory_space<vmem>>) attributes {dimension_semantics = [#tpu.dimension_semantics<parallel>], iteration_bounds = array<i64: 1>, scalar_prefetch = 0 : i64, scratch_operands = 0 : i64, tpu.core_type = #tpu.core_type<tc>, window_params = [{transform_indices = @transform_0, window_bounds = array<i64: 512, 384>}, {pipeline_mode = #tpu.pipeline_mode<synchronous>, transform_indices = @transform_1, window_bounds = array<i64: 384, 128>}, {transform_indices = @transform_2, window_bounds = array<i64: 1, 1, 128>}, {transform_indices = @transform_3, window_bounds = array<i64: 1, 1, 128>}]} {
    %c0 = arith.constant 0 : index
    %c0_0 = arith.constant 0 : index
    %0 = vector.load %arg1[%c0, %c0_0] : memref<512x384xbf16, #tpu.memory_space<vmem>>, vector<512x384xbf16>
    %c0_1 = arith.constant 0 : index
    %c0_2 = arith.constant 0 : index
    %1 = vector.load %arg2[%c0_1, %c0_2] : memref<384x128xbf16, #tpu.memory_space<vmem>>, vector<384x128xbf16>
    %cst = arith.constant dense<0.000000e+00> : vector<512x128xf32>
    %2 = tpu.matmul %0, %1, %cst {dimension_numbers = #tpu.dot_dimension_numbers<[1], [0], [0], [1], [0, 0, 1, 1], [], []>} : vector<512x384xbf16>, vector<384x128xbf16>, vector<512x128xf32> -> vector<512x128xf32>
    %cst_3 = arith.constant dense<0.000000e+00> : vector<128xf32>
    %3 = vector.multi_reduction <add>, %2, %cst_3 [0] : vector<512x128xf32> to vector<128xf32>
    %4 = vector.shape_cast %3 : vector<128xf32> to vector<1x128xf32>
    %5 = vector.shape_cast %4 : vector<1x128xf32> to vector<1x1x128xf32>
    %c0_4 = arith.constant 0 : index
    %c0_5 = arith.constant 0 : index
    %c0_6 = arith.constant 0 : index
    %6 = vector.load %arg3[%c0_4, %c0_5, %c0_6] : memref<1x1x128xf32, #tpu.memory_space<vmem>>, vector<1x1x128xf32>
    tpu.vector_store %arg3[%c0_4, %c0_5, %c0_6], %5 {strides = array<i32>} : memref<1x1x128xf32, #tpu.memory_space<vmem>>, vector<1x1x128xf32>,
    %7 = arith.mulf %2, %2 : vector<512x128xf32>
    %cst_7 = arith.constant dense<0.000000e+00> : vector<128xf32>
    %8 = vector.multi_reduction <add>, %7, %cst_7 [0] : vector<512x128xf32> to vector<128xf32>
    %9 = vector.shape_cast %8 : vector<128xf32> to vector<1x128xf32>
    %10 = vector.shape_cast %9 : vector<1x128xf32> to vector<1x1x128xf32>
    %c0_8 = arith.constant 0 : index
    %c0_9 = arith.constant 0 : index
    %c0_10 = arith.constant 0 : index
    %11 = vector.load %arg4[%c0_8, %c0_9, %c0_10] : memref<1x1x128xf32, #tpu.memory_space<vmem>>, vector<1x1x128xf32>
    tpu.vector_store %arg4[%c0_8, %c0_9, %c0_10], %10 {strides = array<i32>} : memref<1x1x128xf32, #tpu.memory_space<vmem>>, vector<1x1x128xf32>,
    return
  }
  func.func @transform_0(%arg0: i32) -> (i32, i32) {
    %c0_i32 = arith.constant 0 : i32
    %c0_i32_0 = arith.constant 0 : i32
    return %arg0, %c0_i32 : i32, i32
  }
  func.func @transform_1(%arg0: i32) -> (i32, i32) {
    %c0_i32 = arith.constant 0 : i32
    %c0_i32_0 = arith.constant 0 : i32
    %c0_i32_1 = arith.constant 0 : i32
    return %c0_i32, %c0_i32_0 : i32, i32
  }
  func.func @transform_2(%arg0: i32) -> (i32, i32, i32) {
    %c0_i32 = arith.constant 0 : i32
    %c0_i32_0 = arith.constant 0 : i32
    %c0_i32_1 = arith.constant 0 : i32
    return %arg0, %c0_i32, %c0_i32_0 : i32, i32, i32
  }
  func.func @transform_3(%arg0: i32) -> (i32, i32, i32) {
    %c0_i32 = arith.constant 0 : i32
    %c0_i32_0 = arith.constant 0 : i32
    %c0_i32_1 = arith.constant 0 : i32
    return %arg0, %c0_i32, %c0_i32_0 : i32, i32, i32
  }
}

module attributes {stable_mosaic.version = 11 : i64} {
  func.func @_matmul_bn_relu_kernel(%arg0: i32, %arg1: memref<512x384xbf16, #tpu.memory_space<vmem>>, %arg2: memref<384x128xbf16, #tpu.memory_space<vmem>>, %arg3: memref<1x128xf32, #tpu.memory_space<vmem>>, %arg4: memref<1x128xf32, #tpu.memory_space<vmem>>, %arg5: memref<512x128xf32, #tpu.memory_space<vmem>>) attributes {dimension_semantics = [#tpu.dimension_semantics<parallel>], iteration_bounds = array<i64: 1>, scalar_prefetch = 0 : i64, scratch_operands = 0 : i64, tpu.core_type = #tpu.core_type<tc>, window_params = [{transform_indices = @transform_0, window_bounds = array<i64: 512, 384>}, {pipeline_mode = #tpu.pipeline_mode<synchronous>, transform_indices = @transform_1, window_bounds = array<i64: 384, 128>}, {pipeline_mode = #tpu.pipeline_mode<synchronous>, transform_indices = @transform_2, window_bounds = array<i64: 1, 128>}, {pipeline_mode = #tpu.pipeline_mode<synchronous>, transform_indices = @transform_3, window_bounds = array<i64: 1, 128>}, {transform_indices = @transform_4, window_bounds = array<i64: 512, 128>}]} {
    %c0 = arith.constant 0 : index
    %c0_0 = arith.constant 0 : index
    %0 = vector.load %arg1[%c0, %c0_0] : memref<512x384xbf16, #tpu.memory_space<vmem>>, vector<512x384xbf16>
    %c0_1 = arith.constant 0 : index
    %c0_2 = arith.constant 0 : index
    %1 = vector.load %arg2[%c0_1, %c0_2] : memref<384x128xbf16, #tpu.memory_space<vmem>>, vector<384x128xbf16>
    %cst = arith.constant dense<0.000000e+00> : vector<512x128xf32>
    %2 = tpu.matmul %0, %1, %cst {dimension_numbers = #tpu.dot_dimension_numbers<[1], [0], [0], [1], [0, 0, 1, 1], [], []>} : vector<512x384xbf16>, vector<384x128xbf16>, vector<512x128xf32> -> vector<512x128xf32>
    %c0_3 = arith.constant 0 : index
    %c0_4 = arith.constant 0 : index
    %3 = vector.load %arg3[%c0_3, %c0_4] : memref<1x128xf32, #tpu.memory_space<vmem>>, vector<1x128xf32>
    %4 = vector.broadcast %3 : vector<1x128xf32> to vector<512x128xf32>
    %5 = arith.mulf %2, %4 : vector<512x128xf32>
    %c0_5 = arith.constant 0 : index
    %c0_6 = arith.constant 0 : index
    %6 = vector.load %arg4[%c0_5, %c0_6] : memref<1x128xf32, #tpu.memory_space<vmem>>, vector<1x128xf32>
    %7 = vector.broadcast %6 : vector<1x128xf32> to vector<512x128xf32>
    %8 = arith.addf %5, %7 : vector<512x128xf32>
    %cst_7 = arith.constant 0.000000e+00 : f32
    %9 = vector.broadcast %cst_7 : f32 to vector<512x128xf32>
    %10 = arith.maximumf %8, %9 : vector<512x128xf32>
    %c0_8 = arith.constant 0 : index
    %c0_9 = arith.constant 0 : index
    %11 = vector.load %arg5[%c0_8, %c0_9] : memref<512x128xf32, #tpu.memory_space<vmem>>, vector<512x128xf32>
    tpu.vector_store %arg5[%c0_8, %c0_9], %10 {strides = array<i32>} : memref<512x128xf32, #tpu.memory_space<vmem>>, vector<512x128xf32>,
    return
  }
  func.func @transform_0(%arg0: i32) -> (i32, i32) {
    %c0_i32 = arith.constant 0 : i32
    %c0_i32_0 = arith.constant 0 : i32
    return %arg0, %c0_i32 : i32, i32
  }
  func.func @transform_1(%arg0: i32) -> (i32, i32) {
    %c0_i32 = arith.constant 0 : i32
    %c0_i32_0 = arith.constant 0 : i32
    %c0_i32_1 = arith.constant 0 : i32
    return %c0_i32, %c0_i32_0 : i32, i32
  }
  func.func @transform_2(%arg0: i32) -> (i32, i32) {
    %c0_i32 = arith.constant 0 : i32
    %c0_i32_0 = arith.constant 0 : i32
    %c0_i32_1 = arith.constant 0 : i32
    return %c0_i32, %c0_i32_0 : i32, i32
  }
  func.func @transform_3(%arg0: i32) -> (i32, i32) {
    %c0_i32 = arith.constant 0 : i32
    %c0_i32_0 = arith.constant 0 : i32
    %c0_i32_1 = arith.constant 0 : i32
    return %c0_i32, %c0_i32_0 : i32, i32
  }
  func.func @transform_4(%arg0: i32) -> (i32, i32) {
    %c0_i32 = arith.constant 0 : i32
    %c0_i32_0 = arith.constant 0 : i32
    return %arg0, %c0_i32 : i32, i32
  }
}

</mosaic_0001>

<llo_original>
// kernel: double_conv_forward.4
$region0: #{double_conv_forward.4}
  #allocation0 [shape = 'u32[]', space=smem, size = 0x4, offset = 0x4, fixed_abs, tag = 'smem constant byte address 0x4 - core index']
  #allocation1 [shape = 'u32[144,128]{1,0:T(1,128)}', space=vmem, size = 0x12000, scoped, tag = 'internal scratch']
  %s0 = inlined_call_operand.vmem [shape: bf16[512,256], index: 0, kind: input, shape index: {}]
  %s1 = inlined_call_operand.vmem [shape: bf16[256,128], index: 1, kind: input, shape index: {}]
  %s2 = inlined_call_operand.vmem [shape: f32[1,1,128], index: 2, kind: output, shape index: {0}]
  %s3 = inlined_call_operand.vmem [shape: f32[1,1,128], index: 3, kind: output, shape index: {1}]
  %4 = xla_tuple %s2, %s3
  %s5 = sld [smem:[#allocation0]]
  $region26: #{double_conv_forward.4} parent=0
    _
  %s7 = ssub.s32 1, %s5
  %s8 = scalar_select 0, %s7, %s5
  // Predicated region
  $region2: #{double_conv_forward.4} parent=0 // pred_check
    _
  $region3: #{double_conv_forward.4} parent=0 // pred_check_branch
    %10 = sbr.rel (0) target = $region5
  $region4: #{double_conv_forward.4} parent=0 // pred_region
    _
  $region5: #{double_conv_forward.4} parent=0 // pred_fallthru
    _
  // Predicated region
  $region6: #{double_conv_forward.4} parent=0 // pred_check
    _
  $region7: #{double_conv_forward.4} parent=0 // pred_check_branch
    %12 = sbr.rel (0) target = $region9
  $region8: #{double_conv_forward.4} parent=0 // pred_region
    _
  $region9: #{double_conv_forward.4} parent=0 // pred_fallthru
    _
  %v14 = vld [vmem:[%s0] sm:$0xff]
  %v15 = vld [vmem:[%s0 + $0x8] sm:$0xff]
  %v16 = vld [vmem:[%s0 + $0x10] sm:$0xff]
  %v17 = vld [vmem:[%s0 + $0x18] sm:$0xff]
  %v18 = vld [vmem:[%s0 + $0x20] sm:$0xff]
  %v19 = vld [vmem:[%s0 + $0x28] sm:$0xff]
  %v20 = vld [vmem:[%s0 + $0x30] sm:$0xff]
  %v21 = vld [vmem:[%s0 + $0x38] sm:$0xff]
  %v22 = vld [vmem:[%s0 + $0x40] sm:$0xff]
  %v23 = vld [vmem:[%s0 + $0x48] sm:$0xff]
  %v24 = vld [vmem:[%s0 + $0x50] sm:$0xff]
  %v25 = vld [vmem:[%s0 + $0x58] sm:$0xff]
  %v26 = vld [vmem:[%s0 + $0x60] sm:$0xff]
  %v27 = vld [vmem:[%s0 + $0x68] sm:$0xff]
  %v28 = vld [vmem:[%s0 + $0x70] sm:$0xff]
  %v29 = vld [vmem:[%s0 + $0x78] sm:$0xff]
  %v30 = vld [vmem:[%s0 + $0x80] sm:$0xff]
  %v31 = vld [vmem:[%s0 + $0x88] sm:$0xff]
  %v32 = vld [vmem:[%s0 + $0x90] sm:$0xff]
  %v33 = vld [vmem:[%s0 + $0x98] sm:$0xff]
  %v34 = vld [vmem:[%s0 + $0xa0] sm:$0xff]
  %v35 = vld [vmem:[%s0 + $0xa8] sm:$0xff]
  %v36 = vld [vmem:[%s0 + $0xb0] sm:$0xff]
  %v37 = vld [vmem:[%s0 + $0xb8] sm:$0xff]
  %v38 = vld [vmem:[%s0 + $0xc0] sm:$0xff]
  %v39 = vld [vmem:[%s0 + $0xc8] sm:$0xff]
  %v40 = vld [vmem:[%s0 + $0xd0] sm:$0xff]
  %v41 = vld [vmem:[%s0 + $0xd8] sm:$0xff]
  %v42 = vld [vmem:[%s0 + $0xe0] sm:$0xff]
  %v43 = vld [vmem:[%s0 + $0xe8] sm:$0xff]
  %v44 = vld [vmem:[%s0 + $0xf0] sm:$0xff]
  %v45 = vld [vmem:[%s0 + $0xf8] sm:$0xff]
  %v46 = vld [vmem:[%s0 + $0x100] sm:$0xff]
  %v47 = vld [vmem:[%s0 + $0x108] sm:$0xff]
  %v48 = vld [vmem:[%s0 + $0x110] sm:$0xff]
  %v49 = vld [vmem:[%s0 + $0x118] sm:$0xff]
  %v50 = vld [vmem:[%s0 + $0x120] sm:$0xff]
  %v51 = vld [vmem:[%s0 + $0x128] sm:$0xff]
  %v52 = vld [vmem:[%s0 + $0x130] sm:$0xff]
  %v53 = vld [vmem:[%s0 + $0x138] sm:$0xff]
  %v54 = vld [vmem:[%s0 + $0x140] sm:$0xff]
  %v55 = vld [vmem:[%s0 + $0x148] sm:$0xff]
  %v56 = vld [vmem:[%s0 + $0x150] sm:$0xff]
  %v57 = vld [vmem:[%s0 + $0x158] sm:$0xff]
  %v58 = vld [vmem:[%s0 + $0x160] sm:$0xff]
  %v59 = vld [vmem:[%s0 + $0x168] sm:$0xff]
  %v60 = vld [vmem:[%s0 + $0x170] sm:$0xff]
  %v61 = vld [vmem:[%s0 + $0x178] sm:$0xff]
  %v62 = vld [vmem:[%s0 + $0x180] sm:$0xff]
  %v63 = vld [vmem:[%s0 + $0x188] sm:$0xff]
  %v64 = vld [vmem:[%s0 + $0x190] sm:$0xff]
  %v65 = vld [vmem:[%s0 + $0x198] sm:$0xff]
  %v66 = vld [vmem:[%s0 + $0x1a0] sm:$0xff]
  %v67 = vld [vmem:[%s0 + $0x1a8] sm:$0xff]
  %v68 = vld [vmem:[%s0 + $0x1b0] sm:$0xff]
  %v69 = vld [vmem:[%s0 + $0x1b8] sm:$0xff]
  %v70 = vld [vmem:[%s0 + $0x1c0] sm:$0xff]
  %v71 = vld [vmem:[%s0 + $0x1c8] sm:$0xff]
  %v72 = vld [vmem:[%s0 + $0x1d0] sm:$0xff]
  %v73 = vld [vmem:[%s0 + $0x1d8] sm:$0xff]
  %v74 = vld [vmem:[%s0 + $0x1e0] sm:$0xff]
  %v75 = vld [vmem:[%s0 + $0x1e8] sm:$0xff]
  %v76 = vld [vmem:[%s0 + $0x1f0] sm:$0xff]
  %v77 = vld [vmem:[%s0 + $0x1f8] sm:$0xff]
  %v78 = vld [vmem:[%s1] sm:$0xf]
  %v79 = vld [vmem:[%s1 + $0x4] sm:$0xf]
  %v80 = vld [vmem:[%s1 + $0x8] sm:$0xf]
  %v81 = vld [vmem:[%s1 + $0xc] sm:$0xf]
  %v82 = vld [vmem:[%s1 + $0x10] sm:$0xf]
  %v83 = vld [vmem:[%s1 + $0x14] sm:$0xf]
  %v84 = vld [vmem:[%s1 + $0x18] sm:$0xf]
  %v85 = vld [vmem:[%s1 + $0x1c] sm:$0xf]
  %v86 = vld [vmem:[%s1 + $0x20] sm:$0xf]
  %v87 = vld [vmem:[%s1 + $0x24] sm:$0xf]
  %v88 = vld [vmem:[%s1 + $0x28] sm:$0xf]
  %v89 = vld [vmem:[%s1 + $0x2c] sm:$0xf]
  %v90 = vld [vmem:[%s1 + $0x30] sm:$0xf]
  %v91 = vld [vmem:[%s1 + $0x34] sm:$0xf]
  %v92 = vld [vmem:[%s1 + $0x38] sm:$0xf]
  %v93 = vld [vmem:[%s1 + $0x3c] sm:$0xf]
  %v94 = vld [vmem:[%s1 + $0x40] sm:$0xf]
  %v95 = vld [vmem:[%s1 + $0x44] sm:$0xf]
  %v96 = vld [vmem:[%s1 + $0x48] sm:$0xf]
  %v97 = vld [vmem:[%s1 + $0x4c] sm:$0xf]
  %v98 = vld [vmem:[%s1 + $0x50] sm:$0xf]
  %v99 = vld [vmem:[%s1 + $0x54] sm:$0xf]
  %v100 = vld [vmem:[%s1 + $0x58] sm:$0xf]
  %v101 = vld [vmem:[%s1 + $0x5c] sm:$0xf]
  %v102 = vld [vmem:[%s1 + $0x60] sm:$0xf]
  %v103 = vld [vmem:[%s1 + $0x64] sm:$0xf]
  %v104 = vld [vmem:[%s1 + $0x68] sm:$0xf]
  %v105 = vld [vmem:[%s1 + $0x6c] sm:$0xf]
  %v106 = vld [vmem:[%s1 + $0x70] sm:$0xf]
  %v107 = vld [vmem:[%s1 + $0x74] sm:$0xf]
  %v108 = vld [vmem:[%s1 + $0x78] sm:$0xf]
  %v109 = vld [vmem:[%s1 + $0x7c] sm:$0xf]
  %v174 = vunpack.c.l.b16 %v14
  %v175 = vunpack.c.h.b16 %v14
  %v176 = vunpack.c.l.b16 %v15
  %v177 = vunpack.c.h.b16 %v15
  %v178 = vunpack.c.l.b16 %v16
  %v179 = vunpack.c.h.b16 %v16
  %v180 = vunpack.c.l.b16 %v17
  %v181 = vunpack.c.h.b16 %v17
  %v182 = vunpack.c.l.b16 %v18
  %v183 = vunpack.c.h.b16 %v18
  %v184 = vunpack.c.l.b16 %v19
  %v185 = vunpack.c.h.b16 %v19
  %v186 = vunpack.c.l.b16 %v20
  %v187 = vunpack.c.h.b16 %v20
  %v188 = vunpack.c.l.b16 %v21
  %v189 = vunpack.c.h.b16 %v21
  %v190 = vunpack.c.l.b16 %v22
  %v191 = vunpack.c.h.b16 %v22
  %v192 = vunpack.c.l.b16 %v23
  %v193 = vunpack.c.h.b16 %v23
  %v194 = vunpack.c.l.b16 %v24
  %v195 = vunpack.c.h.b16 %v24
  %v196 = vunpack.c.l.b16 %v25
  %v197 = vunpack.c.h.b16 %v25
  %v198 = vunpack.c.l.b16 %v26
  %v199 = vunpack.c.h.b16 %v26
  %v200 = vunpack.c.l.b16 %v27
  %v201 = vunpack.c.h.b16 %v27
  %v202 = vunpack.c.l.b16 %v28
  %v203 = vunpack.c.h.b16 %v28
  %v204 = vunpack.c.l.b16 %v29
  %v205 = vunpack.c.h.b16 %v29
  %v206 = vunpack.c.l.b16 %v30
  %v207 = vunpack.c.h.b16 %v30
  %v208 = vunpack.c.l.b16 %v31
  %v209 = vunpack.c.h.b16 %v31
  %v210 = vunpack.c.l.b16 %v32
  %v211 = vunpack.c.h.b16 %v32
  %v212 = vunpack.c.l.b16 %v33
  %v213 = vunpack.c.h.b16 %v33
  %v214 = vunpack.c.l.b16 %v34
  %v215 = vunpack.c.h.b16 %v34
  %v216 = vunpack.c.l.b16 %v35
  %v217 = vunpack.c.h.b16 %v35
  %v218 = vunpack.c.l.b16 %v36
  %v219 = vunpack.c.h.b16 %v36
  %v220 = vunpack.c.l.b16 %v37
  %v221 = vunpack.c.h.b16 %v37
  %v222 = vunpack.c.l.b16 %v38
  %v223 = vunpack.c.h.b16 %v38
  %v224 = vunpack.c.l.b16 %v39
  %v225 = vunpack.c.h.b16 %v39
  %v226 = vunpack.c.l.b16 %v40
  %v227 = vunpack.c.h.b16 %v40
  %v228 = vunpack.c.l.b16 %v41
  %v229 = vunpack.c.h.b16 %v41
  %v230 = vunpack.c.l.b16 %v42
  %v231 = vunpack.c.h.b16 %v42
  %v232 = vunpack.c.l.b16 %v43
  %v233 = vunpack.c.h.b16 %v43
  %v234 = vunpack.c.l.b16 %v44
  %v235 = vunpack.c.h.b16 %v44
  %v236 = vunpack.c.l.b16 %v45
  %v237 = vunpack.c.h.b16 %v45
  %v238 = vunpack.c.l.b16 %v46
  %v239 = vunpack.c.h.b16 %v46
  %v240 = vunpack.c.l.b16 %v47
  %v241 = vunpack.c.h.b16 %v47
  %v242 = vunpack.c.l.b16 %v48
  %v243 = vunpack.c.h.b16 %v48
  %v244 = vunpack.c.l.b16 %v49
  %v245 = vunpack.c.h.b16 %v49
  %v246 = vunpack.c.l.b16 %v50
  %v247 = vunpack.c.h.b16 %v50
  %v248 = vunpack.c.l.b16 %v51
  %v249 = vunpack.c.h.b16 %v51
  %v250 = vunpack.c.l.b16 %v52
  %v251 = vunpack.c.h.b16 %v52
  %v252 = vunpack.c.l.b16 %v53
  %v253 = vunpack.c.h.b16 %v53
  %v254 = vunpack.c.l.b16 %v54
  %v255 = vunpack.c.h.b16 %v54
  %v256 = vunpack.c.l.b16 %v55
  %v257 = vunpack.c.h.b16 %v55
  %v258 = vunpack.c.l.b16 %v56
  %v259 = vunpack.c.h.b16 %v56
  %v260 = vunpack.c.l.b16 %v57
  %v261 = vunpack.c.h.b16 %v57
  %v262 = vunpack.c.l.b16 %v58
  %v263 = vunpack.c.h.b16 %v58
  %v264 = vunpack.c.l.b16 %v59
  %v265 = vunpack.c.h.b16 %v59
  %v266 = vunpack.c.l.b16 %v60
  %v267 = vunpack.c.h.b16 %v60
  %v268 = vunpack.c.l.b16 %v61
  %v269 = vunpack.c.h.b16 %v61
  %v270 = vunpack.c.l.b16 %v62
  %v271 = vunpack.c.h.b16 %v62
  %v272 = vunpack.c.l.b16 %v63
  %v273 = vunpack.c.h.b16 %v63
  %v274 = vunpack.c.l.b16 %v64
  %v275 = vunpack.c.h.b16 %v64
  %v276 = vunpack.c.l.b16 %v65
  %v277 = vunpack.c.h.b16 %v65
  %v278 = vunpack.c.l.b16 %v66
  %v279 = vunpack.c.h.b16 %v66
  %v280 = vunpack.c.l.b16 %v67
  %v281 = vunpack.c.h.b16 %v67
  %v282 = vunpack.c.l.b16 %v68
  %v283 = vunpack.c.h.b16 %v68
  %v284 = vunpack.c.l.b16 %v69
  %v285 = vunpack.c.h.b16 %v69
  %v286 = vunpack.c.l.b16 %v70
  %v287 = vunpack.c.h.b16 %v70
  %v288 = vunpack.c.l.b16 %v71
  %v289 = vunpack.c.h.b16 %v71
  %v290 = vunpack.c.l.b16 %v72
  %v291 = vunpack.c.h.b16 %v72
  %v292 = vunpack.c.l.b16 %v73
  %v293 = vunpack.c.h.b16 %v73
  %v294 = vunpack.c.l.b16 %v74
  %v295 = vunpack.c.h.b16 %v74
  %v296 = vunpack.c.l.b16 %v75
  %v297 = vunpack.c.h.b16 %v75
  %v298 = vunpack.c.l.b16 %v76
  %v299 = vunpack.c.h.b16 %v76
  %v300 = vunpack.c.l.b16 %v77
  %v301 = vunpack.c.h.b16 %v77
  %v302 = vpack.c.b16 %v176, %v174
  %v303 = vpack.c.b16 %v177, %v175
  %v304 = vpack.c.b16 %v180, %v178
  %v305 = vpack.c.b16 %v181, %v179
  %v306 = vpack.c.b16 %v184, %v182
  %v307 = vpack.c.b16 %v185, %v183
  %v308 = vpack.c.b16 %v188, %v186
  %v309 = vpack.c.b16 %v189, %v187
  %v310 = vpack.c.b16 %v192, %v190
  %v311 = vpack.c.b16 %v193, %v191
  %v312 = vpack.c.b16 %v196, %v194
  %v313 = vpack.c.b16 %v197, %v195
  %v314 = vpack.c.b16 %v200, %v198
  %v315 = vpack.c.b16 %v201, %v199
  %v316 = vpack.c.b16 %v204, %v202
  %v317 = vpack.c.b16 %v205, %v203
  %v318 = vpack.c.b16 %v208, %v206
  %v319 = vpack.c.b16 %v209, %v207
  %v320 = vpack.c.b16 %v212, %v210
  %v321 = vpack.c.b16 %v213, %v211
  %v322 = vpack.c.b16 %v216, %v214
  %v323 = vpack.c.b16 %v217, %v215
  %v324 = vpack.c.b16 %v220, %v218
  %v325 = vpack.c.b16 %v221, %v219
  %v326 = vpack.c.b16 %v224, %v222
  %v327 = vpack.c.b16 %v225, %v223
  %v328 = vpack.c.b16 %v228, %v226
  %v329 = vpack.c.b16 %v229, %v227
  %v330 = vpack.c.b16 %v232, %v230
  %v331 = vpack.c.b16 %v233, %v231
  %v332 = vpack.c.b16 %v236, %v234
  %v333 = vpack.c.b16 %v237, %v235
  %v334 = vpack.c.b16 %v240, %v238
  %v335 = vpack.c.b16 %v241, %v239
  %v336 = vpack.c.b16 %v244, %v242
  %v337 = vpack.c.b16 %v245, %v243
  %v338 = vpack.c.b16 %v248, %v246
  %v339 = vpack.c.b16 %v249, %v247
  %v340 = vpack.c.b16 %v252, %v250
  %v341 = vpack.c.b16 %v253, %v251
  %v342 = vpack.c.b16 %v256, %v254
  %v343 = vpack.c.b16 %v257, %v255
  %v344 = vpack.c.b16 %v260, %v258
  %v345 = vpack.c.b16 %v261, %v259
  %v346 = vpack.c.b16 %v264, %v262
  %v347 = vpack.c.b16 %v265, %v263
  %v348 = vpack.c.b16 %v268, %v266
  %v349 = vpack.c.b16 %v269, %v267
  %v350 = vpack.c.b16 %v272, %v270
  %v351 = vpack.c.b16 %v273, %v271
  %v352 = vpack.c.b16 %v276, %v274
  %v353 = vpack.c.b16 %v277, %v275
  %v354 = vpack.c.b16 %v280, %v278
  %v355 = vpack.c.b16 %v281, %v279
  %v356 = vpack.c.b16 %v284, %v282
  %v357 = vpack.c.b16 %v285, %v283
  %v358 = vpack.c.b16 %v288, %v286
  %v359 = vpack.c.b16 %v289, %v287
  %v360 = vpack.c.b16 %v292, %v290
  %v361 = vpack.c.b16 %v293, %v291
  %v362 = vpack.c.b16 %v296, %v294
  %v363 = vpack.c.b16 %v297, %v295
  %v364 = vpack.c.b16 %v300, %v298
  %v365 = vpack.c.b16 %v301, %v299
  %v462 = vunpack.c.l.b16 %v78
  %v463 = vunpack.c.l.b16 %v79
  %v464 = vunpack.c.l.b16 %v80
  %v465 = vunpack.c.l.b16 %v81
  %v466 = vunpack.c.l.b16 %v82
  %v467 = vunpack.c.l.b16 %v83
  %v468 = vunpack.c.l.b16 %v84
  %v469 = vunpack.c.l.b16 %v85
  %v470 = vunpack.c.l.b16 %v86
  %v471 = vunpack.c.l.b16 %v87
  %v472 = vunpack.c.l.b16 %v88
  %v473 = vunpack.c.l.b16 %v89
  %v474 = vunpack.c.l.b16 %v90
  %v475 = vunpack.c.l.b16 %v91
  %v476 = vunpack.c.l.b16 %v92
  %v477 = vunpack.c.l.b16 %v93
  %v478 = vunpack.c.l.b16 %v94
  %v479 = vunpack.c.l.b16 %v95
  %v480 = vunpack.c.l.b16 %v96
  %v481 = vunpack.c.l.b16 %v97
  %v482 = vunpack.c.l.b16 %v98
  %v483 = vunpack.c.l.b16 %v99
  %v484 = vunpack.c.l.b16 %v100
  %v485 = vunpack.c.l.b16 %v101
  %v486 = vunpack.c.l.b16 %v102
  %v487 = vunpack.c.l.b16 %v103
  %v488 = vunpack.c.l.b16 %v104
  %v489 = vunpack.c.l.b16 %v105
  %v490 = vunpack.c.l.b16 %v106
  %v491 = vunpack.c.l.b16 %v107
  %v492 = vunpack.c.l.b16 %v108
  %v493 = vunpack.c.l.b16 %v109
  %v494 = vpack.c.b16 %v463, %v462
  %v495 = vpack.c.b16 %v465, %v464
  %v496 = vpack.c.b16 %v467, %v466
  %v497 = vpack.c.b16 %v469, %v468
  %v498 = vpack.c.b16 %v471, %v470
  %v499 = vpack.c.b16 %v473, %v472
  %v500 = vpack.c.b16 %v475, %v474
  %v501 = vpack.c.b16 %v477, %v476
  %v502 = vpack.c.b16 %v479, %v478
  %v503 = vpack.c.b16 %v481, %v480
  %v504 = vpack.c.b16 %v483, %v482
  %v505 = vpack.c.b16 %v485, %v484
  %v506 = vpack.c.b16 %v487, %v486
  %v507 = vpack.c.b16 %v489, %v488
  %v508 = vpack.c.b16 %v491, %v490
  %v509 = vpack.c.b16 %v493, %v492
  %526 = vmatprep.subr.bf16.mxu0 0
  %527 = vmatpush1.bf16.msra.mxu0 %v494
  %528 = vmatprep.subr.bf16.mxu0 0
  %529 = vmatpush1.bf16.msra.mxu0 %v495
  %530 = vmatprep.subr.bf16.mxu0 0
  %531 = vmatpush1.bf16.msra.mxu0 %v496
  %532 = vmatprep.subr.bf16.mxu0 0
  %533 = vmatpush1.bf16.msra.mxu0 %v497
  %534 = vmatprep.subr.bf16.mxu0 0
  %535 = vmatpush1.bf16.msra.mxu0 %v498
  %536 = vmatprep.subr.bf16.mxu0 0
  %537 = vmatpush1.bf16.msra.mxu0 %v499
  %538 = vmatprep.subr.bf16.mxu0 0
  %539 = vmatpush1.bf16.msra.mxu0 %v500
  %540 = vmatprep.subr.bf16.mxu0 0
  %541 = vmatpush1.bf16.msra.mxu0 %v501
  %542 = vmatprep.subr.bf16.mxu0 0
  %543 = vmatpush1.bf16.msra.mxu0 %v502
  %544 = vmatprep.subr.bf16.mxu0 0
  %545 = vmatpush1.bf16.msra.mxu0 %v503
  %546 = vmatprep.subr.bf16.mxu0 0
  %547 = vmatpush1.bf16.msra.mxu0 %v504
  %548 = vmatprep.subr.bf16.mxu0 0
  %549 = vmatpush1.bf16.msra.mxu0 %v505
  %550 = vmatprep.subr.bf16.mxu0 0
  %551 = vmatpush1.bf16.msra.mxu0 %v506
  %552 = vmatprep.subr.bf16.mxu0 0
  %553 = vmatpush1.bf16.msra.mxu0 %v507
  %554 = vmatprep.subr.bf16.mxu0 0
  %555 = vmatpush1.bf16.msra.mxu0 %v508
  %556 = vmatprep.subr.bf16.mxu0 0
  %557 = vmatpush1.bf16.msra.mxu0 %v509
  %558 = vmatprep.mubr.bf16.mxu0 %v303
  %559 = vmatmul.mubr.bf16.gmra.mrb[0].mxu0 %v302
  %v560 = vpop.f32.mrb[0].mxu0
  %v561 = vadd.f32 0.0, %v560
  %v562 = vpop.f32.mrb[0].mxu0
  %v563 = vpop.f32.mrb[0].mxu0
  %v564 = vadd.f32 0.0, %v563
  %v565 = vpop.f32.mrb[0].mxu0
  %566 = vmatprep.mubr.bf16.mxu0 %v305
  %567 = vmatmul.mubr.bf16.gmra.mrb[0].mxu0 %v304
  %v568 = vpop.f32.mrb[0].mxu0
  %v569 = vadd.f32 0.0, %v568
  %v570 = vpop.f32.mrb[0].mxu0
  %v571 = vpop.f32.mrb[0].mxu0
  %v572 = vadd.f32 0.0, %v571
  %v573 = vpop.f32.mrb[0].mxu0
  %574 = vmatprep.mubr.bf16.mxu0 %v307
  %575 = vmatmul.mubr.bf16.gmra.mrb[0].mxu0 %v306
  %v576 = vpop.f32.mrb[0].mxu0
  %v577 = vadd.f32 0.0, %v576
  %v578 = vpop.f32.mrb[0].mxu0
  %v579 = vpop.f32.mrb[0].mxu0
  %v580 = vadd.f32 0.0, %v579
  %v581 = vpop.f32.mrb[0].mxu0
  %582 = vmatprep.mubr.bf16.mxu0 %v309
  %583 = vmatmul.mubr.bf16.gmra.mrb[0].mxu0 %v308
  %v584 = vpop.f32.mrb[0].mxu0
  %v585 = vadd.f32 0.0, %v584
  %v586 = vpop.f32.mrb[0].mxu0
  %v587 = vpop.f32.mrb[0].mxu0
  %v588 = vadd.f32 0.0, %v587
  %v589 = vpop.f32.mrb[0].mxu0
  %590 = vmatprep.mubr.bf16.mxu0 %v311
  %591 = vmatmul.mubr.bf16.gmra.mrb[0].mxu0 %v310
  %v592 = vpop.f32.mrb[0].mxu0
  %v593 = vadd.f32 0.0, %v592
  %v594 = vpop.f32.mrb[0].mxu0
  %v595 = vpop.f32.mrb[0].mxu0
  %v596 = vadd.f32 0.0, %v595
  %v597 = vpop.f32.mrb[0].mxu0
  %598 = vmatprep.mubr.bf16.mxu0 %v313
  %599 = vmatmul.mubr.bf16.gmra.mrb[0].mxu0 %v312
  %v600 = vpop.f32.mrb[0].mxu0
  %v601 = vadd.f32 0.0, %v600
  %v602 = vpop.f32.mrb[0].mxu0
  %v603 = vpop.f32.mrb[0].mxu0
  %v604 = vadd.f32 0.0, %v603
  %v605 = vpop.f32.mrb[0].mxu0
  %606 = vmatprep.mubr.bf16.mxu0 %v315
  %607 = vmatmul.mubr.bf16.gmra.mrb[0].mxu0 %v314
  %v608 = vpop.f32.mrb[0].mxu0
  %v609 = vadd.f32 0.0, %v608
  %v610 = vpop.f32.mrb[0].mxu0
  %v611 = vpop.f32.mrb[0].mxu0
  %v612 = vadd.f32 0.0, %v611
  %v613 = vpop.f32.mrb[0].mxu0
  %614 = vmatprep.mubr.bf16.mxu0 %v317
  %615 = vmatmul.mubr.bf16.gmra.mrb[0].mxu0 %v316
  %v616 = vpop.f32.mrb[0].mxu0
  %v617 = vadd.f32 0.0, %v616
  %v618 = vpop.f32.mrb[0].mxu0
  %v619 = vpop.f32.mrb[0].mxu0
  %v620 = vadd.f32 0.0, %v619
  %v621 = vpop.f32.mrb[0].mxu0
  %622 = vmatprep.mubr.bf16.mxu0 %v319
  %623 = vmatmul.mubr.bf16.gmra.mrb[0].mxu0 %v318
  %v624 = vpop.f32.mrb[0].mxu0
  %v625 = vadd.f32 0.0, %v624
  %v626 = vpop.f32.mrb[0].mxu0
  %v627 = vpop.f32.mrb[0].mxu0
  %v628 = vadd.f32 0.0, %v627
  %v629 = vpop.f32.mrb[0].mxu0
  %630 = vmatprep.mubr.bf16.mxu0 %v321
  %631 = vmatmul.mubr.bf16.gmra.mrb[0].mxu0 %v320
  %v632 = vpop.f32.mrb[0].mxu0
  %v633 = vadd.f32 0.0, %v632
  %v634 = vpop.f32.mrb[0].mxu0
  %v635 = vpop.f32.mrb[0].mxu0
  %v636 = vadd.f32 0.0, %v635
  %v637 = vpop.f32.mrb[0].mxu0
  %638 = vmatprep.mubr.bf16.mxu0 %v323
  %639 = vmatmul.mubr.bf16.gmra.mrb[0].mxu0 %v322
  %v640 = vpop.f32.mrb[0].mxu0
  %v641 = vadd.f32 0.0, %v640
  %v642 = vpop.f32.mrb[0].mxu0
  %v643 = vpop.f32.mrb[0].mxu0
  %v644 = vadd.f32 0.0, %v643
  %v645 = vpop.f32.mrb[0].mxu0
  %646 = vmatprep.mubr.bf16.mxu0 %v325
  %647 = vmatmul.mubr.bf16.gmra.mrb[0].mxu0 %v324
  %v648 = vpop.f32.mrb[0].mxu0
  %v649 = vadd.f32 0.0, %v648
  %v650 = vpop.f32.mrb[0].mxu0
  %v651 = vpop.f32.mrb[0].mxu0
  %v652 = vadd.f32 0.0, %v651
  %v653 = vpop.f32.mrb[0].mxu0
  %654 = vmatprep.mubr.bf16.mxu0 %v327
  %655 = vmatmul.mubr.bf16.gmra.mrb[0].mxu0 %v326
  %v656 = vpop.f32.mrb[0].mxu0
  %v657 = vadd.f32 0.0, %v656
  %v658 = vpop.f32.mrb[0].mxu0
  %v659 = vpop.f32.mrb[0].mxu0
  %v660 = vadd.f32 0.0, %v659
  %v661 = vpop.f32.mrb[0].mxu0
  %662 = vmatprep.mubr.bf16.mxu0 %v329
  %663 = vmatmul.mubr.bf16.gmra.mrb[0].mxu0 %v328
  %v664 = vpop.f32.mrb[0].mxu0
  %v665 = vadd.f32 0.0, %v664
  %v666 = vpop.f32.mrb[0].mxu0
  %v667 = vpop.f32.mrb[0].mxu0
  %v668 = vadd.f32 0.0, %v667
  %v669 = vpop.f32.mrb[0].mxu0
  %670 = vmatprep.mubr.bf16.mxu0 %v331
  %671 = vmatmul.mubr.bf16.gmra.mrb[0].mxu0 %v330
  %v672 = vpop.f32.mrb[0].mxu0
  %v673 = vadd.f32 0.0, %v672
  %v674 = vpop.f32.mrb[0].mxu0
  %v675 = vpop.f32.mrb[0].mxu0
  %v676 = vadd.f32 0.0, %v675
  %v677 = vpop.f32.mrb[0].mxu0
  %678 = vmatprep.mubr.bf16.mxu0 %v333
  %679 = vmatmul.mubr.bf16.gmra.mrb[0].mxu0 %v332
  %v680 = vpop.f32.mrb[0].mxu0
  %v681 = vadd.f32 0.0, %v680
  %v682 = vpop.f32.mrb[0].mxu0
  %v683 = vpop.f32.mrb[0].mxu0
  %v684 = vadd.f32 0.0, %v683
  %v685 = vpop.f32.mrb[0].mxu0
  %686 = vmatprep.mubr.bf16.mxu0 %v335
  %687 = vmatmul.mubr.bf16.gmra.mrb[0].mxu0 %v334
  %v688 = vpop.f32.mrb[0].mxu0
  %v689 = vadd.f32 0.0, %v688
  %v690 = vpop.f32.mrb[0].mxu0
  %v691 = vpop.f32.mrb[0].mxu0
  %v692 = vadd.f32 0.0, %v691
  %v693 = vpop.f32.mrb[0].mxu0
  %694 = vmatprep.mubr.bf16.mxu0 %v337
  %695 = vmatmul.mubr.bf16.gmra.mrb[0].mxu0 %v336
  %v696 = vpop.f32.mrb[0].mxu0
  %v697 = vadd.f32 0.0, %v696
  %v698 = vpop.f32.mrb[0].mxu0
  %v699 = vpop.f32.mrb[0].mxu0
  %v700 = vadd.f32 0.0, %v699
  %v701 = vpop.f32.mrb[0].mxu0
  %702 = vmatprep.mubr.bf16.mxu0 %v339
  %703 = vmatmul.mubr.bf16.gmra.mrb[0].mxu0 %v338
  %v704 = vpop.f32.mrb[0].mxu0
  %v705 = vadd.f32 0.0, %v704
  %v706 = vpop.f32.mrb[0].mxu0
  %v707 = vpop.f32.mrb[0].mxu0
  %v708 = vadd.f32 0.0, %v707
  %v709 = vpop.f32.mrb[0].mxu0
  %710 = vmatprep.mubr.bf16.mxu0 %v341
  %711 = vmatmul.mubr.bf16.gmra.mrb[0].mxu0 %v340
  %v712 = vpop.f32.mrb[0].mxu0
  %v713 = vadd.f32 0.0, %v712
  %v714 = vpop.f32.mrb[0].mxu0
  %v715 = vpop.f32.mrb[0].mxu0
  %v716 = vadd.f32 0.0, %v715
  %v717 = vpop.f32.mrb[0].mxu0
  %718 = vmatprep.mubr.bf16.mxu0 %v343
  %719 = vmatmul.mubr.bf16.gmra.mrb[0].mxu0 %v342
  %v720 = vpop.f32.mrb[0].mxu0
  %v721 = vadd.f32 0.0, %v720
  %v722 = vpop.f32.mrb[0].mxu0
  %v723 = vpop.f32.mrb[0].mxu0
  %v724 = vadd.f32 0.0, %v723
  %v725 = vpop.f32.mrb[0].mxu0
  %726 = vmatprep.mubr.bf16.mxu0 %v345
  %727 = vmatmul.mubr.bf16.gmra.mrb[0].mxu0 %v344
  %v728 = vpop.f32.mrb[0].mxu0
  %v729 = vadd.f32 0.0, %v728
  %v730 = vpop.f32.mrb[0].mxu0
  %v731 = vpop.f32.mrb[0].mxu0
  %v732 = vadd.f32 0.0, %v731
  %v733 = vpop.f32.mrb[0].mxu0
  %734 = vmatprep.mubr.bf16.mxu0 %v347
  %735 = vmatmul.mubr.bf16.gmra.mrb[0].mxu0 %v346
  %v736 = vpop.f32.mrb[0].mxu0
  %v737 = vadd.f32 0.0, %v736
  %v738 = vpop.f32.mrb[0].mxu0
  %v739 = vpop.f32.mrb[0].mxu0
  %v740 = vadd.f32 0.0, %v739
  %v741 = vpop.f32.mrb[0].mxu0
  %742 = vmatprep.mubr.bf16.mxu0 %v349
  %743 = vmatmul.mubr.bf16.gmra.mrb[0].mxu0 %v348
  %v744 = vpop.f32.mrb[0].mxu0
  %v745 = vadd.f32 0.0, %v744
  %v746 = vpop.f32.mrb[0].mxu0
  %v747 = vpop.f32.mrb[0].mxu0
  %v748 = vadd.f32 0.0, %v747
  %v749 = vpop.f32.mrb[0].mxu0
  %750 = vmatprep.mubr.bf16.mxu0 %v351
  %751 = vmatmul.mubr.bf16.gmra.mrb[0].mxu0 %v350
  %v752 = vpop.f32.mrb[0].mxu0
  %v753 = vadd.f32 0.0, %v752
  %v754 = vpop.f32.mrb[0].mxu0
  %v755 = vpop.f32.mrb[0].mxu0
  %v756 = vadd.f32 0.0, %v755
  %v757 = vpop.f32.mrb[0].mxu0
  %758 = vmatprep.mubr.bf16.mxu0 %v353
  %759 = vmatmul.mubr.bf16.gmra.mrb[0].mxu0 %v352
  %v760 = vpop.f32.mrb[0].mxu0
  %v761 = vadd.f32 0.0, %v760
  %v762 = vpop.f32.mrb[0].mxu0
  %v763 = vpop.f32.mrb[0].mxu0
  %v764 = vadd.f32 0.0, %v763
  %v765 = vpop.f32.mrb[0].mxu0
  %766 = vmatprep.mubr.bf16.mxu0 %v355
  %767 = vmatmul.mubr.bf16.gmra.mrb[0].mxu0 %v354
  %v768 = vpop.f32.mrb[0].mxu0
  %v769 = vadd.f32 0.0, %v768
  %v770 = vpop.f32.mrb[0].mxu0
  %v771 = vpop.f32.mrb[0].mxu0
  %v772 = vadd.f32 0.0, %v771
  %v773 = vpop.f32.mrb[0].mxu0
  %774 = vmatprep.mubr.bf16.mxu0 %v357
  %775 = vmatmul.mubr.bf16.gmra.mrb[0].mxu0 %v356
  %v776 = vpop.f32.mrb[0].mxu0
  %v777 = vadd.f32 0.0, %v776
  %v778 = vpop.f32.mrb[0].mxu0
  %v779 = vpop.f32.mrb[0].mxu0
  %v780 = vadd.f32 0.0, %v779
  %v781 = vpop.f32.mrb[0].mxu0
  %782 = vmatprep.mubr.bf16.mxu0 %v359
  %783 = vmatmul.mubr.bf16.gmra.mrb[0].mxu0 %v358
  %v784 = vpop.f32.mrb[0].mxu0
  %v785 = vadd.f32 0.0, %v784
  %v786 = vpop.f32.mrb[0].mxu0
  %v787 = vpop.f32.mrb[0].mxu0
  %v788 = vadd.f32 0.0, %v787
  %v789 = vpop.f32.mrb[0].mxu0
  %790 = vmatprep.mubr.bf16.mxu0 %v361
  %791 = vmatmul.mubr.bf16.gmra.mrb[0].mxu0 %v360
  %v792 = vpop.f32.mrb[0].mxu0
  %v793 = vadd.f32 0.0, %v792
  %v794 = vpop.f32.mrb[0].mxu0
  %v795 = vpop.f32.mrb[0].mxu0
  %v796 = vadd.f32 0.0, %v795
  %v797 = vpop.f32.mrb[0].mxu0
  %798 = vmatprep.mubr.bf16.mxu0 %v363
  %799 = vmatmul.mubr.bf16.gmra.mrb[0].mxu0 %v362
  %v800 = vpop.f32.mrb[0].mxu0
  %v801 = vadd.f32 0.0, %v800
  %v802 = vpop.f32.mrb[0].mxu0
  %v803 = vpop.f32.mrb[0].mxu0
  %v804 = vadd.f32 0.0, %v803
  %v805 = vpop.f32.mrb[0].mxu0
  %806 = vmatprep.mubr.bf16.mxu0 %v365
  %807 = vmatmul.mubr.bf16.gmra.mrb[0].mxu0 %v364
  %v808 = vpop.f32.mrb[0].mxu0
  %v809 = vadd.f32 0.0, %v808
  %v810 = vpop.f32.mrb[0].mxu0
  %v811 = vpop.f32.mrb[0].mxu0
  %v812 = vadd.f32 0.0, %v811
  %v813 = vpop.f32.mrb[0].mxu0
  %814 = vdwg.mxu0
  %v815 = vadd.f32 %v561, %v564
  %v816 = vadd.f32 %v815, %v569
  %v817 = vadd.f32 %v816, %v572
  %v818 = vadd.f32 %v817, %v577
  %v819 = vadd.f32 %v818, %v580
  %v820 = vadd.f32 %v819, %v585
  %v821 = vadd.f32 %v820, %v588
  %v822 = vadd.f32 %v821, %v593
  %v823 = vadd.f32 %v822, %v596
  %v824 = vadd.f32 %v823, %v601
  %v825 = vadd.f32 %v824, %v604
  %v826 = vadd.f32 %v825, %v609
  %v827 = vadd.f32 %v826, %v612
  %v828 = vadd.f32 %v827, %v617
  %v829 = vadd.f32 %v828, %v620
  %v830 = vadd.f32 %v829, %v625
  %v831 = vadd.f32 %v830, %v628
  %v832 = vadd.f32 %v831, %v633
  %v833 = vadd.f32 %v832, %v636
  %v834 = vadd.f32 %v833, %v641
  %v835 = vadd.f32 %v834, %v644
  %v836 = vadd.f32 %v835, %v649
  %v837 = vadd.f32 %v836, %v652
  %v838 = vadd.f32 %v837, %v657
  %v839 = vadd.f32 %v838, %v660
  %v840 = vadd.f32 %v839, %v665
  %v841 = vadd.f32 %v840, %v668
  %v842 = vadd.f32 %v841, %v673
  %v843 = vadd.f32 %v842, %v676
  %v844 = vadd.f32 %v843, %v681
  %v845 = vadd.f32 %v844, %v684
  %v846 = vadd.f32 %v845, %v689
  %v847 = vadd.f32 %v846, %v692
  %v848 = vadd.f32 %v847, %v697
  %v849 = vadd.f32 %v848, %v700
  %v850 = vadd.f32 %v849, %v705
  %v851 = vadd.f32 %v850, %v708
  %v852 = vadd.f32 %v851, %v713
  %v853 = vadd.f32 %v852, %v716
  %v854 = vadd.f32 %v853, %v721
  %v855 = vadd.f32 %v854, %v724
  %v856 = vadd.f32 %v855, %v729
  %v857 = vadd.f32 %v856, %v732
  %v858 = vadd.f32 %v857, %v737
  %v859 = vadd.f32 %v858, %v740
  %v860 = vadd.f32 %v859, %v745
  %v861 = vadd.f32 %v860, %v748
  %v862 = vadd.f32 %v861, %v753
  %v863 = vadd.f32 %v862, %v756
  %v864 = vadd.f32 %v863, %v761
  %v865 = vadd.f32 %v864, %v764
  %v866 = vadd.f32 %v865, %v769
  %v867 = vadd.f32 %v866, %v772
  %v868 = vadd.f32 %v867, %v777
  %v869 = vadd.f32 %v868, %v780
  %v870 = vadd.f32 %v869, %v785
  %v871 = vadd.f32 %v870, %v788
  %v872 = vadd.f32 %v871, %v793
  %v873 = vadd.f32 %v872, %v796
  %v874 = vadd.f32 %v873, %v801
  %v875 = vadd.f32 %v874, %v804
  %v876 = vadd.f32 %v875, %v809
  %v877 = vadd.f32 %v876, %v812
  %v878 = vrot.slane %v877, 4
  %v879 = vadd.f32 %v877, %v878
  %v880 = vrot.slane %v879, 2
  %v881 = vadd.f32 %v879, %v880
  %v882 = vrot.slane %v881, 1
  %v883 = vadd.f32 %v881, %v882
  %884 = vst [vmem:[%s2] sm:$0x1] %v883
  %v885 = vmul.f32 %v561, %v561
  %v886 = vmul.f32 %v564, %v564
  %v887 = vmul.f32 %v569, %v569
  %v888 = vmul.f32 %v572, %v572
  %v889 = vmul.f32 %v577, %v577
  %v890 = vmul.f32 %v580, %v580
  %v891 = vmul.f32 %v585, %v585
  %v892 = vmul.f32 %v588, %v588
  %v893 = vmul.f32 %v593, %v593
  %v894 = vmul.f32 %v596, %v596
  %v895 = vmul.f32 %v601, %v601
  %v896 = vmul.f32 %v604, %v604
  %v897 = vmul.f32 %v609, %v609
  %v898 = vmul.f32 %v612, %v612
  %v899 = vmul.f32 %v617, %v617
  %v900 = vmul.f32 %v620, %v620
  %v901 = vmul.f32 %v625, %v625
  %v902 = vmul.f32 %v628, %v628
  %v903 = vmul.f32 %v633, %v633
  %v904 = vmul.f32 %v636, %v636
  %v905 = vmul.f32 %v641, %v641
  %v906 = vmul.f32 %v644, %v644
  %v907 = vmul.f32 %v649, %v649
  %v908 = vmul.f32 %v652, %v652
  %v909 = vmul.f32 %v657, %v657
  %v910 = vmul.f32 %v660, %v660
  %v911 = vmul.f32 %v665, %v665
  %v912 = vmul.f32 %v668, %v668
  %v913 = vmul.f32 %v673, %v673
  %v914 = vmul.f32 %v676, %v676
  %v915 = vmul.f32 %v681, %v681
  %v916 = vmul.f32 %v684, %v684
  %v917 = vmul.f32 %v689, %v689
  %v918 = vmul.f32 %v692, %v692
  %v919 = vmul.f32 %v697, %v697
  %v920 = vmul.f32 %v700, %v700
  %v921 = vmul.f32 %v705, %v705
  %v922 = vmul.f32 %v708, %v708
  %v923 = vmul.f32 %v713, %v713
  %v924 = vmul.f32 %v716, %v716
  %v925 = vmul.f32 %v721, %v721
  %v926 = vmul.f32 %v724, %v724
  %v927 = vmul.f32 %v729, %v729
  %v928 = vmul.f32 %v732, %v732
  %v929 = vmul.f32 %v737, %v737
  %v930 = vmul.f32 %v740, %v740
  %v931 = vmul.f32 %v745, %v745
  %v932 = vmul.f32 %v748, %v748
  %v933 = vmul.f32 %v753, %v753
  %v934 = vmul.f32 %v756, %v756
  %v935 = vmul.f32 %v761, %v761
  %v936 = vmul.f32 %v764, %v764
  %v937 = vmul.f32 %v769, %v769
  %v938 = vmul.f32 %v772, %v772
  %v939 = vmul.f32 %v777, %v777
  %v940 = vmul.f32 %v780, %v780
  %v941 = vmul.f32 %v785, %v785
  %v942 = vmul.f32 %v788, %v788
  %v943 = vmul.f32 %v793, %v793
  %v944 = vmul.f32 %v796, %v796
  %v945 = vmul.f32 %v801, %v801
  %v946 = vmul.f32 %v804, %v804
  %v947 = vmul.f32 %v809, %v809
  %v948 = vmul.f32 %v812, %v812
  %v949 = vadd.f32 %v885, %v886
  %v950 = vadd.f32 %v949, %v887
  %v951 = vadd.f32 %v950, %v888
  %v952 = vadd.f32 %v951, %v889
  %v953 = vadd.f32 %v952, %v890
  %v954 = vadd.f32 %v953, %v891
  %v955 = vadd.f32 %v954, %v892
  %v956 = vadd.f32 %v955, %v893
  %v957 = vadd.f32 %v956, %v894
  %v958 = vadd.f32 %v957, %v895
  %v959 = vadd.f32 %v958, %v896
  %v960 = vadd.f32 %v959, %v897
  %v961 = vadd.f32 %v960, %v898
  %v962 = vadd.f32 %v961, %v899
  %v963 = vadd.f32 %v962, %v900
  %v964 = vadd.f32 %v963, %v901
  %v965 = vadd.f32 %v964, %v902
  %v966 = vadd.f32 %v965, %v903
  %v967 = vadd.f32 %v966, %v904
  %v968 = vadd.f32 %v967, %v905
  %v969 = vadd.f32 %v968, %v906
  %v970 = vadd.f32 %v969, %v907
  %v971 = vadd.f32 %v970, %v908
  %v972 = vadd.f32 %v971, %v909
  %v973 = vadd.f32 %v972, %v910
  %v974 = vadd.f32 %v973, %v911
  %v975 = vadd.f32 %v974, %v912
  %v976 = vadd.f32 %v975, %v913
  %v977 = vadd.f32 %v976, %v914
  %v978 = vadd.f32 %v977, %v915
  %v979 = vadd.f32 %v978, %v916
  %v980 = vadd.f32 %v979, %v917
  %v981 = vadd.f32 %v980, %v918
  %v982 = vadd.f32 %v981, %v919
  %v983 = vadd.f32 %v982, %v920
  %v984 = vadd.f32 %v983, %v921
  %v985 = vadd.f32 %v984, %v922
  %v986 = vadd.f32 %v985, %v923
  %v987 = vadd.f32 %v986, %v924
  %v988 = vadd.f32 %v987, %v925
  %v989 = vadd.f32 %v988, %v926
  %v990 = vadd.f32 %v989, %v927
  %v991 = vadd.f32 %v990, %v928
  %v992 = vadd.f32 %v991, %v929
  %v993 = vadd.f32 %v992, %v930
  %v994 = vadd.f32 %v993, %v931
  %v995 = vadd.f32 %v994, %v932
  %v996 = vadd.f32 %v995, %v933
  %v997 = vadd.f32 %v996, %v934
  %v998 = vadd.f32 %v997, %v935
  %v999 = vadd.f32 %v998, %v936
  %v1000 = vadd.f32 %v999, %v937
  %v1001 = vadd.f32 %v1000, %v938
  %v1002 = vadd.f32 %v1001, %v939
  %v1003 = vadd.f32 %v1002, %v940
  %v1004 = vadd.f32 %v1003, %v941
  %v1005 = vadd.f32 %v1004, %v942
  %v1006 = vadd.f32 %v1005, %v943
  %v1007 = vadd.f32 %v1006, %v944
  %v1008 = vadd.f32 %v1007, %v945
  %v1009 = vadd.f32 %v1008, %v946
  %v1010 = vadd.f32 %v1009, %v947
  %v1011 = vadd.f32 %v1010, %v948
  %v1012 = vrot.slane %v1011, 4
  %v1013 = vadd.f32 %v1011, %v1012
  %v1014 = vrot.slane %v1013, 2
  %v1015 = vadd.f32 %v1013, %v1014
  %v1016 = vrot.slane %v1015, 1
  %v1017 = vadd.f32 %v1015, %v1016
  %1018 = vst [vmem:[%s3] sm:$0x1] %v1017
  // Predicated region
  $region10: #{double_conv_forward.4} parent=0 // pred_check
    _
  $region11: #{double_conv_forward.4} parent=0 // pred_check_branch
    %1020 = sbr.rel (0) target = $region13
  $region12: #{double_conv_forward.4} parent=0 // pred_region
    _
  $region13: #{double_conv_forward.4} parent=0 // pred_fallthru
    _
  // Predicated region
  $region14: #{double_conv_forward.4} parent=0 // pred_check
    _
  $region15: #{double_conv_forward.4} parent=0 // pred_check_branch
    %1022 = sbr.rel (0) target = $region17
  $region16: #{double_conv_forward.4} parent=0 // pred_region
    _
  $region17: #{double_conv_forward.4} parent=0 // pred_fallthru
    _
  // Predicated region
  $region18: #{double_conv_forward.4} parent=0 // pred_check
    _
  $region19: #{double_conv_forward.4} parent=0 // pred_check_branch
    %1024 = sbr.rel (0) target = $region21
  $region20: #{double_conv_forward.4} parent=0 // pred_region
    _
  $region21: #{double_conv_forward.4} parent=0 // pred_fallthru
    _
  // Predicated region
  $region22: #{double_conv_forward.4} parent=0 // pred_check
    _
  $region23: #{double_conv_forward.4} parent=0 // pred_check_branch
    %1026 = sbr.rel (0) target = $region25
  $region24: #{double_conv_forward.4} parent=0 // pred_region
    _
  $region25: #{double_conv_forward.4} parent=0 // pred_fallthru
    _

// kernel: double_conv_forward.5
$region0: #{double_conv_forward.5}
  #allocation0 [shape = 'u32[]', space=smem, size = 0x4, offset = 0x4, fixed_abs, tag = 'smem constant byte address 0x4 - core index']
  #allocation1 [shape = 'u32[144,128]{1,0:T(1,128)}', space=vmem, size = 0x12000, scoped, tag = 'internal scratch']
  %s0 = inlined_call_operand.vmem [shape: bf16[512,256], index: 0, kind: input, shape index: {}]
  %s1 = inlined_call_operand.vmem [shape: bf16[256,128], index: 1, kind: input, shape index: {}]
  %s2 = inlined_call_operand.vmem [shape: f32[1,128], index: 2, kind: input, shape index: {}]
  %s3 = inlined_call_operand.vmem [shape: f32[1,128], index: 3, kind: input, shape index: {}]
  %s4 = inlined_call_operand.vmem [shape: bf16[512,128], index: 4, kind: output, shape index: {}]
  %s5 = sld [smem:[#allocation0]]
  $region26: #{double_conv_forward.5} parent=0
    _
  %s7 = ssub.s32 1, %s5
  %s8 = scalar_select 0, %s7, %s5
  // Predicated region
  $region2: #{double_conv_forward.5} parent=0 // pred_check
    _
  $region3: #{double_conv_forward.5} parent=0 // pred_check_branch
    %10 = sbr.rel (0) target = $region5
  $region4: #{double_conv_forward.5} parent=0 // pred_region
    _
  $region5: #{double_conv_forward.5} parent=0 // pred_fallthru
    _
  // Predicated region
  $region6: #{double_conv_forward.5} parent=0 // pred_check
    _
  $region7: #{double_conv_forward.5} parent=0 // pred_check_branch
    %12 = sbr.rel (0) target = $region9
  $region8: #{double_conv_forward.5} parent=0 // pred_region
    _
  $region9: #{double_conv_forward.5} parent=0 // pred_fallthru
    _
  // Predicated region
  $region10: #{double_conv_forward.5} parent=0 // pred_check
    _
  $region11: #{double_conv_forward.5} parent=0 // pred_check_branch
    %14 = sbr.rel (0) target = $region13
  $region12: #{double_conv_forward.5} parent=0 // pred_region
    _
  $region13: #{double_conv_forward.5} parent=0 // pred_fallthru
    _
  // Predicated region
  $region14: #{double_conv_forward.5} parent=0 // pred_check
    _
  $region15: #{double_conv_forward.5} parent=0 // pred_check_branch
    %16 = sbr.rel (0) target = $region17
  $region16: #{double_conv_forward.5} parent=0 // pred_region
    _
  $region17: #{double_conv_forward.5} parent=0 // pred_fallthru
    _
  %v18 = vld [vmem:[%s0] sm:$0xff]
  %v19 = vld [vmem:[%s0 + $0x8] sm:$0xff]
  %v20 = vld [vmem:[%s0 + $0x10] sm:$0xff]
  %v21 = vld [vmem:[%s0 + $0x18] sm:$0xff]
  %v22 = vld [vmem:[%s0 + $0x20] sm:$0xff]
  %v23 = vld [vmem:[%s0 + $0x28] sm:$0xff]
  %v24 = vld [vmem:[%s0 + $0x30] sm:$0xff]
  %v25 = vld [vmem:[%s0 + $0x38] sm:$0xff]
  %v26 = vld [vmem:[%s0 + $0x40] sm:$0xff]
  %v27 = vld [vmem:[%s0 + $0x48] sm:$0xff]
  %v28 = vld [vmem:[%s0 + $0x50] sm:$0xff]
  %v29 = vld [vmem:[%s0 + $0x58] sm:$0xff]
  %v30 = vld [vmem:[%s0 + $0x60] sm:$0xff]
  %v31 = vld [vmem:[%s0 + $0x68] sm:$0xff]
  %v32 = vld [vmem:[%s0 + $0x70] sm:$0xff]
  %v33 = vld [vmem:[%s0 + $0x78] sm:$0xff]
  %v34 = vld [vmem:[%s0 + $0x80] sm:$0xff]
  %v35 = vld [vmem:[%s0 + $0x88] sm:$0xff]
  %v36 = vld [vmem:[%s0 + $0x90] sm:$0xff]
  %v37 = vld [vmem:[%s0 + $0x98] sm:$0xff]
  %v38 = vld [vmem:[%s0 + $0xa0] sm:$0xff]
  %v39 = vld [vmem:[%s0 + $0xa8] sm:$0xff]
  %v40 = vld [vmem:[%s0 + $0xb0] sm:$0xff]
  %v41 = vld [vmem:[%s0 + $0xb8] sm:$0xff]
  %v42 = vld [vmem:[%s0 + $0xc0] sm:$0xff]
  %v43 = vld [vmem:[%s0 + $0xc8] sm:$0xff]
  %v44 = vld [vmem:[%s0 + $0xd0] sm:$0xff]
  %v45 = vld [vmem:[%s0 + $0xd8] sm:$0xff]
  %v46 = vld [vmem:[%s0 + $0xe0] sm:$0xff]
  %v47 = vld [vmem:[%s0 + $0xe8] sm:$0xff]
  %v48 = vld [vmem:[%s0 + $0xf0] sm:$0xff]
  %v49 = vld [vmem:[%s0 + $0xf8] sm:$0xff]
  %v50 = vld [vmem:[%s0 + $0x100] sm:$0xff]
  %v51 = vld [vmem:[%s0 + $0x108] sm:$0xff]
  %v52 = vld [vmem:[%s0 + $0x110] sm:$0xff]
  %v53 = vld [vmem:[%s0 + $0x118] sm:$0xff]
  %v54 = vld [vmem:[%s0 + $0x120] sm:$0xff]
  %v55 = vld [vmem:[%s0 + $0x128] sm:$0xff]
  %v56 = vld [vmem:[%s0 + $0x130] sm:$0xff]
  %v57 = vld [vmem:[%s0 + $0x138] sm:$0xff]
  %v58 = vld [vmem:[%s0 + $0x140] sm:$0xff]
  %v59 = vld [vmem:[%s0 + $0x148] sm:$0xff]
  %v60 = vld [vmem:[%s0 + $0x150] sm:$0xff]
  %v61 = vld [vmem:[%s0 + $0x158] sm:$0xff]
  %v62 = vld [vmem:[%s0 + $0x160] sm:$0xff]
  %v63 = vld [vmem:[%s0 + $0x168] sm:$0xff]
  %v64 = vld [vmem:[%s0 + $0x170] sm:$0xff]
  %v65 = vld [vmem:[%s0 + $0x178] sm:$0xff]
  %v66 = vld [vmem:[%s0 + $0x180] sm:$0xff]
  %v67 = vld [vmem:[%s0 + $0x188] sm:$0xff]
  %v68 = vld [vmem:[%s0 + $0x190] sm:$0xff]
  %v69 = vld [vmem:[%s0 + $0x198] sm:$0xff]
  %v70 = vld [vmem:[%s0 + $0x1a0] sm:$0xff]
  %v71 = vld [vmem:[%s0 + $0x1a8] sm:$0xff]
  %v72 = vld [vmem:[%s0 + $0x1b0] sm:$0xff]
  %v73 = vld [vmem:[%s0 + $0x1b8] sm:$0xff]
  %v74 = vld [vmem:[%s0 + $0x1c0] sm:$0xff]
  %v75 = vld [vmem:[%s0 + $0x1c8] sm:$0xff]
  %v76 = vld [vmem:[%s0 + $0x1d0] sm:$0xff]
  %v77 = vld [vmem:[%s0 + $0x1d8] sm:$0xff]
  %v78 = vld [vmem:[%s0 + $0x1e0] sm:$0xff]
  %v79 = vld [vmem:[%s0 + $0x1e8] sm:$0xff]
  %v80 = vld [vmem:[%s0 + $0x1f0] sm:$0xff]
  %v81 = vld [vmem:[%s0 + $0x1f8] sm:$0xff]
  %v82 = vld [vmem:[%s1] sm:$0xf]
  %v83 = vld [vmem:[%s1 + $0x4] sm:$0xf]
  %v84 = vld [vmem:[%s1 + $0x8] sm:$0xf]
  %v85 = vld [vmem:[%s1 + $0xc] sm:$0xf]
  %v86 = vld [vmem:[%s1 + $0x10] sm:$0xf]
  %v87 = vld [vmem:[%s1 + $0x14] sm:$0xf]
  %v88 = vld [vmem:[%s1 + $0x18] sm:$0xf]
  %v89 = vld [vmem:[%s1 + $0x1c] sm:$0xf]
  %v90 = vld [vmem:[%s1 + $0x20] sm:$0xf]
  %v91 = vld [vmem:[%s1 + $0x24] sm:$0xf]
  %v92 = vld [vmem:[%s1 + $0x28] sm:$0xf]
  %v93 = vld [vmem:[%s1 + $0x2c] sm:$0xf]
  %v94 = vld [vmem:[%s1 + $0x30] sm:$0xf]
  %v95 = vld [vmem:[%s1 + $0x34] sm:$0xf]
  %v96 = vld [vmem:[%s1 + $0x38] sm:$0xf]
  %v97 = vld [vmem:[%s1 + $0x3c] sm:$0xf]
  %v98 = vld [vmem:[%s1 + $0x40] sm:$0xf]
  %v99 = vld [vmem:[%s1 + $0x44] sm:$0xf]
  %v100 = vld [vmem:[%s1 + $0x48] sm:$0xf]
  %v101 = vld [vmem:[%s1 + $0x4c] sm:$0xf]
  %v102 = vld [vmem:[%s1 + $0x50] sm:$0xf]
  %v103 = vld [vmem:[%s1 + $0x54] sm:$0xf]
  %v104 = vld [vmem:[%s1 + $0x58] sm:$0xf]
  %v105 = vld [vmem:[%s1 + $0x5c] sm:$0xf]
  %v106 = vld [vmem:[%s1 + $0x60] sm:$0xf]
  %v107 = vld [vmem:[%s1 + $0x64] sm:$0xf]
  %v108 = vld [vmem:[%s1 + $0x68] sm:$0xf]
  %v109 = vld [vmem:[%s1 + $0x6c] sm:$0xf]
  %v110 = vld [vmem:[%s1 + $0x70] sm:$0xf]
  %v111 = vld [vmem:[%s1 + $0x74] sm:$0xf]
  %v112 = vld [vmem:[%s1 + $0x78] sm:$0xf]
  %v113 = vld [vmem:[%s1 + $0x7c] sm:$0xf]
  %v178 = vunpack.c.l.b16 %v18
  %v179 = vunpack.c.h.b16 %v18
  %v180 = vunpack.c.l.b16 %v19
  %v181 = vunpack.c.h.b16 %v19
  %v182 = vunpack.c.l.b16 %v20
  %v183 = vunpack.c.h.b16 %v20
  %v184 = vunpack.c.l.b16 %v21
  %v185 = vunpack.c.h.b16 %v21
  %v186 = vunpack.c.l.b16 %v22
  %v187 = vunpack.c.h.b16 %v22
  %v188 = vunpack.c.l.b16 %v23
  %v189 = vunpack.c.h.b16 %v23
  %v190 = vunpack.c.l.b16 %v24
  %v191 = vunpack.c.h.b16 %v24
  %v192 = vunpack.c.l.b16 %v25
  %v193 = vunpack.c.h.b16 %v25
  %v194 = vunpack.c.l.b16 %v26
  %v195 = vunpack.c.h.b16 %v26
  %v196 = vunpack.c.l.b16 %v27
  %v197 = vunpack.c.h.b16 %v27
  %v198 = vunpack.c.l.b16 %v28
  %v199 = vunpack.c.h.b16 %v28
  %v200 = vunpack.c.l.b16 %v29
  %v201 = vunpack.c.h.b16 %v29
  %v202 = vunpack.c.l.b16 %v30
  %v203 = vunpack.c.h.b16 %v30
  %v204 = vunpack.c.l.b16 %v31
  %v205 = vunpack.c.h.b16 %v31
  %v206 = vunpack.c.l.b16 %v32
  %v207 = vunpack.c.h.b16 %v32
  %v208 = vunpack.c.l.b16 %v33
  %v209 = vunpack.c.h.b16 %v33
  %v210 = vunpack.c.l.b16 %v34
  %v211 = vunpack.c.h.b16 %v34
  %v212 = vunpack.c.l.b16 %v35
  %v213 = vunpack.c.h.b16 %v35
  %v214 = vunpack.c.l.b16 %v36
  %v215 = vunpack.c.h.b16 %v36
  %v216 = vunpack.c.l.b16 %v37
  %v217 = vunpack.c.h.b16 %v37
  %v218 = vunpack.c.l.b16 %v38
  %v219 = vunpack.c.h.b16 %v38
  %v220 = vunpack.c.l.b16 %v39
  %v221 = vunpack.c.h.b16 %v39
  %v222 = vunpack.c.l.b16 %v40
  %v223 = vunpack.c.h.b16 %v40
  %v224 = vunpack.c.l.b16 %v41
  %v225 = vunpack.c.h.b16 %v41
  %v226 = vunpack.c.l.b16 %v42
  %v227 = vunpack.c.h.b16 %v42
  %v228 = vunpack.c.l.b16 %v43
  %v229 = vunpack.c.h.b16 %v43
  %v230 = vunpack.c.l.b16 %v44
  %v231 = vunpack.c.h.b16 %v44
  %v232 = vunpack.c.l.b16 %v45
  %v233 = vunpack.c.h.b16 %v45
  %v234 = vunpack.c.l.b16 %v46
  %v235 = vunpack.c.h.b16 %v46
  %v236 = vunpack.c.l.b16 %v47
  %v237 = vunpack.c.h.b16 %v47
  %v238 = vunpack.c.l.b16 %v48
  %v239 = vunpack.c.h.b16 %v48
  %v240 = vunpack.c.l.b16 %v49
  %v241 = vunpack.c.h.b16 %v49
  %v242 = vunpack.c.l.b16 %v50
  %v243 = vunpack.c.h.b16 %v50
  %v244 = vunpack.c.l.b16 %v51
  %v245 = vunpack.c.h.b16 %v51
  %v246 = vunpack.c.l.b16 %v52
  %v247 = vunpack.c.h.b16 %v52
  %v248 = vunpack.c.l.b16 %v53
  %v249 = vunpack.c.h.b16 %v53
  %v250 = vunpack.c.l.b16 %v54
  %v251 = vunpack.c.h.b16 %v54
  %v252 = vunpack.c.l.b16 %v55
  %v253 = vunpack.c.h.b16 %v55
  %v254 = vunpack.c.l.b16 %v56
  %v255 = vunpack.c.h.b16 %v56
  %v256 = vunpack.c.l.b16 %v57
  %v257 = vunpack.c.h.b16 %v57
  %v258 = vunpack.c.l.b16 %v58
  %v259 = vunpack.c.h.b16 %v58
  %v260 = vunpack.c.l.b16 %v59
  %v261 = vunpack.c.h.b16 %v59
  %v262 = vunpack.c.l.b16 %v60
  %v263 = vunpack.c.h.b16 %v60
  %v264 = vunpack.c.l.b16 %v61
  %v265 = vunpack.c.h.b16 %v61
  %v266 = vunpack.c.l.b16 %v62
  %v267 = vunpack.c.h.b16 %v62
  %v268 = vunpack.c.l.b16 %v63
  %v269 = vunpack.c.h.b16 %v63
  %v270 = vunpack.c.l.b16 %v64
  %v271 = vunpack.c.h.b16 %v64
  %v272 = vunpack.c.l.b16 %v65
  %v273 = vunpack.c.h.b16 %v65
  %v274 = vunpack.c.l.b16 %v66
  %v275 = vunpack.c.h.b16 %v66
  %v276 = vunpack.c.l.b16 %v67
  %v277 = vunpack.c.h.b16 %v67
  %v278 = vunpack.c.l.b16 %v68
  %v279 = vunpack.c.h.b16 %v68
  %v280 = vunpack.c.l.b16 %v69
  %v281 = vunpack.c.h.b16 %v69
  %v282 = vunpack.c.l.b16 %v70
  %v283 = vunpack.c.h.b16 %v70
  %v284 = vunpack.c.l.b16 %v71
  %v285 = vunpack.c.h.b16 %v71
  %v286 = vunpack.c.l.b16 %v72
  %v287 = vunpack.c.h.b16 %v72
  %v288 = vunpack.c.l.b16 %v73
  %v289 = vunpack.c.h.b16 %v73
  %v290 = vunpack.c.l.b16 %v74
  %v291 = vunpack.c.h.b16 %v74
  %v292 = vunpack.c.l.b16 %v75
  %v293 = vunpack.c.h.b16 %v75
  %v294 = vunpack.c.l.b16 %v76
  %v295 = vunpack.c.h.b16 %v76
  %v296 = vunpack.c.l.b16 %v77
  %v297 = vunpack.c.h.b16 %v77
  %v298 = vunpack.c.l.b16 %v78
  %v299 = vunpack.c.h.b16 %v78
  %v300 = vunpack.c.l.b16 %v79
  %v301 = vunpack.c.h.b16 %v79
  %v302 = vunpack.c.l.b16 %v80
  %v303 = vunpack.c.h.b16 %v80
  %v304 = vunpack.c.l.b16 %v81
  %v305 = vunpack.c.h.b16 %v81
  %v306 = vpack.c.b16 %v180, %v178
  %v307 = vpack.c.b16 %v181, %v179
  %v308 = vpack.c.b16 %v184, %v182
  %v309 = vpack.c.b16 %v185, %v183
  %v310 = vpack.c.b16 %v188, %v186
  %v311 = vpack.c.b16 %v189, %v187
  %v312 = vpack.c.b16 %v192, %v190
  %v313 = vpack.c.b16 %v193, %v191
  %v314 = vpack.c.b16 %v196, %v194
  %v315 = vpack.c.b16 %v197, %v195
  %v316 = vpack.c.b16 %v200, %v198
  %v317 = vpack.c.b16 %v201, %v199
  %v318 = vpack.c.b16 %v204, %v202
  %v319 = vpack.c.b16 %v205, %v203
  %v320 = vpack.c.b16 %v208, %v206
  %v321 = vpack.c.b16 %v209, %v207
  %v322 = vpack.c.b16 %v212, %v210
  %v323 = vpack.c.b16 %v213, %v211
  %v324 = vpack.c.b16 %v216, %v214
  %v325 = vpack.c.b16 %v217, %v215
  %v326 = vpack.c.b16 %v220, %v218
  %v327 = vpack.c.b16 %v221, %v219
  %v328 = vpack.c.b16 %v224, %v222
  %v329 = vpack.c.b16 %v225, %v223
  %v330 = vpack.c.b16 %v228, %v226
  %v331 = vpack.c.b16 %v229, %v227
  %v332 = vpack.c.b16 %v232, %v230
  %v333 = vpack.c.b16 %v233, %v231
  %v334 = vpack.c.b16 %v236, %v234
  %v335 = vpack.c.b16 %v237, %v235
  %v336 = vpack.c.b16 %v240, %v238
  %v337 = vpack.c.b16 %v241, %v239
  %v338 = vpack.c.b16 %v244, %v242
  %v339 = vpack.c.b16 %v245, %v243
  %v340 = vpack.c.b16 %v248, %v246
  %v341 = vpack.c.b16 %v249, %v247
  %v342 = vpack.c.b16 %v252, %v250
  %v343 = vpack.c.b16 %v253, %v251
  %v344 = vpack.c.b16 %v256, %v254
  %v345 = vpack.c.b16 %v257, %v255
  %v346 = vpack.c.b16 %v260, %v258
  %v347 = vpack.c.b16 %v261, %v259
  %v348 = vpack.c.b16 %v264, %v262
  %v349 = vpack.c.b16 %v265, %v263
  %v350 = vpack.c.b16 %v268, %v266
  %v351 = vpack.c.b16 %v269, %v267
  %v352 = vpack.c.b16 %v272, %v270
  %v353 = vpack.c.b16 %v273, %v271
  %v354 = vpack.c.b16 %v276, %v274
  %v355 = vpack.c.b16 %v277, %v275
  %v356 = vpack.c.b16 %v280, %v278
  %v357 = vpack.c.b16 %v281, %v279
  %v358 = vpack.c.b16 %v284, %v282
  %v359 = vpack.c.b16 %v285, %v283
  %v360 = vpack.c.b16 %v288, %v286
  %v361 = vpack.c.b16 %v289, %v287
  %v362 = vpack.c.b16 %v292, %v290
  %v363 = vpack.c.b16 %v293, %v291
  %v364 = vpack.c.b16 %v296, %v294
  %v365 = vpack.c.b16 %v297, %v295
  %v366 = vpack.c.b16 %v300, %v298
  %v367 = vpack.c.b16 %v301, %v299
  %v368 = vpack.c.b16 %v304, %v302
  %v369 = vpack.c.b16 %v305, %v303
  %v466 = vunpack.c.l.b16 %v82
  %v467 = vunpack.c.l.b16 %v83
  %v468 = vunpack.c.l.b16 %v84
  %v469 = vunpack.c.l.b16 %v85
  %v470 = vunpack.c.l.b16 %v86
  %v471 = vunpack.c.l.b16 %v87
  %v472 = vunpack.c.l.b16 %v88
  %v473 = vunpack.c.l.b16 %v89
  %v474 = vunpack.c.l.b16 %v90
  %v475 = vunpack.c.l.b16 %v91
  %v476 = vunpack.c.l.b16 %v92
  %v477 = vunpack.c.l.b16 %v93
  %v478 = vunpack.c.l.b16 %v94
  %v479 = vunpack.c.l.b16 %v95
  %v480 = vunpack.c.l.b16 %v96
  %v481 = vunpack.c.l.b16 %v97
  %v482 = vunpack.c.l.b16 %v98
  %v483 = vunpack.c.l.b16 %v99
  %v484 = vunpack.c.l.b16 %v100
  %v485 = vunpack.c.l.b16 %v101
  %v486 = vunpack.c.l.b16 %v102
  %v487 = vunpack.c.l.b16 %v103
  %v488 = vunpack.c.l.b16 %v104
  %v489 = vunpack.c.l.b16 %v105
  %v490 = vunpack.c.l.b16 %v106
  %v491 = vunpack.c.l.b16 %v107
  %v492 = vunpack.c.l.b16 %v108
  %v493 = vunpack.c.l.b16 %v109
  %v494 = vunpack.c.l.b16 %v110
  %v495 = vunpack.c.l.b16 %v111
  %v496 = vunpack.c.l.b16 %v112
  %v497 = vunpack.c.l.b16 %v113
  %v498 = vpack.c.b16 %v467, %v466
  %v499 = vpack.c.b16 %v469, %v468
  %v500 = vpack.c.b16 %v471, %v470
  %v501 = vpack.c.b16 %v473, %v472
  %v502 = vpack.c.b16 %v475, %v474
  %v503 = vpack.c.b16 %v477, %v476
  %v504 = vpack.c.b16 %v479, %v478
  %v505 = vpack.c.b16 %v481, %v480
  %v506 = vpack.c.b16 %v483, %v482
  %v507 = vpack.c.b16 %v485, %v484
  %v508 = vpack.c.b16 %v487, %v486
  %v509 = vpack.c.b16 %v489, %v488
  %v510 = vpack.c.b16 %v491, %v490
  %v511 = vpack.c.b16 %v493, %v492
  %v512 = vpack.c.b16 %v495, %v494
  %v513 = vpack.c.b16 %v497, %v496
  %530 = vmatprep.subr.bf16.mxu0 0
  %531 = vmatpush1.bf16.msra.mxu0 %v498
  %532 = vmatprep.subr.bf16.mxu0 0
  %533 = vmatpush1.bf16.msra.mxu0 %v499
  %534 = vmatprep.subr.bf16.mxu0 0
  %535 = vmatpush1.bf16.msra.mxu0 %v500
  %536 = vmatprep.subr.bf16.mxu0 0
  %537 = vmatpush1.bf16.msra.mxu0 %v501
  %538 = vmatprep.subr.bf16.mxu0 0
  %539 = vmatpush1.bf16.msra.mxu0 %v502
  %540 = vmatprep.subr.bf16.mxu0 0
  %541 = vmatpush1.bf16.msra.mxu0 %v503
  %542 = vmatprep.subr.bf16.mxu0 0
  %543 = vmatpush1.bf16.msra.mxu0 %v504
  %544 = vmatprep.subr.bf16.mxu0 0
  %545 = vmatpush1.bf16.msra.mxu0 %v505
  %546 = vmatprep.subr.bf16.mxu0 0
  %547 = vmatpush1.bf16.msra.mxu0 %v506
  %548 = vmatprep.subr.bf16.mxu0 0
  %549 = vmatpush1.bf16.msra.mxu0 %v507
  %550 = vmatprep.subr.bf16.mxu0 0
  %551 = vmatpush1.bf16.msra.mxu0 %v508
  %552 = vmatprep.subr.bf16.mxu0 0
  %553 = vmatpush1.bf16.msra.mxu0 %v509
  %554 = vmatprep.subr.bf16.mxu0 0
  %555 = vmatpush1.bf16.msra.mxu0 %v510
  %556 = vmatprep.subr.bf16.mxu0 0
  %557 = vmatpush1.bf16.msra.mxu0 %v511
  %558 = vmatprep.subr.bf16.mxu0 0
  %559 = vmatpush1.bf16.msra.mxu0 %v512
  %560 = vmatprep.subr.bf16.mxu0 0
  %561 = vmatpush1.bf16.msra.mxu0 %v513
  %562 = vmatprep.mubr.bf16.mxu0 %v307
  %563 = vmatmul.mubr.bf16.gmra.mrb[0].mxu0 %v306
  %v564 = vpop.f32.mrb[0].mxu0
  %v565 = vadd.f32 0.0, %v564
  %v566 = vpop.f32.mrb[0].mxu0
  %v567 = vpop.f32.mrb[0].mxu0
  %v568 = vadd.f32 0.0, %v567
  %v569 = vpop.f32.mrb[0].mxu0
  %570 = vmatprep.mubr.bf16.mxu0 %v309
  %571 = vmatmul.mubr.bf16.gmra.mrb[0].mxu0 %v308
  %v572 = vpop.f32.mrb[0].mxu0
  %v573 = vadd.f32 0.0, %v572
  %v574 = vpop.f32.mrb[0].mxu0
  %v575 = vpop.f32.mrb[0].mxu0
  %v576 = vadd.f32 0.0, %v575
  %v577 = vpop.f32.mrb[0].mxu0
  %578 = vmatprep.mubr.bf16.mxu0 %v311
  %579 = vmatmul.mubr.bf16.gmra.mrb[0].mxu0 %v310
  %v580 = vpop.f32.mrb[0].mxu0
  %v581 = vadd.f32 0.0, %v580
  %v582 = vpop.f32.mrb[0].mxu0
  %v583 = vpop.f32.mrb[0].mxu0
  %v584 = vadd.f32 0.0, %v583
  %v585 = vpop.f32.mrb[0].mxu0
  %586 = vmatprep.mubr.bf16.mxu0 %v313
  %587 = vmatmul.mubr.bf16.gmra.mrb[0].mxu0 %v312
  %v588 = vpop.f32.mrb[0].mxu0
  %v589 = vadd.f32 0.0, %v588
  %v590 = vpop.f32.mrb[0].mxu0
  %v591 = vpop.f32.mrb[0].mxu0
  %v592 = vadd.f32 0.0, %v591
  %v593 = vpop.f32.mrb[0].mxu0
  %594 = vmatprep.mubr.bf16.mxu0 %v315
  %595 = vmatmul.mubr.bf16.gmra.mrb[0].mxu0 %v314
  %v596 = vpop.f32.mrb[0].mxu0
  %v597 = vadd.f32 0.0, %v596
  %v598 = vpop.f32.mrb[0].mxu0
  %v599 = vpop.f32.mrb[0].mxu0
  %v600 = vadd.f32 0.0, %v599
  %v601 = vpop.f32.mrb[0].mxu0
  %602 = vmatprep.mubr.bf16.mxu0 %v317
  %603 = vmatmul.mubr.bf16.gmra.mrb[0].mxu0 %v316
  %v604 = vpop.f32.mrb[0].mxu0
  %v605 = vadd.f32 0.0, %v604
  %v606 = vpop.f32.mrb[0].mxu0
  %v607 = vpop.f32.mrb[0].mxu0
  %v608 = vadd.f32 0.0, %v607
  %v609 = vpop.f32.mrb[0].mxu0
  %610 = vmatprep.mubr.bf16.mxu0 %v319
  %611 = vmatmul.mubr.bf16.gmra.mrb[0].mxu0 %v318
  %v612 = vpop.f32.mrb[0].mxu0
  %v613 = vadd.f32 0.0, %v612
  %v614 = vpop.f32.mrb[0].mxu0
  %v615 = vpop.f32.mrb[0].mxu0
  %v616 = vadd.f32 0.0, %v615
  %v617 = vpop.f32.mrb[0].mxu0
  %618 = vmatprep.mubr.bf16.mxu0 %v321
  %619 = vmatmul.mubr.bf16.gmra.mrb[0].mxu0 %v320
  %v620 = vpop.f32.mrb[0].mxu0
  %v621 = vadd.f32 0.0, %v620
  %v622 = vpop.f32.mrb[0].mxu0
  %v623 = vpop.f32.mrb[0].mxu0
  %v624 = vadd.f32 0.0, %v623
  %v625 = vpop.f32.mrb[0].mxu0
  %626 = vmatprep.mubr.bf16.mxu0 %v323
  %627 = vmatmul.mubr.bf16.gmra.mrb[0].mxu0 %v322
  %v628 = vpop.f32.mrb[0].mxu0
  %v629 = vadd.f32 0.0, %v628
  %v630 = vpop.f32.mrb[0].mxu0
  %v631 = vpop.f32.mrb[0].mxu0
  %v632 = vadd.f32 0.0, %v631
  %v633 = vpop.f32.mrb[0].mxu0
  %634 = vmatprep.mubr.bf16.mxu0 %v325
  %635 = vmatmul.mubr.bf16.gmra.mrb[0].mxu0 %v324
  %v636 = vpop.f32.mrb[0].mxu0
  %v637 = vadd.f32 0.0, %v636
  %v638 = vpop.f32.mrb[0].mxu0
  %v639 = vpop.f32.mrb[0].mxu0
  %v640 = vadd.f32 0.0, %v639
  %v641 = vpop.f32.mrb[0].mxu0
  %642 = vmatprep.mubr.bf16.mxu0 %v327
  %643 = vmatmul.mubr.bf16.gmra.mrb[0].mxu0 %v326
  %v644 = vpop.f32.mrb[0].mxu0
  %v645 = vadd.f32 0.0, %v644
  %v646 = vpop.f32.mrb[0].mxu0
  %v647 = vpop.f32.mrb[0].mxu0
  %v648 = vadd.f32 0.0, %v647
  %v649 = vpop.f32.mrb[0].mxu0
  %650 = vmatprep.mubr.bf16.mxu0 %v329
  %651 = vmatmul.mubr.bf16.gmra.mrb[0].mxu0 %v328
  %v652 = vpop.f32.mrb[0].mxu0
  %v653 = vadd.f32 0.0, %v652
  %v654 = vpop.f32.mrb[0].mxu0
  %v655 = vpop.f32.mrb[0].mxu0
  %v656 = vadd.f32 0.0, %v655
  %v657 = vpop.f32.mrb[0].mxu0
  %658 = vmatprep.mubr.bf16.mxu0 %v331
  %659 = vmatmul.mubr.bf16.gmra.mrb[0].mxu0 %v330
  %v660 = vpop.f32.mrb[0].mxu0
  %v661 = vadd.f32 0.0, %v660
  %v662 = vpop.f32.mrb[0].mxu0
  %v663 = vpop.f32.mrb[0].mxu0
  %v664 = vadd.f32 0.0, %v663
  %v665 = vpop.f32.mrb[0].mxu0
  %666 = vmatprep.mubr.bf16.mxu0 %v333
  %667 = vmatmul.mubr.bf16.gmra.mrb[0].mxu0 %v332
  %v668 = vpop.f32.mrb[0].mxu0
  %v669 = vadd.f32 0.0, %v668
  %v670 = vpop.f32.mrb[0].mxu0
  %v671 = vpop.f32.mrb[0].mxu0
  %v672 = vadd.f32 0.0, %v671
  %v673 = vpop.f32.mrb[0].mxu0
  %674 = vmatprep.mubr.bf16.mxu0 %v335
  %675 = vmatmul.mubr.bf16.gmra.mrb[0].mxu0 %v334
  %v676 = vpop.f32.mrb[0].mxu0
  %v677 = vadd.f32 0.0, %v676
  %v678 = vpop.f32.mrb[0].mxu0
  %v679 = vpop.f32.mrb[0].mxu0
  %v680 = vadd.f32 0.0, %v679
  %v681 = vpop.f32.mrb[0].mxu0
  %682 = vmatprep.mubr.bf16.mxu0 %v337
  %683 = vmatmul.mubr.bf16.gmra.mrb[0].mxu0 %v336
  %v684 = vpop.f32.mrb[0].mxu0
  %v685 = vadd.f32 0.0, %v684
  %v686 = vpop.f32.mrb[0].mxu0
  %v687 = vpop.f32.mrb[0].mxu0
  %v688 = vadd.f32 0.0, %v687
  %v689 = vpop.f32.mrb[0].mxu0
  %690 = vmatprep.mubr.bf16.mxu0 %v339
  %691 = vmatmul.mubr.bf16.gmra.mrb[0].mxu0 %v338
  %v692 = vpop.f32.mrb[0].mxu0
  %v693 = vadd.f32 0.0, %v692
  %v694 = vpop.f32.mrb[0].mxu0
  %v695 = vpop.f32.mrb[0].mxu0
  %v696 = vadd.f32 0.0, %v695
  %v697 = vpop.f32.mrb[0].mxu0
  %698 = vmatprep.mubr.bf16.mxu0 %v341
  %699 = vmatmul.mubr.bf16.gmra.mrb[0].mxu0 %v340
  %v700 = vpop.f32.mrb[0].mxu0
  %v701 = vadd.f32 0.0, %v700
  %v702 = vpop.f32.mrb[0].mxu0
  %v703 = vpop.f32.mrb[0].mxu0
  %v704 = vadd.f32 0.0, %v703
  %v705 = vpop.f32.mrb[0].mxu0
  %706 = vmatprep.mubr.bf16.mxu0 %v343
  %707 = vmatmul.mubr.bf16.gmra.mrb[0].mxu0 %v342
  %v708 = vpop.f32.mrb[0].mxu0
  %v709 = vadd.f32 0.0, %v708
  %v710 = vpop.f32.mrb[0].mxu0
  %v711 = vpop.f32.mrb[0].mxu0
  %v712 = vadd.f32 0.0, %v711
  %v713 = vpop.f32.mrb[0].mxu0
  %714 = vmatprep.mubr.bf16.mxu0 %v345
  %715 = vmatmul.mubr.bf16.gmra.mrb[0].mxu0 %v344
  %v716 = vpop.f32.mrb[0].mxu0
  %v717 = vadd.f32 0.0, %v716
  %v718 = vpop.f32.mrb[0].mxu0
  %v719 = vpop.f32.mrb[0].mxu0
  %v720 = vadd.f32 0.0, %v719
  %v721 = vpop.f32.mrb[0].mxu0
  %722 = vmatprep.mubr.bf16.mxu0 %v347
  %723 = vmatmul.mubr.bf16.gmra.mrb[0].mxu0 %v346
  %v724 = vpop.f32.mrb[0].mxu0
  %v725 = vadd.f32 0.0, %v724
  %v726 = vpop.f32.mrb[0].mxu0
  %v727 = vpop.f32.mrb[0].mxu0
  %v728 = vadd.f32 0.0, %v727
  %v729 = vpop.f32.mrb[0].mxu0
  %730 = vmatprep.mubr.bf16.mxu0 %v349
  %731 = vmatmul.mubr.bf16.gmra.mrb[0].mxu0 %v348
  %v732 = vpop.f32.mrb[0].mxu0
  %v733 = vadd.f32 0.0, %v732
  %v734 = vpop.f32.mrb[0].mxu0
  %v735 = vpop.f32.mrb[0].mxu0
  %v736 = vadd.f32 0.0, %v735
  %v737 = vpop.f32.mrb[0].mxu0
  %738 = vmatprep.mubr.bf16.mxu0 %v351
  %739 = vmatmul.mubr.bf16.gmra.mrb[0].mxu0 %v350
  %v740 = vpop.f32.mrb[0].mxu0
  %v741 = vadd.f32 0.0, %v740
  %v742 = vpop.f32.mrb[0].mxu0
  %v743 = vpop.f32.mrb[0].mxu0
  %v744 = vadd.f32 0.0, %v743
  %v745 = vpop.f32.mrb[0].mxu0
  %746 = vmatprep.mubr.bf16.mxu0 %v353
  %747 = vmatmul.mubr.bf16.gmra.mrb[0].mxu0 %v352
  %v748 = vpop.f32.mrb[0].mxu0
  %v749 = vadd.f32 0.0, %v748
  %v750 = vpop.f32.mrb[0].mxu0
  %v751 = vpop.f32.mrb[0].mxu0
  %v752 = vadd.f32 0.0, %v751
  %v753 = vpop.f32.mrb[0].mxu0
  %754 = vmatprep.mubr.bf16.mxu0 %v355
  %755 = vmatmul.mubr.bf16.gmra.mrb[0].mxu0 %v354
  %v756 = vpop.f32.mrb[0].mxu0
  %v757 = vadd.f32 0.0, %v756
  %v758 = vpop.f32.mrb[0].mxu0
  %v759 = vpop.f32.mrb[0].mxu0
  %v760 = vadd.f32 0.0, %v759
  %v761 = vpop.f32.mrb[0].mxu0
  %762 = vmatprep.mubr.bf16.mxu0 %v357
  %763 = vmatmul.mubr.bf16.gmra.mrb[0].mxu0 %v356
  %v764 = vpop.f32.mrb[0].mxu0
  %v765 = vadd.f32 0.0, %v764
  %v766 = vpop.f32.mrb[0].mxu0
  %v767 = vpop.f32.mrb[0].mxu0
  %v768 = vadd.f32 0.0, %v767
  %v769 = vpop.f32.mrb[0].mxu0
  %770 = vmatprep.mubr.bf16.mxu0 %v359
  %771 = vmatmul.mubr.bf16.gmra.mrb[0].mxu0 %v358
  %v772 = vpop.f32.mrb[0].mxu0
  %v773 = vadd.f32 0.0, %v772
  %v774 = vpop.f32.mrb[0].mxu0
  %v775 = vpop.f32.mrb[0].mxu0
  %v776 = vadd.f32 0.0, %v775
  %v777 = vpop.f32.mrb[0].mxu0
  %778 = vmatprep.mubr.bf16.mxu0 %v361
  %779 = vmatmul.mubr.bf16.gmra.mrb[0].mxu0 %v360
  %v780 = vpop.f32.mrb[0].mxu0
  %v781 = vadd.f32 0.0, %v780
  %v782 = vpop.f32.mrb[0].mxu0
  %v783 = vpop.f32.mrb[0].mxu0
  %v784 = vadd.f32 0.0, %v783
  %v785 = vpop.f32.mrb[0].mxu0
  %786 = vmatprep.mubr.bf16.mxu0 %v363
  %787 = vmatmul.mubr.bf16.gmra.mrb[0].mxu0 %v362
  %v788 = vpop.f32.mrb[0].mxu0
  %v789 = vadd.f32 0.0, %v788
  %v790 = vpop.f32.mrb[0].mxu0
  %v791 = vpop.f32.mrb[0].mxu0
  %v792 = vadd.f32 0.0, %v791
  %v793 = vpop.f32.mrb[0].mxu0
  %794 = vmatprep.mubr.bf16.mxu0 %v365
  %795 = vmatmul.mubr.bf16.gmra.mrb[0].mxu0 %v364
  %v796 = vpop.f32.mrb[0].mxu0
  %v797 = vadd.f32 0.0, %v796
  %v798 = vpop.f32.mrb[0].mxu0
  %v799 = vpop.f32.mrb[0].mxu0
  %v800 = vadd.f32 0.0, %v799
  %v801 = vpop.f32.mrb[0].mxu0
  %802 = vmatprep.mubr.bf16.mxu0 %v367
  %803 = vmatmul.mubr.bf16.gmra.mrb[0].mxu0 %v366
  %v804 = vpop.f32.mrb[0].mxu0
  %v805 = vadd.f32 0.0, %v804
  %v806 = vpop.f32.mrb[0].mxu0
  %v807 = vpop.f32.mrb[0].mxu0
  %v808 = vadd.f32 0.0, %v807
  %v809 = vpop.f32.mrb[0].mxu0
  %810 = vmatprep.mubr.bf16.mxu0 %v369
  %811 = vmatmul.mubr.bf16.gmra.mrb[0].mxu0 %v368
  %v812 = vpop.f32.mrb[0].mxu0
  %v813 = vadd.f32 0.0, %v812
  %v814 = vpop.f32.mrb[0].mxu0
  %v815 = vpop.f32.mrb[0].mxu0
  %v816 = vadd.f32 0.0, %v815
  %v817 = vpop.f32.mrb[0].mxu0
  %818 = vdwg.mxu0
  %v819 = vld [vmem:[%s2] sm:$0x1]
  %v821 = vlaneseq
  %v822 = vshrl.u32 %v821, 7
  %v823 = vsub.s32 0, %v822
  %v824 = vrot.slane %v819, %v823
  %v826 = vmul.f32 %v565, %v824
  %v827 = vmul.f32 %v568, %v824
  %v828 = vmul.f32 %v573, %v824
  %v829 = vmul.f32 %v576, %v824
  %v830 = vmul.f32 %v581, %v824
  %v831 = vmul.f32 %v584, %v824
  %v832 = vmul.f32 %v589, %v824
  %v833 = vmul.f32 %v592, %v824
  %v834 = vmul.f32 %v597, %v824
  %v835 = vmul.f32 %v600, %v824
  %v836 = vmul.f32 %v605, %v824
  %v837 = vmul.f32 %v608, %v824
  %v838 = vmul.f32 %v613, %v824
  %v839 = vmul.f32 %v616, %v824
  %v840 = vmul.f32 %v621, %v824
  %v841 = vmul.f32 %v624, %v824
  %v842 = vmul.f32 %v629, %v824
  %v843 = vmul.f32 %v632, %v824
  %v844 = vmul.f32 %v637, %v824
  %v845 = vmul.f32 %v640, %v824
  %v846 = vmul.f32 %v645, %v824
  %v847 = vmul.f32 %v648, %v824
  %v848 = vmul.f32 %v653, %v824
  %v849 = vmul.f32 %v656, %v824
  %v850 = vmul.f32 %v661, %v824
  %v851 = vmul.f32 %v664, %v824
  %v852 = vmul.f32 %v669, %v824
  %v853 = vmul.f32 %v672, %v824
  %v854 = vmul.f32 %v677, %v824
  %v855 = vmul.f32 %v680, %v824
  %v856 = vmul.f32 %v685, %v824
  %v857 = vmul.f32 %v688, %v824
  %v858 = vmul.f32 %v693, %v824
  %v859 = vmul.f32 %v696, %v824
  %v860 = vmul.f32 %v701, %v824
  %v861 = vmul.f32 %v704, %v824
  %v862 = vmul.f32 %v709, %v824
  %v863 = vmul.f32 %v712, %v824
  %v864 = vmul.f32 %v717, %v824
  %v865 = vmul.f32 %v720, %v824
  %v866 = vmul.f32 %v725, %v824
  %v867 = vmul.f32 %v728, %v824
  %v868 = vmul.f32 %v733, %v824
  %v869 = vmul.f32 %v736, %v824
  %v870 = vmul.f32 %v741, %v824
  %v871 = vmul.f32 %v744, %v824
  %v872 = vmul.f32 %v749, %v824
  %v873 = vmul.f32 %v752, %v824
  %v874 = vmul.f32 %v757, %v824
  %v875 = vmul.f32 %v760, %v824
  %v876 = vmul.f32 %v765, %v824
  %v877 = vmul.f32 %v768, %v824
  %v878 = vmul.f32 %v773, %v824
  %v879 = vmul.f32 %v776, %v824
  %v880 = vmul.f32 %v781, %v824
  %v881 = vmul.f32 %v784, %v824
  %v882 = vmul.f32 %v789, %v824
  %v883 = vmul.f32 %v792, %v824
  %v884 = vmul.f32 %v797, %v824
  %v885 = vmul.f32 %v800, %v824
  %v886 = vmul.f32 %v805, %v824
  %v887 = vmul.f32 %v808, %v824
  %v888 = vmul.f32 %v813, %v824
  %v889 = vmul.f32 %v816, %v824
  %v890 = vld [vmem:[%s3] sm:$0x1]
  %v892 = vlaneseq
  %v893 = vshrl.u32 %v892, 7
  %v894 = vsub.s32 0, %v893
  %v895 = vrot.slane %v890, %v894
  %v897 = vadd.f32 %v826, %v895
  %v898 = vadd.f32 %v827, %v895
  %v899 = vadd.f32 %v828, %v895
  %v900 = vadd.f32 %v829, %v895
  %v901 = vadd.f32 %v830, %v895
  %v902 = vadd.f32 %v831, %v895
  %v903 = vadd.f32 %v832, %v895
  %v904 = vadd.f32 %v833, %v895
  %v905 = vadd.f32 %v834, %v895
  %v906 = vadd.f32 %v835, %v895
  %v907 = vadd.f32 %v836, %v895
  %v908 = vadd.f32 %v837, %v895
  %v909 = vadd.f32 %v838, %v895
  %v910 = vadd.f32 %v839, %v895
  %v911 = vadd.f32 %v840, %v895
  %v912 = vadd.f32 %v841, %v895
  %v913 = vadd.f32 %v842, %v895
  %v914 = vadd.f32 %v843, %v895
  %v915 = vadd.f32 %v844, %v895
  %v916 = vadd.f32 %v845, %v895
  %v917 = vadd.f32 %v846, %v895
  %v918 = vadd.f32 %v847, %v895
  %v919 = vadd.f32 %v848, %v895
  %v920 = vadd.f32 %v849, %v895
  %v921 = vadd.f32 %v850, %v895
  %v922 = vadd.f32 %v851, %v895
  %v923 = vadd.f32 %v852, %v895
  %v924 = vadd.f32 %v853, %v895
  %v925 = vadd.f32 %v854, %v895
  %v926 = vadd.f32 %v855, %v895
  %v927 = vadd.f32 %v856, %v895
  %v928 = vadd.f32 %v857, %v895
  %v929 = vadd.f32 %v858, %v895
  %v930 = vadd.f32 %v859, %v895
  %v931 = vadd.f32 %v860, %v895
  %v932 = vadd.f32 %v861, %v895
  %v933 = vadd.f32 %v862, %v895
  %v934 = vadd.f32 %v863, %v895
  %v935 = vadd.f32 %v864, %v895
  %v936 = vadd.f32 %v865, %v895
  %v937 = vadd.f32 %v866, %v895
  %v938 = vadd.f32 %v867, %v895
  %v939 = vadd.f32 %v868, %v895
  %v940 = vadd.f32 %v869, %v895
  %v941 = vadd.f32 %v870, %v895
  %v942 = vadd.f32 %v871, %v895
  %v943 = vadd.f32 %v872, %v895
  %v944 = vadd.f32 %v873, %v895
  %v945 = vadd.f32 %v874, %v895
  %v946 = vadd.f32 %v875, %v895
  %v947 = vadd.f32 %v876, %v895
  %v948 = vadd.f32 %v877, %v895
  %v949 = vadd.f32 %v878, %v895
  %v950 = vadd.f32 %v879, %v895
  %v951 = vadd.f32 %v880, %v895
  %v952 = vadd.f32 %v881, %v895
  %v953 = vadd.f32 %v882, %v895
  %v954 = vadd.f32 %v883, %v895
  %v955 = vadd.f32 %v884, %v895
  %v956 = vadd.f32 %v885, %v895
  %v957 = vadd.f32 %v886, %v895
  %v958 = vadd.f32 %v887, %v895
  %v959 = vadd.f32 %v888, %v895
  %v960 = vadd.f32 %v889, %v895
  %v961 = vmax.f32 %v897, 0.0
  %v962 = vmax.f32 %v898, 0.0
  %v963 = vmax.f32 %v899, 0.0
  %v964 = vmax.f32 %v900, 0.0
  %v965 = vmax.f32 %v901, 0.0
  %v966 = vmax.f32 %v902, 0.0
  %v967 = vmax.f32 %v903, 0.0
  %v968 = vmax.f32 %v904, 0.0
  %v969 = vmax.f32 %v905, 0.0
  %v970 = vmax.f32 %v906, 0.0
  %v971 = vmax.f32 %v907, 0.0
  %v972 = vmax.f32 %v908, 0.0
  %v973 = vmax.f32 %v909, 0.0
  %v974 = vmax.f32 %v910, 0.0
  %v975 = vmax.f32 %v911, 0.0
  %v976 = vmax.f32 %v912, 0.0
  %v977 = vmax.f32 %v913, 0.0
  %v978 = vmax.f32 %v914, 0.0
  %v979 = vmax.f32 %v915, 0.0
  %v980 = vmax.f32 %v916, 0.0
  %v981 = vmax.f32 %v917, 0.0
  %v982 = vmax.f32 %v918, 0.0
  %v983 = vmax.f32 %v919, 0.0
  %v984 = vmax.f32 %v920, 0.0
  %v985 = vmax.f32 %v921, 0.0
  %v986 = vmax.f32 %v922, 0.0
  %v987 = vmax.f32 %v923, 0.0
  %v988 = vmax.f32 %v924, 0.0
  %v989 = vmax.f32 %v925, 0.0
  %v990 = vmax.f32 %v926, 0.0
  %v991 = vmax.f32 %v927, 0.0
  %v992 = vmax.f32 %v928, 0.0
  %v993 = vmax.f32 %v929, 0.0
  %v994 = vmax.f32 %v930, 0.0
  %v995 = vmax.f32 %v931, 0.0
  %v996 = vmax.f32 %v932, 0.0
  %v997 = vmax.f32 %v933, 0.0
  %v998 = vmax.f32 %v934, 0.0
  %v999 = vmax.f32 %v935, 0.0
  %v1000 = vmax.f32 %v936, 0.0
  %v1001 = vmax.f32 %v937, 0.0
  %v1002 = vmax.f32 %v938, 0.0
  %v1003 = vmax.f32 %v939, 0.0
  %v1004 = vmax.f32 %v940, 0.0
  %v1005 = vmax.f32 %v941, 0.0
  %v1006 = vmax.f32 %v942, 0.0
  %v1007 = vmax.f32 %v943, 0.0
  %v1008 = vmax.f32 %v944, 0.0
  %v1009 = vmax.f32 %v945, 0.0
  %v1010 = vmax.f32 %v946, 0.0
  %v1011 = vmax.f32 %v947, 0.0
  %v1012 = vmax.f32 %v948, 0.0
  %v1013 = vmax.f32 %v949, 0.0
  %v1014 = vmax.f32 %v950, 0.0
  %v1015 = vmax.f32 %v951, 0.0
  %v1016 = vmax.f32 %v952, 0.0
  %v1017 = vmax.f32 %v953, 0.0
  %v1018 = vmax.f32 %v954, 0.0
  %v1019 = vmax.f32 %v955, 0.0
  %v1020 = vmax.f32 %v956, 0.0
  %v1021 = vmax.f32 %v957, 0.0
  %v1022 = vmax.f32 %v958, 0.0
  %v1023 = vmax.f32 %v959, 0.0
  %v1024 = vmax.f32 %v960, 0.0
  %v1025 = vpack.c.bf16 %v962, %v961
  %v1026 = vpack.c.bf16 %v964, %v963
  %v1027 = vpack.c.bf16 %v966, %v965
  %v1028 = vpack.c.bf16 %v968, %v967
  %v1029 = vpack.c.bf16 %v970, %v969
  %v1030 = vpack.c.bf16 %v972, %v971
  %v1031 = vpack.c.bf16 %v974, %v973
  %v1032 = vpack.c.bf16 %v976, %v975
  %v1033 = vpack.c.bf16 %v978, %v977
  %v1034 = vpack.c.bf16 %v980, %v979
  %v1035 = vpack.c.bf16 %v982, %v981
  %v1036 = vpack.c.bf16 %v984, %v983
  %v1037 = vpack.c.bf16 %v986, %v985
  %v1038 = vpack.c.bf16 %v988, %v987
  %v1039 = vpack.c.bf16 %v990, %v989
  %v1040 = vpack.c.bf16 %v992, %v991
  %v1041 = vpack.c.bf16 %v994, %v993
  %v1042 = vpack.c.bf16 %v996, %v995
  %v1043 = vpack.c.bf16 %v998, %v997
  %v1044 = vpack.c.bf16 %v1000, %v999
  %v1045 = vpack.c.bf16 %v1002, %v1001
  %v1046 = vpack.c.bf16 %v1004, %v1003
  %v1047 = vpack.c.bf16 %v1006, %v1005
  %v1048 = vpack.c.bf16 %v1008, %v1007
  %v1049 = vpack.c.bf16 %v1010, %v1009
  %v1050 = vpack.c.bf16 %v1012, %v1011
  %v1051 = vpack.c.bf16 %v1014, %v1013
  %v1052 = vpack.c.bf16 %v1016, %v1015
  %v1053 = vpack.c.bf16 %v1018, %v1017
  %v1054 = vpack.c.bf16 %v1020, %v1019
  %v1055 = vpack.c.bf16 %v1022, %v1021
  %v1056 = vpack.c.bf16 %v1024, %v1023
  %v1089 = vunpack.c.l.b16 %v1025
  %v1090 = vunpack.c.h.b16 %v1025
  %v1091 = vunpack.c.l.b16 %v1026
  %v1092 = vunpack.c.h.b16 %v1026
  %v1093 = vunpack.c.l.b16 %v1027
  %v1094 = vunpack.c.h.b16 %v1027
  %v1095 = vunpack.c.l.b16 %v1028
  %v1096 = vunpack.c.h.b16 %v1028
  %v1097 = vunpack.c.l.b16 %v1029
  %v1098 = vunpack.c.h.b16 %v1029
  %v1099 = vunpack.c.l.b16 %v1030
  %v1100 = vunpack.c.h.b16 %v1030
  %v1101 = vunpack.c.l.b16 %v1031
  %v1102 = vunpack.c.h.b16 %v1031
  %v1103 = vunpack.c.l.b16 %v1032
  %v1104 = vunpack.c.h.b16 %v1032
  %v1105 = vunpack.c.l.b16 %v1033
  %v1106 = vunpack.c.h.b16 %v1033
  %v1107 = vunpack.c.l.b16 %v1034
  %v1108 = vunpack.c.h.b16 %v1034
  %v1109 = vunpack.c.l.b16 %v1035
  %v1110 = vunpack.c.h.b16 %v1035
  %v1111 = vunpack.c.l.b16 %v1036
  %v1112 = vunpack.c.h.b16 %v1036
  %v1113 = vunpack.c.l.b16 %v1037
  %v1114 = vunpack.c.h.b16 %v1037
  %v1115 = vunpack.c.l.b16 %v1038
  %v1116 = vunpack.c.h.b16 %v1038
  %v1117 = vunpack.c.l.b16 %v1039
  %v1118 = vunpack.c.h.b16 %v1039
  %v1119 = vunpack.c.l.b16 %v1040
  %v1120 = vunpack.c.h.b16 %v1040
  %v1121 = vunpack.c.l.b16 %v1041
  %v1122 = vunpack.c.h.b16 %v1041
  %v1123 = vunpack.c.l.b16 %v1042
  %v1124 = vunpack.c.h.b16 %v1042
  %v1125 = vunpack.c.l.b16 %v1043
  %v1126 = vunpack.c.h.b16 %v1043
  %v1127 = vunpack.c.l.b16 %v1044
  %v1128 = vunpack.c.h.b16 %v1044
  %v1129 = vunpack.c.l.b16 %v1045
  %v1130 = vunpack.c.h.b16 %v1045
  %v1131 = vunpack.c.l.b16 %v1046
  %v1132 = vunpack.c.h.b16 %v1046
  %v1133 = vunpack.c.l.b16 %v1047
  %v1134 = vunpack.c.h.b16 %v1047
  %v1135 = vunpack.c.l.b16 %v1048
  %v1136 = vunpack.c.h.b16 %v1048
  %v1137 = vunpack.c.l.b16 %v1049
  %v1138 = vunpack.c.h.b16 %v1049
  %v1139 = vunpack.c.l.b16 %v1050
  %v1140 = vunpack.c.h.b16 %v1050
  %v1141 = vunpack.c.l.b16 %v1051
  %v1142 = vunpack.c.h.b16 %v1051
  %v1143 = vunpack.c.l.b16 %v1052
  %v1144 = vunpack.c.h.b16 %v1052
  %v1145 = vunpack.c.l.b16 %v1053
  %v1146 = vunpack.c.h.b16 %v1053
  %v1147 = vunpack.c.l.b16 %v1054
  %v1148 = vunpack.c.h.b16 %v1054
  %v1149 = vunpack.c.l.b16 %v1055
  %v1150 = vunpack.c.h.b16 %v1055
  %v1151 = vunpack.c.l.b16 %v1056
  %v1152 = vunpack.c.h.b16 %v1056
  %v1153 = vpack.c.b16 %v1089, %v1089
  %v1154 = vpack.c.b16 %v1090, %v1090
  %v1155 = vpack.c.b16 %v1091, %v1091
  %v1156 = vpack.c.b16 %v1092, %v1092
  %v1157 = vpack.c.b16 %v1093, %v1093
  %v1158 = vpack.c.b16 %v1094, %v1094
  %v1159 = vpack.c.b16 %v1095, %v1095
  %v1160 = vpack.c.b16 %v1096, %v1096
  %v1161 = vpack.c.b16 %v1097, %v1097
  %v1162 = vpack.c.b16 %v1098, %v1098
  %v1163 = vpack.c.b16 %v1099, %v1099
  %v1164 = vpack.c.b16 %v1100, %v1100
  %v1165 = vpack.c.b16 %v1101, %v1101
  %v1166 = vpack.c.b16 %v1102, %v1102
  %v1167 = vpack.c.b16 %v1103, %v1103
  %v1168 = vpack.c.b16 %v1104, %v1104
  %v1169 = vpack.c.b16 %v1105, %v1105
  %v1170 = vpack.c.b16 %v1106, %v1106
  %v1171 = vpack.c.b16 %v1107, %v1107
  %v1172 = vpack.c.b16 %v1108, %v1108
  %v1173 = vpack.c.b16 %v1109, %v1109
  %v1174 = vpack.c.b16 %v1110, %v1110
  %v1175 = vpack.c.b16 %v1111, %v1111
  %v1176 = vpack.c.b16 %v1112, %v1112
  %v1177 = vpack.c.b16 %v1113, %v1113
  %v1178 = vpack.c.b16 %v1114, %v1114
  %v1179 = vpack.c.b16 %v1115, %v1115
  %v1180 = vpack.c.b16 %v1116, %v1116
  %v1181 = vpack.c.b16 %v1117, %v1117
  %v1182 = vpack.c.b16 %v1118, %v1118
  %v1183 = vpack.c.b16 %v1119, %v1119
  %v1184 = vpack.c.b16 %v1120, %v1120
  %v1185 = vpack.c.b16 %v1121, %v1121
  %v1186 = vpack.c.b16 %v1122, %v1122
  %v1187 = vpack.c.b16 %v1123, %v1123
  %v1188 = vpack.c.b16 %v1124, %v1124
  %v1189 = vpack.c.b16 %v1125, %v1125
  %v1190 = vpack.c.b16 %v1126, %v1126
  %v1191 = vpack.c.b16 %v1127, %v1127
  %v1192 = vpack.c.b16 %v1128, %v1128
  %v1193 = vpack.c.b16 %v1129, %v1129
  %v1194 = vpack.c.b16 %v1130, %v1130
  %v1195 = vpack.c.b16 %v1131, %v1131
  %v1196 = vpack.c.b16 %v1132, %v1132
  %v1197 = vpack.c.b16 %v1133, %v1133
  %v1198 = vpack.c.b16 %v1134, %v1134
  %v1199 = vpack.c.b16 %v1135, %v1135
  %v1200 = vpack.c.b16 %v1136, %v1136
  %v1201 = vpack.c.b16 %v1137, %v1137
  %v1202 = vpack.c.b16 %v1138, %v1138
  %v1203 = vpack.c.b16 %v1139, %v1139
  %v1204 = vpack.c.b16 %v1140, %v1140
  %v1205 = vpack.c.b16 %v1141, %v1141
  %v1206 = vpack.c.b16 %v1142, %v1142
  %v1207 = vpack.c.b16 %v1143, %v1143
  %v1208 = vpack.c.b16 %v1144, %v1144
  %v1209 = vpack.c.b16 %v1145, %v1145
  %v1210 = vpack.c.b16 %v1146, %v1146
  %v1211 = vpack.c.b16 %v1147, %v1147
  %v1212 = vpack.c.b16 %v1148, %v1148
  %v1213 = vpack.c.b16 %v1149, %v1149
  %v1214 = vpack.c.b16 %v1150, %v1150
  %v1215 = vpack.c.b16 %v1151, %v1151
  %v1216 = vpack.c.b16 %v1152, %v1152
  %1281 = vst [vmem:[%s4] sm:$0xf] %v1153
  %1282 = vst [vmem:[%s4 + $0x4] sm:$0xf] %v1154
  %1283 = vst [vmem:[%s4 + $0x8] sm:$0xf] %v1155
  %1284 = vst [vmem:[%s4 + $0xc] sm:$0xf] %v1156
  %1285 = vst [vmem:[%s4 + $0x10] sm:$0xf] %v1157
  %1286 = vst [vmem:[%s4 + $0x14] sm:$0xf] %v1158
  %1287 = vst [vmem:[%s4 + $0x18] sm:$0xf] %v1159
  %1288 = vst [vmem:[%s4 + $0x1c] sm:$0xf] %v1160
  %1289 = vst [vmem:[%s4 + $0x20] sm:$0xf] %v1161
  %1290 = vst [vmem:[%s4 + $0x24] sm:$0xf] %v1162
  %1291 = vst [vmem:[%s4 + $0x28] sm:$0xf] %v1163
  %1292 = vst [vmem:[%s4 + $0x2c] sm:$0xf] %v1164
  %1293 = vst [vmem:[%s4 + $0x30] sm:$0xf] %v1165
  %1294 = vst [vmem:[%s4 + $0x34] sm:$0xf] %v1166
  %1295 = vst [vmem:[%s4 + $0x38] sm:$0xf] %v1167
  %1296 = vst [vmem:[%s4 + $0x3c] sm:$0xf] %v1168
  %1297 = vst [vmem:[%s4 + $0x40] sm:$0xf] %v1169
  %1298 = vst [vmem:[%s4 + $0x44] sm:$0xf] %v1170
  %1299 = vst [vmem:[%s4 + $0x48] sm:$0xf] %v1171
  %1300 = vst [vmem:[%s4 + $0x4c] sm:$0xf] %v1172
  %1301 = vst [vmem:[%s4 + $0x50] sm:$0xf] %v1173
  %1302 = vst [vmem:[%s4 + $0x54] sm:$0xf] %v1174
  %1303 = vst [vmem:[%s4 + $0x58] sm:$0xf] %v1175
  %1304 = vst [vmem:[%s4 + $0x5c] sm:$0xf] %v1176
  %1305 = vst [vmem:[%s4 + $0x60] sm:$0xf] %v1177
  %1306 = vst [vmem:[%s4 + $0x64] sm:$0xf] %v1178
  %1307 = vst [vmem:[%s4 + $0x68] sm:$0xf] %v1179
  %1308 = vst [vmem:[%s4 + $0x6c] sm:$0xf] %v1180
  %1309 = vst [vmem:[%s4 + $0x70] sm:$0xf] %v1181
  %1310 = vst [vmem:[%s4 + $0x74] sm:$0xf] %v1182
  %1311 = vst [vmem:[%s4 + $0x78] sm:$0xf] %v1183
  %1312 = vst [vmem:[%s4 + $0x7c] sm:$0xf] %v1184
  %1313 = vst [vmem:[%s4 + $0x80] sm:$0xf] %v1185
  %1314 = vst [vmem:[%s4 + $0x84] sm:$0xf] %v1186
  %1315 = vst [vmem:[%s4 + $0x88] sm:$0xf] %v1187
  %1316 = vst [vmem:[%s4 + $0x8c] sm:$0xf] %v1188
  %1317 = vst [vmem:[%s4 + $0x90] sm:$0xf] %v1189
  %1318 = vst [vmem:[%s4 + $0x94] sm:$0xf] %v1190
  %1319 = vst [vmem:[%s4 + $0x98] sm:$0xf] %v1191
  %1320 = vst [vmem:[%s4 + $0x9c] sm:$0xf] %v1192
  %1321 = vst [vmem:[%s4 + $0xa0] sm:$0xf] %v1193
  %1322 = vst [vmem:[%s4 + $0xa4] sm:$0xf] %v1194
  %1323 = vst [vmem:[%s4 + $0xa8] sm:$0xf] %v1195
  %1324 = vst [vmem:[%s4 + $0xac] sm:$0xf] %v1196
  %1325 = vst [vmem:[%s4 + $0xb0] sm:$0xf] %v1197
  %1326 = vst [vmem:[%s4 + $0xb4] sm:$0xf] %v1198
  %1327 = vst [vmem:[%s4 + $0xb8] sm:$0xf] %v1199
  %1328 = vst [vmem:[%s4 + $0xbc] sm:$0xf] %v1200
  %1329 = vst [vmem:[%s4 + $0xc0] sm:$0xf] %v1201
  %1330 = vst [vmem:[%s4 + $0xc4] sm:$0xf] %v1202
  %1331 = vst [vmem:[%s4 + $0xc8] sm:$0xf] %v1203
  %1332 = vst [vmem:[%s4 + $0xcc] sm:$0xf] %v1204
  %1333 = vst [vmem:[%s4 + $0xd0] sm:$0xf] %v1205
  %1334 = vst [vmem:[%s4 + $0xd4] sm:$0xf] %v1206
  %1335 = vst [vmem:[%s4 + $0xd8] sm:$0xf] %v1207
  %1336 = vst [vmem:[%s4 + $0xdc] sm:$0xf] %v1208
  %1337 = vst [vmem:[%s4 + $0xe0] sm:$0xf] %v1209
  %1338 = vst [vmem:[%s4 + $0xe4] sm:$0xf] %v1210
  %1339 = vst [vmem:[%s4 + $0xe8] sm:$0xf] %v1211
  %1340 = vst [vmem:[%s4 + $0xec] sm:$0xf] %v1212
  %1341 = vst [vmem:[%s4 + $0xf0] sm:$0xf] %v1213
  %1342 = vst [vmem:[%s4 + $0xf4] sm:$0xf] %v1214
  %1343 = vst [vmem:[%s4 + $0xf8] sm:$0xf] %v1215
  %1344 = vst [vmem:[%s4 + $0xfc] sm:$0xf] %v1216
  // Predicated region
  $region18: #{double_conv_forward.5} parent=0 // pred_check
    _
  $region19: #{double_conv_forward.5} parent=0 // pred_check_branch
    %1346 = sbr.rel (0) target = $region21
  $region20: #{double_conv_forward.5} parent=0 // pred_region
    _
  $region21: #{double_conv_forward.5} parent=0 // pred_fallthru
    _
  // Predicated region
  $region22: #{double_conv_forward.5} parent=0 // pred_check
    _
  $region23: #{double_conv_forward.5} parent=0 // pred_check_branch
    %1348 = sbr.rel (0) target = $region25
  $region24: #{double_conv_forward.5} parent=0 // pred_region
    _
  $region25: #{double_conv_forward.5} parent=0 // pred_fallthru
    _

// kernel: double_conv_forward.6
$region0: #{double_conv_forward.6}
  #allocation0 [shape = 'u32[]', space=smem, size = 0x4, offset = 0x4, fixed_abs, tag = 'smem constant byte address 0x4 - core index']
  #allocation1 [shape = 'u32[144,128]{1,0:T(1,128)}', space=vmem, size = 0x12000, scoped, tag = 'internal scratch']
  %s0 = inlined_call_operand.vmem [shape: bf16[512,384], index: 0, kind: input, shape index: {}]
  %s1 = inlined_call_operand.vmem [shape: bf16[384,128], index: 1, kind: input, shape index: {}]
  %s2 = inlined_call_operand.vmem [shape: f32[1,1,128], index: 2, kind: output, shape index: {0}]
  %s3 = inlined_call_operand.vmem [shape: f32[1,1,128], index: 3, kind: output, shape index: {1}]
  %4 = xla_tuple %s2, %s3
  %s5 = sld [smem:[#allocation0]]
  $region26: #{double_conv_forward.6} parent=0
    _
  %s7 = ssub.s32 1, %s5
  %s8 = scalar_select 0, %s7, %s5
  // Predicated region
  $region2: #{double_conv_forward.6} parent=0 // pred_check
    _
  $region3: #{double_conv_forward.6} parent=0 // pred_check_branch
    %10 = sbr.rel (0) target = $region5
  $region4: #{double_conv_forward.6} parent=0 // pred_region
    _
  $region5: #{double_conv_forward.6} parent=0 // pred_fallthru
    _
  // Predicated region
  $region6: #{double_conv_forward.6} parent=0 // pred_check
    _
  $region7: #{double_conv_forward.6} parent=0 // pred_check_branch
    %12 = sbr.rel (0) target = $region9
  $region8: #{double_conv_forward.6} parent=0 // pred_region
    _
  $region9: #{double_conv_forward.6} parent=0 // pred_fallthru
    _
  %v14 = vld [vmem:[%s0] sm:$0xff]
  %v15 = vld [vmem:[%s0 + $0x8] sm:$0xf]
  %v16 = vld [vmem:[%s0 + $0xc] sm:$0xff]
  %v17 = vld [vmem:[%s0 + $0x14] sm:$0xf]
  %v18 = vld [vmem:[%s0 + $0x18] sm:$0xff]
  %v19 = vld [vmem:[%s0 + $0x20] sm:$0xf]
  %v20 = vld [vmem:[%s0 + $0x24] sm:$0xff]
  %v21 = vld [vmem:[%s0 + $0x2c] sm:$0xf]
  %v22 = vld [vmem:[%s0 + $0x30] sm:$0xff]
  %v23 = vld [vmem:[%s0 + $0x38] sm:$0xf]
  %v24 = vld [vmem:[%s0 + $0x3c] sm:$0xff]
  %v25 = vld [vmem:[%s0 + $0x44] sm:$0xf]
  %v26 = vld [vmem:[%s0 + $0x48] sm:$0xff]
  %v27 = vld [vmem:[%s0 + $0x50] sm:$0xf]
  %v28 = vld [vmem:[%s0 + $0x54] sm:$0xff]
  %v29 = vld [vmem:[%s0 + $0x5c] sm:$0xf]
  %v30 = vld [vmem:[%s0 + $0x60] sm:$0xff]
  %v31 = vld [vmem:[%s0 + $0x68] sm:$0xf]
  %v32 = vld [vmem:[%s0 + $0x6c] sm:$0xff]
  %v33 = vld [vmem:[%s0 + $0x74] sm:$0xf]
  %v34 = vld [vmem:[%s0 + $0x78] sm:$0xff]
  %v35 = vld [vmem:[%s0 + $0x80] sm:$0xf]
  %v36 = vld [vmem:[%s0 + $0x84] sm:$0xff]
  %v37 = vld [vmem:[%s0 + $0x8c] sm:$0xf]
  %v38 = vld [vmem:[%s0 + $0x90] sm:$0xff]
  %v39 = vld [vmem:[%s0 + $0x98] sm:$0xf]
  %v40 = vld [vmem:[%s0 + $0x9c] sm:$0xff]
  %v41 = vld [vmem:[%s0 + $0xa4] sm:$0xf]
  %v42 = vld [vmem:[%s0 + $0xa8] sm:$0xff]
  %v43 = vld [vmem:[%s0 + $0xb0] sm:$0xf]
  %v44 = vld [vmem:[%s0 + $0xb4] sm:$0xff]
  %v45 = vld [vmem:[%s0 + $0xbc] sm:$0xf]
  %v46 = vld [vmem:[%s0 + $0xc0] sm:$0xff]
  %v47 = vld [vmem:[%s0 + $0xc8] sm:$0xf]
  %v48 = vld [vmem:[%s0 + $0xcc] sm:$0xff]
  %v49 = vld [vmem:[%s0 + $0xd4] sm:$0xf]
  %v50 = vld [vmem:[%s0 + $0xd8] sm:$0xff]
  %v51 = vld [vmem:[%s0 + $0xe0] sm:$0xf]
  %v52 = vld [vmem:[%s0 + $0xe4] sm:$0xff]
  %v53 = vld [vmem:[%s0 + $0xec] sm:$0xf]
  %v54 = vld [vmem:[%s0 + $0xf0] sm:$0xff]
  %v55 = vld [vmem:[%s0 + $0xf8] sm:$0xf]
  %v56 = vld [vmem:[%s0 + $0xfc] sm:$0xff]
  %v57 = vld [vmem:[%s0 + $0x104] sm:$0xf]
  %v58 = vld [vmem:[%s0 + $0x108] sm:$0xff]
  %v59 = vld [vmem:[%s0 + $0x110] sm:$0xf]
  %v60 = vld [vmem:[%s0 + $0x114] sm:$0xff]
  %v61 = vld [vmem:[%s0 + $0x11c] sm:$0xf]
  %v62 = vld [vmem:[%s0 + $0x120] sm:$0xff]
  %v63 = vld [vmem:[%s0 + $0x128] sm:$0xf]
  %v64 = vld [vmem:[%s0 + $0x12c] sm:$0xff]
  %v65 = vld [vmem:[%s0 + $0x134] sm:$0xf]
  %v66 = vld [vmem:[%s0 + $0x138] sm:$0xff]
  %v67 = vld [vmem:[%s0 + $0x140] sm:$0xf]
  %v68 = vld [vmem:[%s0 + $0x144] sm:$0xff]
  %v69 = vld [vmem:[%s0 + $0x14c] sm:$0xf]
  %v70 = vld [vmem:[%s0 + $0x150] sm:$0xff]
  %v71 = vld [vmem:[%s0 + $0x158] sm:$0xf]
  %v72 = vld [vmem:[%s0 + $0x15c] sm:$0xff]
  %v73 = vld [vmem:[%s0 + $0x164] sm:$0xf]
  %v74 = vld [vmem:[%s0 + $0x168] sm:$0xff]
  %v75 = vld [vmem:[%s0 + $0x170] sm:$0xf]
  %v76 = vld [vmem:[%s0 + $0x174] sm:$0xff]
  %v77 = vld [vmem:[%s0 + $0x17c] sm:$0xf]
  %v78 = vld [vmem:[%s0 + $0x180] sm:$0xff]
  %v79 = vld [vmem:[%s0 + $0x188] sm:$0xf]
  %v80 = vld [vmem:[%s0 + $0x18c] sm:$0xff]
  %v81 = vld [vmem:[%s0 + $0x194] sm:$0xf]
  %v82 = vld [vmem:[%s0 + $0x198] sm:$0xff]
  %v83 = vld [vmem:[%s0 + $0x1a0] sm:$0xf]
  %v84 = vld [vmem:[%s0 + $0x1a4] sm:$0xff]
  %v85 = vld [vmem:[%s0 + $0x1ac] sm:$0xf]
  %v86 = vld [vmem:[%s0 + $0x1b0] sm:$0xff]
  %v87 = vld [vmem:[%s0 + $0x1b8] sm:$0xf]
  %v88 = vld [vmem:[%s0 + $0x1bc] sm:$0xff]
  %v89 = vld [vmem:[%s0 + $0x1c4] sm:$0xf]
  %v90 = vld [vmem:[%s0 + $0x1c8] sm:$0xff]
  %v91 = vld [vmem:[%s0 + $0x1d0] sm:$0xf]
  %v92 = vld [vmem:[%s0 + $0x1d4] sm:$0xff]
  %v93 = vld [vmem:[%s0 + $0x1dc] sm:$0xf]
  %v94 = vld [vmem:[%s0 + $0x1e0] sm:$0xff]
  %v95 = vld [vmem:[%s0 + $0x1e8] sm:$0xf]
  %v96 = vld [vmem:[%s0 + $0x1ec] sm:$0xff]
  %v97 = vld [vmem:[%s0 + $0x1f4] sm:$0xf]
  %v98 = vld [vmem:[%s0 + $0x1f8] sm:$0xff]
  %v99 = vld [vmem:[%s0 + $0x200] sm:$0xf]
  %v100 = vld [vmem:[%s0 + $0x204] sm:$0xff]
  %v101 = vld [vmem:[%s0 + $0x20c] sm:$0xf]
  %v102 = vld [vmem:[%s0 + $0x210] sm:$0xff]
  %v103 = vld [vmem:[%s0 + $0x218] sm:$0xf]
  %v104 = vld [vmem:[%s0 + $0x21c] sm:$0xff]
  %v105 = vld [vmem:[%s0 + $0x224] sm:$0xf]
  %v106 = vld [vmem:[%s0 + $0x228] sm:$0xff]
  %v107 = vld [vmem:[%s0 + $0x230] sm:$0xf]
  %v108 = vld [vmem:[%s0 + $0x234] sm:$0xff]
  %v109 = vld [vmem:[%s0 + $0x23c] sm:$0xf]
  %v110 = vld [vmem:[%s0 + $0x240] sm:$0xff]
  %v111 = vld [vmem:[%s0 + $0x248] sm:$0xf]
  %v112 = vld [vmem:[%s0 + $0x24c] sm:$0xff]
  %v113 = vld [vmem:[%s0 + $0x254] sm:$0xf]
  %v114 = vld [vmem:[%s0 + $0x258] sm:$0xff]
  %v115 = vld [vmem:[%s0 + $0x260] sm:$0xf]
  %v116 = vld [vmem:[%s0 + $0x264] sm:$0xff]
  %v117 = vld [vmem:[%s0 + $0x26c] sm:$0xf]
  %v118 = vld [vmem:[%s0 + $0x270] sm:$0xff]
  %v119 = vld [vmem:[%s0 + $0x278] sm:$0xf]
  %v120 = vld [vmem:[%s0 + $0x27c] sm:$0xff]
  %v121 = vld [vmem:[%s0 + $0x284] sm:$0xf]
  %v122 = vld [vmem:[%s0 + $0x288] sm:$0xff]
  %v123 = vld [vmem:[%s0 + $0x290] sm:$0xf]
  %v124 = vld [vmem:[%s0 + $0x294] sm:$0xff]
  %v125 = vld [vmem:[%s0 + $0x29c] sm:$0xf]
  %v126 = vld [vmem:[%s0 + $0x2a0] sm:$0xff]
  %v127 = vld [vmem:[%s0 + $0x2a8] sm:$0xf]
  %v128 = vld [vmem:[%s0 + $0x2ac] sm:$0xff]
  %v129 = vld [vmem:[%s0 + $0x2b4] sm:$0xf]
  %v130 = vld [vmem:[%s0 + $0x2b8] sm:$0xff]
  %v131 = vld [vmem:[%s0 + $0x2c0] sm:$0xf]
  %v132 = vld [vmem:[%s0 + $0x2c4] sm:$0xff]
  %v133 = vld [vmem:[%s0 + $0x2cc] sm:$0xf]
  %v134 = vld [vmem:[%s0 + $0x2d0] sm:$0xff]
  %v135 = vld [vmem:[%s0 + $0x2d8] sm:$0xf]
  %v136 = vld [vmem:[%s0 + $0x2dc] sm:$0xff]
  %v137 = vld [vmem:[%s0 + $0x2e4] sm:$0xf]
  %v138 = vld [vmem:[%s0 + $0x2e8] sm:$0xff]
  %v139 = vld [vmem:[%s0 + $0x2f0] sm:$0xf]
  %v140 = vld [vmem:[%s0 + $0x2f4] sm:$0xff]
  %v141 = vld [vmem:[%s0 + $0x2fc] sm:$0xf]
  %v142 = vld [vmem:[%s1] sm:$0xf]
  %v143 = vld [vmem:[%s1 + $0x4] sm:$0xf]
  %v144 = vld [vmem:[%s1 + $0x8] sm:$0xf]
  %v145 = vld [vmem:[%s1 + $0xc] sm:$0xf]
  %v146 = vld [vmem:[%s1 + $0x10] sm:$0xf]
  %v147 = vld [vmem:[%s1 + $0x14] sm:$0xf]
  %v148 = vld [vmem:[%s1 + $0x18] sm:$0xf]
  %v149 = vld [vmem:[%s1 + $0x1c] sm:$0xf]
  %v150 = vld [vmem:[%s1 + $0x20] sm:$0xf]
  %v151 = vld [vmem:[%s1 + $0x24] sm:$0xf]
  %v152 = vld [vmem:[%s1 + $0x28] sm:$0xf]
  %v153 = vld [vmem:[%s1 + $0x2c] sm:$0xf]
  %v154 = vld [vmem:[%s1 + $0x30] sm:$0xf]
  %v155 = vld [vmem:[%s1 + $0x34] sm:$0xf]
  %v156 = vld [vmem:[%s1 + $0x38] sm:$0xf]
  %v157 = vld [vmem:[%s1 + $0x3c] sm:$0xf]
  %v158 = vld [vmem:[%s1 + $0x40] sm:$0xf]
  %v159 = vld [vmem:[%s1 + $0x44] sm:$0xf]
  %v160 = vld [vmem:[%s1 + $0x48] sm:$0xf]
  %v161 = vld [vmem:[%s1 + $0x4c] sm:$0xf]
  %v162 = vld [vmem:[%s1 + $0x50] sm:$0xf]
  %v163 = vld [vmem:[%s1 + $0x54] sm:$0xf]
  %v164 = vld [vmem:[%s1 + $0x58] sm:$0xf]
  %v165 = vld [vmem:[%s1 + $0x5c] sm:$0xf]
  %v166 = vld [vmem:[%s1 + $0x60] sm:$0xf]
  %v167 = vld [vmem:[%s1 + $0x64] sm:$0xf]
  %v168 = vld [vmem:[%s1 + $0x68] sm:$0xf]
  %v169 = vld [vmem:[%s1 + $0x6c] sm:$0xf]
  %v170 = vld [vmem:[%s1 + $0x70] sm:$0xf]
  %v171 = vld [vmem:[%s1 + $0x74] sm:$0xf]
  %v172 = vld [vmem:[%s1 + $0x78] sm:$0xf]
  %v173 = vld [vmem:[%s1 + $0x7c] sm:$0xf]
  %v174 = vld [vmem:[%s1 + $0x80] sm:$0xf]
  %v175 = vld [vmem:[%s1 + $0x84] sm:$0xf]
  %v176 = vld [vmem:[%s1 + $0x88] sm:$0xf]
  %v177 = vld [vmem:[%s1 + $0x8c] sm:$0xf]
  %v178 = vld [vmem:[%s1 + $0x90] sm:$0xf]
  %v179 = vld [vmem:[%s1 + $0x94] sm:$0xf]
  %v180 = vld [vmem:[%s1 + $0x98] sm:$0xf]
  %v181 = vld [vmem:[%s1 + $0x9c] sm:$0xf]
  %v182 = vld [vmem:[%s1 + $0xa0] sm:$0xf]
  %v183 = vld [vmem:[%s1 + $0xa4] sm:$0xf]
  %v184 = vld [vmem:[%s1 + $0xa8] sm:$0xf]
  %v185 = vld [vmem:[%s1 + $0xac] sm:$0xf]
  %v186 = vld [vmem:[%s1 + $0xb0] sm:$0xf]
  %v187 = vld [vmem:[%s1 + $0xb4] sm:$0xf]
  %v188 = vld [vmem:[%s1 + $0xb8] sm:$0xf]
  %v189 = vld [vmem:[%s1 + $0xbc] sm:$0xf]
  %v318 = vunpack.c.l.b16 %v14
  %v319 = vunpack.c.h.b16 %v14
  %v320 = vunpack.c.l.b16 %v15
  %v321 = vunpack.c.l.b16 %v16
  %v322 = vunpack.c.h.b16 %v16
  %v323 = vunpack.c.l.b16 %v17
  %v324 = vunpack.c.l.b16 %v18
  %v325 = vunpack.c.h.b16 %v18
  %v326 = vunpack.c.l.b16 %v19
  %v327 = vunpack.c.l.b16 %v20
  %v328 = vunpack.c.h.b16 %v20
  %v329 = vunpack.c.l.b16 %v21
  %v330 = vunpack.c.l.b16 %v22
  %v331 = vunpack.c.h.b16 %v22
  %v332 = vunpack.c.l.b16 %v23
  %v333 = vunpack.c.l.b16 %v24
  %v334 = vunpack.c.h.b16 %v24
  %v335 = vunpack.c.l.b16 %v25
  %v336 = vunpack.c.l.b16 %v26
  %v337 = vunpack.c.h.b16 %v26
  %v338 = vunpack.c.l.b16 %v27
  %v339 = vunpack.c.l.b16 %v28
  %v340 = vunpack.c.h.b16 %v28
  %v341 = vunpack.c.l.b16 %v29
  %v342 = vunpack.c.l.b16 %v30
  %v343 = vunpack.c.h.b16 %v30
  %v344 = vunpack.c.l.b16 %v31
  %v345 = vunpack.c.l.b16 %v32
  %v346 = vunpack.c.h.b16 %v32
  %v347 = vunpack.c.l.b16 %v33
  %v348 = vunpack.c.l.b16 %v34
  %v349 = vunpack.c.h.b16 %v34
  %v350 = vunpack.c.l.b16 %v35
  %v351 = vunpack.c.l.b16 %v36
  %v352 = vunpack.c.h.b16 %v36
  %v353 = vunpack.c.l.b16 %v37
  %v354 = vunpack.c.l.b16 %v38
  %v355 = vunpack.c.h.b16 %v38
  %v356 = vunpack.c.l.b16 %v39
  %v357 = vunpack.c.l.b16 %v40
  %v358 = vunpack.c.h.b16 %v40
  %v359 = vunpack.c.l.b16 %v41
  %v360 = vunpack.c.l.b16 %v42
  %v361 = vunpack.c.h.b16 %v42
  %v362 = vunpack.c.l.b16 %v43
  %v363 = vunpack.c.l.b16 %v44
  %v364 = vunpack.c.h.b16 %v44
  %v365 = vunpack.c.l.b16 %v45
  %v366 = vunpack.c.l.b16 %v46
  %v367 = vunpack.c.h.b16 %v46
  %v368 = vunpack.c.l.b16 %v47
  %v369 = vunpack.c.l.b16 %v48
  %v370 = vunpack.c.h.b16 %v48
  %v371 = vunpack.c.l.b16 %v49
  %v372 = vunpack.c.l.b16 %v50
  %v373 = vunpack.c.h.b16 %v50
  %v374 = vunpack.c.l.b16 %v51
  %v375 = vunpack.c.l.b16 %v52
  %v376 = vunpack.c.h.b16 %v52
  %v377 = vunpack.c.l.b16 %v53
  %v378 = vunpack.c.l.b16 %v54
  %v379 = vunpack.c.h.b16 %v54
  %v380 = vunpack.c.l.b16 %v55
  %v381 = vunpack.c.l.b16 %v56
  %v382 = vunpack.c.h.b16 %v56
  %v383 = vunpack.c.l.b16 %v57
  %v384 = vunpack.c.l.b16 %v58
  %v385 = vunpack.c.h.b16 %v58
  %v386 = vunpack.c.l.b16 %v59
  %v387 = vunpack.c.l.b16 %v60
  %v388 = vunpack.c.h.b16 %v60
  %v389 = vunpack.c.l.b16 %v61
  %v390 = vunpack.c.l.b16 %v62
  %v391 = vunpack.c.h.b16 %v62
  %v392 = vunpack.c.l.b16 %v63
  %v393 = vunpack.c.l.b16 %v64
  %v394 = vunpack.c.h.b16 %v64
  %v395 = vunpack.c.l.b16 %v65
  %v396 = vunpack.c.l.b16 %v66
  %v397 = vunpack.c.h.b16 %v66
  %v398 = vunpack.c.l.b16 %v67
  %v399 = vunpack.c.l.b16 %v68
  %v400 = vunpack.c.h.b16 %v68
  %v401 = vunpack.c.l.b16 %v69
  %v402 = vunpack.c.l.b16 %v70
  %v403 = vunpack.c.h.b16 %v70
  %v404 = vunpack.c.l.b16 %v71
  %v405 = vunpack.c.l.b16 %v72
  %v406 = vunpack.c.h.b16 %v72
  %v407 = vunpack.c.l.b16 %v73
  %v408 = vunpack.c.l.b16 %v74
  %v409 = vunpack.c.h.b16 %v74
  %v410 = vunpack.c.l.b16 %v75
  %v411 = vunpack.c.l.b16 %v76
  %v412 = vunpack.c.h.b16 %v76
  %v413 = vunpack.c.l.b16 %v77
  %v414 = vunpack.c.l.b16 %v78
  %v415 = vunpack.c.h.b16 %v78
  %v416 = vunpack.c.l.b16 %v79
  %v417 = vunpack.c.l.b16 %v80
  %v418 = vunpack.c.h.b16 %v80
  %v419 = vunpack.c.l.b16 %v81
  %v420 = vunpack.c.l.b16 %v82
  %v421 = vunpack.c.h.b16 %v82
  %v422 = vunpack.c.l.b16 %v83
  %v423 = vunpack.c.l.b16 %v84
  %v424 = vunpack.c.h.b16 %v84
  %v425 = vunpack.c.l.b16 %v85
  %v426 = vunpack.c.l.b16 %v86
  %v427 = vunpack.c.h.b16 %v86
  %v428 = vunpack.c.l.b16 %v87
  %v429 = vunpack.c.l.b16 %v88
  %v430 = vunpack.c.h.b16 %v88
  %v431 = vunpack.c.l.b16 %v89
  %v432 = vunpack.c.l.b16 %v90
  %v433 = vunpack.c.h.b16 %v90
  %v434 = vunpack.c.l.b16 %v91
  %v435 = vunpack.c.l.b16 %v92
  %v436 = vunpack.c.h.b16 %v92
  %v437 = vunpack.c.l.b16 %v93
  %v438 = vunpack.c.l.b16 %v94
  %v439 = vunpack.c.h.b16 %v94
  %v440 = vunpack.c.l.b16 %v95
  %v441 = vunpack.c.l.b16 %v96
  %v442 = vunpack.c.h.b16 %v96
  %v443 = vunpack.c.l.b16 %v97
  %v444 = vunpack.c.l.b16 %v98
  %v445 = vunpack.c.h.b16 %v98
  %v446 = vunpack.c.l.b16 %v99
  %v447 = vunpack.c.l.b16 %v100
  %v448 = vunpack.c.h.b16 %v100
  %v449 = vunpack.c.l.b16 %v101
  %v450 = vunpack.c.l.b16 %v102
  %v451 = vunpack.c.h.b16 %v102
  %v452 = vunpack.c.l.b16 %v103
  %v453 = vunpack.c.l.b16 %v104
  %v454 = vunpack.c.h.b16 %v104
  %v455 = vunpack.c.l.b16 %v105
  %v456 = vunpack.c.l.b16 %v106
  %v457 = vunpack.c.h.b16 %v106
  %v458 = vunpack.c.l.b16 %v107
  %v459 = vunpack.c.l.b16 %v108
  %v460 = vunpack.c.h.b16 %v108
  %v461 = vunpack.c.l.b16 %v109
  %v462 = vunpack.c.l.b16 %v110
  %v463 = vunpack.c.h.b16 %v110
  %v464 = vunpack.c.l.b16 %v111
  %v465 = vunpack.c.l.b16 %v112
  %v466 = vunpack.c.h.b16 %v112
  %v467 = vunpack.c.l.b16 %v113
  %v468 = vunpack.c.l.b16 %v114
  %v469 = vunpack.c.h.b16 %v114
  %v470 = vunpack.c.l.b16 %v115
  %v471 = vunpack.c.l.b16 %v116
  %v472 = vunpack.c.h.b16 %v116
  %v473 = vunpack.c.l.b16 %v117
  %v474 = vunpack.c.l.b16 %v118
  %v475 = vunpack.c.h.b16 %v118
  %v476 = vunpack.c.l.b16 %v119
  %v477 = vunpack.c.l.b16 %v120
  %v478 = vunpack.c.h.b16 %v120
  %v479 = vunpack.c.l.b16 %v121
  %v480 = vunpack.c.l.b16 %v122
  %v481 = vunpack.c.h.b16 %v122
  %v482 = vunpack.c.l.b16 %v123
  %v483 = vunpack.c.l.b16 %v124
  %v484 = vunpack.c.h.b16 %v124
  %v485 = vunpack.c.l.b16 %v125
  %v486 = vunpack.c.l.b16 %v126
  %v487 = vunpack.c.h.b16 %v126
  %v488 = vunpack.c.l.b16 %v127
  %v489 = vunpack.c.l.b16 %v128
  %v490 = vunpack.c.h.b16 %v128
  %v491 = vunpack.c.l.b16 %v129
  %v492 = vunpack.c.l.b16 %v130
  %v493 = vunpack.c.h.b16 %v130
  %v494 = vunpack.c.l.b16 %v131
  %v495 = vunpack.c.l.b16 %v132
  %v496 = vunpack.c.h.b16 %v132
  %v497 = vunpack.c.l.b16 %v133
  %v498 = vunpack.c.l.b16 %v134
  %v499 = vunpack.c.h.b16 %v134
  %v500 = vunpack.c.l.b16 %v135
  %v501 = vunpack.c.l.b16 %v136
  %v502 = vunpack.c.h.b16 %v136
  %v503 = vunpack.c.l.b16 %v137
  %v504 = vunpack.c.l.b16 %v138
  %v505 = vunpack.c.h.b16 %v138
  %v506 = vunpack.c.l.b16 %v139
  %v507 = vunpack.c.l.b16 %v140
  %v508 = vunpack.c.h.b16 %v140
  %v509 = vunpack.c.l.b16 %v141
  %v510 = vpack.c.b16 %v321, %v318
  %v511 = vpack.c.b16 %v322, %v319
  %v512 = vpack.c.b16 %v323, %v320
  %v513 = vpack.c.b16 %v327, %v324
  %v514 = vpack.c.b16 %v328, %v325
  %v515 = vpack.c.b16 %v329, %v326
  %v516 = vpack.c.b16 %v333, %v330
  %v517 = vpack.c.b16 %v334, %v331
  %v518 = vpack.c.b16 %v335, %v332
  %v519 = vpack.c.b16 %v339, %v336
  %v520 = vpack.c.b16 %v340, %v337
  %v521 = vpack.c.b16 %v341, %v338
  %v522 = vpack.c.b16 %v345, %v342
  %v523 = vpack.c.b16 %v346, %v343
  %v524 = vpack.c.b16 %v347, %v344
  %v525 = vpack.c.b16 %v351, %v348
  %v526 = vpack.c.b16 %v352, %v349
  %v527 = vpack.c.b16 %v353, %v350
  %v528 = vpack.c.b16 %v357, %v354
  %v529 = vpack.c.b16 %v358, %v355
  %v530 = vpack.c.b16 %v359, %v356
  %v531 = vpack.c.b16 %v363, %v360
  %v532 = vpack.c.b16 %v364, %v361
  %v533 = vpack.c.b16 %v365, %v362
  %v534 = vpack.c.b16 %v369, %v366
  %v535 = vpack.c.b16 %v370, %v367
  %v536 = vpack.c.b16 %v371, %v368
  %v537 = vpack.c.b16 %v375, %v372
  %v538 = vpack.c.b16 %v376, %v373
  %v539 = vpack.c.b16 %v377, %v374
  %v540 = vpack.c.b16 %v381, %v378
  %v541 = vpack.c.b16 %v382, %v379
  %v542 = vpack.c.b16 %v383, %v380
  %v543 = vpack.c.b16 %v387, %v384
  %v544 = vpack.c.b16 %v388, %v385
  %v545 = vpack.c.b16 %v389, %v386
  %v546 = vpack.c.b16 %v393, %v390
  %v547 = vpack.c.b16 %v394, %v391
  %v548 = vpack.c.b16 %v395, %v392
  %v549 = vpack.c.b16 %v399, %v396
  %v550 = vpack.c.b16 %v400, %v397
  %v551 = vpack.c.b16 %v401, %v398
  %v552 = vpack.c.b16 %v405, %v402
  %v553 = vpack.c.b16 %v406, %v403
  %v554 = vpack.c.b16 %v407, %v404
  %v555 = vpack.c.b16 %v411, %v408
  %v556 = vpack.c.b16 %v412, %v409
  %v557 = vpack.c.b16 %v413, %v410
  %v558 = vpack.c.b16 %v417, %v414
  %v559 = vpack.c.b16 %v418, %v415
  %v560 = vpack.c.b16 %v419, %v416
  %v561 = vpack.c.b16 %v423, %v420
  %v562 = vpack.c.b16 %v424, %v421
  %v563 = vpack.c.b16 %v425, %v422
  %v564 = vpack.c.b16 %v429, %v426
  %v565 = vpack.c.b16 %v430, %v427
  %v566 = vpack.c.b16 %v431, %v428
  %v567 = vpack.c.b16 %v435, %v432
  %v568 = vpack.c.b16 %v436, %v433
  %v569 = vpack.c.b16 %v437, %v434
  %v570 = vpack.c.b16 %v441, %v438
  %v571 = vpack.c.b16 %v442, %v439
  %v572 = vpack.c.b16 %v443, %v440
  %v573 = vpack.c.b16 %v447, %v444
  %v574 = vpack.c.b16 %v448, %v445
  %v575 = vpack.c.b16 %v449, %v446
  %v576 = vpack.c.b16 %v453, %v450
  %v577 = vpack.c.b16 %v454, %v451
  %v578 = vpack.c.b16 %v455, %v452
  %v579 = vpack.c.b16 %v459, %v456
  %v580 = vpack.c.b16 %v460, %v457
  %v581 = vpack.c.b16 %v461, %v458
  %v582 = vpack.c.b16 %v465, %v462
  %v583 = vpack.c.b16 %v466, %v463
  %v584 = vpack.c.b16 %v467, %v464
  %v585 = vpack.c.b16 %v471, %v468
  %v586 = vpack.c.b16 %v472, %v469
  %v587 = vpack.c.b16 %v473, %v470
  %v588 = vpack.c.b16 %v477, %v474
  %v589 = vpack.c.b16 %v478, %v475
  %v590 = vpack.c.b16 %v479, %v476
  %v591 = vpack.c.b16 %v483, %v480
  %v592 = vpack.c.b16 %v484, %v481
  %v593 = vpack.c.b16 %v485, %v482
  %v594 = vpack.c.b16 %v489, %v486
  %v595 = vpack.c.b16 %v490, %v487
  %v596 = vpack.c.b16 %v491, %v488
  %v597 = vpack.c.b16 %v495, %v492
  %v598 = vpack.c.b16 %v496, %v493
  %v599 = vpack.c.b16 %v497, %v494
  %v600 = vpack.c.b16 %v501, %v498
  %v601 = vpack.c.b16 %v502, %v499
  %v602 = vpack.c.b16 %v503, %v500
  %v603 = vpack.c.b16 %v507, %v504
  %v604 = vpack.c.b16 %v508, %v505
  %v605 = vpack.c.b16 %v509, %v506
  %v750 = vunpack.c.l.b16 %v142
  %v751 = vunpack.c.l.b16 %v143
  %v752 = vunpack.c.l.b16 %v144
  %v753 = vunpack.c.l.b16 %v145
  %v754 = vunpack.c.l.b16 %v146
  %v755 = vunpack.c.l.b16 %v147
  %v756 = vunpack.c.l.b16 %v148
  %v757 = vunpack.c.l.b16 %v149
  %v758 = vunpack.c.l.b16 %v150
  %v759 = vunpack.c.l.b16 %v151
  %v760 = vunpack.c.l.b16 %v152
  %v761 = vunpack.c.l.b16 %v153
  %v762 = vunpack.c.l.b16 %v154
  %v763 = vunpack.c.l.b16 %v155
  %v764 = vunpack.c.l.b16 %v156
  %v765 = vunpack.c.l.b16 %v157
  %v766 = vunpack.c.l.b16 %v158
  %v767 = vunpack.c.l.b16 %v159
  %v768 = vunpack.c.l.b16 %v160
  %v769 = vunpack.c.l.b16 %v161
  %v770 = vunpack.c.l.b16 %v162
  %v771 = vunpack.c.l.b16 %v163
  %v772 = vunpack.c.l.b16 %v164
  %v773 = vunpack.c.l.b16 %v165
  %v774 = vunpack.c.l.b16 %v166
  %v775 = vunpack.c.l.b16 %v167
  %v776 = vunpack.c.l.b16 %v168
  %v777 = vunpack.c.l.b16 %v169
  %v778 = vunpack.c.l.b16 %v170
  %v779 = vunpack.c.l.b16 %v171
  %v780 = vunpack.c.l.b16 %v172
  %v781 = vunpack.c.l.b16 %v173
  %v782 = vunpack.c.l.b16 %v174
  %v783 = vunpack.c.l.b16 %v175
  %v784 = vunpack.c.l.b16 %v176
  %v785 = vunpack.c.l.b16 %v177
  %v786 = vunpack.c.l.b16 %v178
  %v787 = vunpack.c.l.b16 %v179
  %v788 = vunpack.c.l.b16 %v180
  %v789 = vunpack.c.l.b16 %v181
  %v790 = vunpack.c.l.b16 %v182
  %v791 = vunpack.c.l.b16 %v183
  %v792 = vunpack.c.l.b16 %v184
  %v793 = vunpack.c.l.b16 %v185
  %v794 = vunpack.c.l.b16 %v186
  %v795 = vunpack.c.l.b16 %v187
  %v796 = vunpack.c.l.b16 %v188
  %v797 = vunpack.c.l.b16 %v189
  %v798 = vpack.c.b16 %v751, %v750
  %v799 = vpack.c.b16 %v753, %v752
  %v800 = vpack.c.b16 %v755, %v754
  %v801 = vpack.c.b16 %v757, %v756
  %v802 = vpack.c.b16 %v759, %v758
  %v803 = vpack.c.b16 %v761, %v760
  %v804 = vpack.c.b16 %v763, %v762
  %v805 = vpack.c.b16 %v765, %v764
  %v806 = vpack.c.b16 %v767, %v766
  %v807 = vpack.c.b16 %v769, %v768
  %v808 = vpack.c.b16 %v771, %v770
  %v809 = vpack.c.b16 %v773, %v772
  %v810 = vpack.c.b16 %v775, %v774
  %v811 = vpack.c.b16 %v777, %v776
  %v812 = vpack.c.b16 %v779, %v778
  %v813 = vpack.c.b16 %v781, %v780
  %v814 = vpack.c.b16 %v783, %v782
  %v815 = vpack.c.b16 %v785, %v784
  %v816 = vpack.c.b16 %v787, %v786
  %v817 = vpack.c.b16 %v789, %v788
  %v818 = vpack.c.b16 %v791, %v790
  %v819 = vpack.c.b16 %v793, %v792
  %v820 = vpack.c.b16 %v795, %v794
  %v821 = vpack.c.b16 %v797, %v796
  %846 = vmatprep.subr.bf16.mxu0 0
  %847 = vmatpush1.bf16.msra.mxu0 %v798
  %848 = vmatprep.subr.bf16.mxu0 0
  %849 = vmatpush1.bf16.msra.mxu0 %v799
  %850 = vmatprep.subr.bf16.mxu0 0
  %851 = vmatpush1.bf16.msra.mxu0 %v800
  %852 = vmatprep.subr.bf16.mxu0 0
  %853 = vmatpush1.bf16.msra.mxu0 %v801
  %854 = vmatprep.subr.bf16.mxu0 0
  %855 = vmatpush1.bf16.msra.mxu0 %v802
  %856 = vmatprep.subr.bf16.mxu0 0
  %857 = vmatpush1.bf16.msra.mxu0 %v803
  %858 = vmatprep.subr.bf16.mxu0 0
  %859 = vmatpush1.bf16.msra.mxu0 %v804
  %860 = vmatprep.subr.bf16.mxu0 0
  %861 = vmatpush1.bf16.msra.mxu0 %v805
  %862 = vmatprep.subr.bf16.mxu0 0
  %863 = vmatpush1.bf16.msra.mxu0 %v806
  %864 = vmatprep.subr.bf16.mxu0 0
  %865 = vmatpush1.bf16.msra.mxu0 %v807
  %866 = vmatprep.subr.bf16.mxu0 0
  %867 = vmatpush1.bf16.msra.mxu0 %v808
  %868 = vmatprep.subr.bf16.mxu0 0
  %869 = vmatpush1.bf16.msra.mxu0 %v809
  %870 = vmatprep.subr.bf16.mxu0 0
  %871 = vmatpush1.bf16.msra.mxu0 %v810
  %872 = vmatprep.subr.bf16.mxu0 0
  %873 = vmatpush1.bf16.msra.mxu0 %v811
  %874 = vmatprep.subr.bf16.mxu0 0
  %875 = vmatpush1.bf16.msra.mxu0 %v812
  %876 = vmatprep.subr.bf16.mxu0 0
  %877 = vmatpush1.bf16.msra.mxu0 %v813
  %878 = vmatprep.mubr.bf16.mxu0 %v511
  %879 = vmatmul.mubr.bf16.gmra.mrb[0].mxu0 %v510
  %v880 = vpop.f32.mrb[0].mxu0
  %v881 = vadd.f32 0.0, %v880
  %v882 = vpop.f32.mrb[0].mxu0
  %v883 = vpop.f32.mrb[0].mxu0
  %v884 = vadd.f32 0.0, %v883
  %v885 = vpop.f32.mrb[0].mxu0
  %886 = vmatprep.mubr.bf16.mxu0 %v514
  %887 = vmatmul.mubr.bf16.gmra.mrb[0].mxu0 %v513
  %v888 = vpop.f32.mrb[0].mxu0
  %v889 = vadd.f32 0.0, %v888
  %v890 = vpop.f32.mrb[0].mxu0
  %v891 = vpop.f32.mrb[0].mxu0
  %v892 = vadd.f32 0.0, %v891
  %v893 = vpop.f32.mrb[0].mxu0
  %894 = vmatprep.mubr.bf16.mxu0 %v517
  %895 = vmatmul.mubr.bf16.gmra.mrb[0].mxu0 %v516
  %v896 = vpop.f32.mrb[0].mxu0
  %v897 = vadd.f32 0.0, %v896
  %v898 = vpop.f32.mrb[0].mxu0
  %v899 = vpop.f32.mrb[0].mxu0
  %v900 = vadd.f32 0.0, %v899
  %v901 = vpop.f32.mrb[0].mxu0
  %902 = vmatprep.mubr.bf16.mxu0 %v520
  %903 = vmatmul.mubr.bf16.gmra.mrb[0].mxu0 %v519
  %v904 = vpop.f32.mrb[0].mxu0
  %v905 = vadd.f32 0.0, %v904
  %v906 = vpop.f32.mrb[0].mxu0
  %v907 = vpop.f32.mrb[0].mxu0
  %v908 = vadd.f32 0.0, %v907
  %v909 = vpop.f32.mrb[0].mxu0
  %910 = vmatprep.mubr.bf16.mxu0 %v523
  %911 = vmatmul.mubr.bf16.gmra.mrb[0].mxu0 %v522
  %v912 = vpop.f32.mrb[0].mxu0
  %v913 = vadd.f32 0.0, %v912
  %v914 = vpop.f32.mrb[0].mxu0
  %v915 = vpop.f32.mrb[0].mxu0
  %v916 = vadd.f32 0.0, %v915
  %v917 = vpop.f32.mrb[0].mxu0
  %918 = vmatprep.mubr.bf16.mxu0 %v526
  %919 = vmatmul.mubr.bf16.gmra.mrb[0].mxu0 %v525
  %v920 = vpop.f32.mrb[0].mxu0
  %v921 = vadd.f32 0.0, %v920
  %v922 = vpop.f32.mrb[0].mxu0
  %v923 = vpop.f32.mrb[0].mxu0
  %v924 = vadd.f32 0.0, %v923
  %v925 = vpop.f32.mrb[0].mxu0
  %926 = vmatprep.mubr.bf16.mxu0 %v529
  %927 = vmatmul.mubr.bf16.gmra.mrb[0].mxu0 %v528
  %v928 = vpop.f32.mrb[0].mxu0
  %v929 = vadd.f32 0.0, %v928
  %v930 = vpop.f32.mrb[0].mxu0
  %v931 = vpop.f32.mrb[0].mxu0
  %v932 = vadd.f32 0.0, %v931
  %v933 = vpop.f32.mrb[0].mxu0
  %934 = vmatprep.mubr.bf16.mxu0 %v532
  %935 = vmatmul.mubr.bf16.gmra.mrb[0].mxu0 %v531
  %v936 = vpop.f32.mrb[0].mxu0
  %v937 = vadd.f32 0.0, %v936
  %v938 = vpop.f32.mrb[0].mxu0
  %v939 = vpop.f32.mrb[0].mxu0
  %v940 = vadd.f32 0.0, %v939
  %v941 = vpop.f32.mrb[0].mxu0
  %942 = vmatprep.mubr.bf16.mxu0 %v535
  %943 = vmatmul.mubr.bf16.gmra.mrb[0].mxu0 %v534
  %v944 = vpop.f32.mrb[0].mxu0
  %v945 = vadd.f32 0.0, %v944
  %v946 = vpop.f32.mrb[0].mxu0
  %v947 = vpop.f32.mrb[0].mxu0
  %v948 = vadd.f32 0.0, %v947
  %v949 = vpop.f32.mrb[0].mxu0
  %950 = vmatprep.mubr.bf16.mxu0 %v538
  %951 = vmatmul.mubr.bf16.gmra.mrb[0].mxu0 %v537
  %v952 = vpop.f32.mrb[0].mxu0
  %v953 = vadd.f32 0.0, %v952
  %v954 = vpop.f32.mrb[0].mxu0
  %v955 = vpop.f32.mrb[0].mxu0
  %v956 = vadd.f32 0.0, %v955
  %v957 = vpop.f32.mrb[0].mxu0
  %958 = vmatprep.mubr.bf16.mxu0 %v541
  %959 = vmatmul.mubr.bf16.gmra.mrb[0].mxu0 %v540
  %v960 = vpop.f32.mrb[0].mxu0
  %v961 = vadd.f32 0.0, %v960
  %v962 = vpop.f32.mrb[0].mxu0
  %v963 = vpop.f32.mrb[0].mxu0
  %v964 = vadd.f32 0.0, %v963
  %v965 = vpop.f32.mrb[0].mxu0
  %966 = vmatprep.mubr.bf16.mxu0 %v544
  %967 = vmatmul.mubr.bf16.gmra.mrb[0].mxu0 %v543
  %v968 = vpop.f32.mrb[0].mxu0
  %v969 = vadd.f32 0.0, %v968
  %v970 = vpop.f32.mrb[0].mxu0
  %v971 = vpop.f32.mrb[0].mxu0
  %v972 = vadd.f32 0.0, %v971
  %v973 = vpop.f32.mrb[0].mxu0
  %974 = vmatprep.mubr.bf16.mxu0 %v547
  %975 = vmatmul.mubr.bf16.gmra.mrb[0].mxu0 %v546
  %v976 = vpop.f32.mrb[0].mxu0
  %v977 = vadd.f32 0.0, %v976
  %v978 = vpop.f32.mrb[0].mxu0
  %v979 = vpop.f32.mrb[0].mxu0
  %v980 = vadd.f32 0.0, %v979
  %v981 = vpop.f32.mrb[0].mxu0
  %982 = vmatprep.mubr.bf16.mxu0 %v550
  %983 = vmatmul.mubr.bf16.gmra.mrb[0].mxu0 %v549
  %v984 = vpop.f32.mrb[0].mxu0
  %v985 = vadd.f32 0.0, %v984
  %v986 = vpop.f32.mrb[0].mxu0
  %v987 = vpop.f32.mrb[0].mxu0
  %v988 = vadd.f32 0.0, %v987
  %v989 = vpop.f32.mrb[0].mxu0
  %990 = vmatprep.mubr.bf16.mxu0 %v553
  %991 = vmatmul.mubr.bf16.gmra.mrb[0].mxu0 %v552
  %v992 = vpop.f32.mrb[0].mxu0
  %v993 = vadd.f32 0.0, %v992
  %v994 = vpop.f32.mrb[0].mxu0
  %v995 = vpop.f32.mrb[0].mxu0
  %v996 = vadd.f32 0.0, %v995
  %v997 = vpop.f32.mrb[0].mxu0
  %998 = vmatprep.mubr.bf16.mxu0 %v556
  %999 = vmatmul.mubr.bf16.gmra.mrb[0].mxu0 %v555
  %v1000 = vpop.f32.mrb[0].mxu0
  %v1001 = vadd.f32 0.0, %v1000
  %v1002 = vpop.f32.mrb[0].mxu0
  %v1003 = vpop.f32.mrb[0].mxu0
  %v1004 = vadd.f32 0.0, %v1003
  %v1005 = vpop.f32.mrb[0].mxu0
  %1006 = vmatprep.mubr.bf16.mxu0 %v559
  %1007 = vmatmul.mubr.bf16.gmra.mrb[0].mxu0 %v558
  %v1008 = vpop.f32.mrb[0].mxu0
  %v1009 = vadd.f32 0.0, %v1008
  %v1010 = vpop.f32.mrb[0].mxu0
  %v1011 = vpop.f32.mrb[0].mxu0
  %v1012 = vadd.f32 0.0, %v1011
  %v1013 = vpop.f32.mrb[0].mxu0
  %1014 = vmatprep.mubr.bf16.mxu0 %v562
  %1015 = vmatmul.mubr.bf16.gmra.mrb[0].mxu0 %v561
  %v1016 = vpop.f32.mrb[0].mxu0
  %v1017 = vadd.f32 0.0, %v1016
  %v1018 = vpop.f32.mrb[0].mxu0
  %v1019 = vpop.f32.mrb[0].mxu0
  %v1020 = vadd.f32 0.0, %v1019
  %v1021 = vpop.f32.mrb[0].mxu0
  %1022 = vmatprep.mubr.bf16.mxu0 %v565
  %1023 = vmatmul.mubr.bf16.gmra.mrb[0].mxu0 %v564
  %v1024 = vpop.f32.mrb[0].mxu0
  %v1025 = vadd.f32 0.0, %v1024
  %v1026 = vpop.f32.mrb[0].mxu0
  %v1027 = vpop.f32.mrb[0].mxu0
  %v1028 = vadd.f32 0.0, %v1027
  %v1029 = vpop.f32.mrb[0].mxu0
  %1030 = vmatprep.mubr.bf16.mxu0 %v568
  %1031 = vmatmul.mubr.bf16.gmra.mrb[0].mxu0 %v567
  %v1032 = vpop.f32.mrb[0].mxu0
  %v1033 = vadd.f32 0.0, %v1032
  %v1034 = vpop.f32.mrb[0].mxu0
  %v1035 = vpop.f32.mrb[0].mxu0
  %v1036 = vadd.f32 0.0, %v1035
  %v1037 = vpop.f32.mrb[0].mxu0
  %1038 = vmatprep.mubr.bf16.mxu0 %v571
  %1039 = vmatmul.mubr.bf16.gmra.mrb[0].mxu0 %v570
  %v1040 = vpop.f32.mrb[0].mxu0
  %v1041 = vadd.f32 0.0, %v1040
  %v1042 = vpop.f32.mrb[0].mxu0
  %v1043 = vpop.f32.mrb[0].mxu0
  %v1044 = vadd.f32 0.0, %v1043
  %v1045 = vpop.f32.mrb[0].mxu0
  %1046 = vmatprep.mubr.bf16.mxu0 %v574
  %1047 = vmatmul.mubr.bf16.gmra.mrb[0].mxu0 %v573
  %v1048 = vpop.f32.mrb[0].mxu0
  %v1049 = vadd.f32 0.0, %v1048
  %v1050 = vpop.f32.mrb[0].mxu0
  %v1051 = vpop.f32.mrb[0].mxu0
  %v1052 = vadd.f32 0.0, %v1051
  %v1053 = vpop.f32.mrb[0].mxu0
  %1054 = vmatprep.mubr.bf16.mxu0 %v577
  %1055 = vmatmul.mubr.bf16.gmra.mrb[0].mxu0 %v576
  %v1056 = vpop.f32.mrb[0].mxu0
  %v1057 = vadd.f32 0.0, %v1056
  %v1058 = vpop.f32.mrb[0].mxu0
  %v1059 = vpop.f32.mrb[0].mxu0
  %v1060 = vadd.f32 0.0, %v1059
  %v1061 = vpop.f32.mrb[0].mxu0
  %1062 = vmatprep.mubr.bf16.mxu0 %v580
  %1063 = vmatmul.mubr.bf16.gmra.mrb[0].mxu0 %v579
  %v1064 = vpop.f32.mrb[0].mxu0
  %v1065 = vadd.f32 0.0, %v1064
  %v1066 = vpop.f32.mrb[0].mxu0
  %v1067 = vpop.f32.mrb[0].mxu0
  %v1068 = vadd.f32 0.0, %v1067
  %v1069 = vpop.f32.mrb[0].mxu0
  %1070 = vmatprep.mubr.bf16.mxu0 %v583
  %1071 = vmatmul.mubr.bf16.gmra.mrb[0].mxu0 %v582
  %v1072 = vpop.f32.mrb[0].mxu0
  %v1073 = vadd.f32 0.0, %v1072
  %v1074 = vpop.f32.mrb[0].mxu0
  %v1075 = vpop.f32.mrb[0].mxu0
  %v1076 = vadd.f32 0.0, %v1075
  %v1077 = vpop.f32.mrb[0].mxu0
  %1078 = vmatprep.mubr.bf16.mxu0 %v586
  %1079 = vmatmul.mubr.bf16.gmra.mrb[0].mxu0 %v585
  %v1080 = vpop.f32.mrb[0].mxu0
  %v1081 = vadd.f32 0.0, %v1080
  %v1082 = vpop.f32.mrb[0].mxu0
  %v1083 = vpop.f32.mrb[0].mxu0
  %v1084 = vadd.f32 0.0, %v1083
  %v1085 = vpop.f32.mrb[0].mxu0
  %1086 = vmatprep.mubr.bf16.mxu0 %v589
  %1087 = vmatmul.mubr.bf16.gmra.mrb[0].mxu0 %v588
  %v1088 = vpop.f32.mrb[0].mxu0
  %v1089 = vadd.f32 0.0, %v1088
  %v1090 = vpop.f32.mrb[0].mxu0
  %v1091 = vpop.f32.mrb[0].mxu0
  %v1092 = vadd.f32 0.0, %v1091
  %v1093 = vpop.f32.mrb[0].mxu0
  %1094 = vmatprep.mubr.bf16.mxu0 %v592
  %1095 = vmatmul.mubr.bf16.gmra.mrb[0].mxu0 %v591
  %v1096 = vpop.f32.mrb[0].mxu0
  %v1097 = vadd.f32 0.0, %v1096
  %v1098 = vpop.f32.mrb[0].mxu0
  %v1099 = vpop.f32.mrb[0].mxu0
  %v1100 = vadd.f32 0.0, %v1099
  %v1101 = vpop.f32.mrb[0].mxu0
  %1102 = vmatprep.mubr.bf16.mxu0 %v595
  %1103 = vmatmul.mubr.bf16.gmra.mrb[0].mxu0 %v594
  %v1104 = vpop.f32.mrb[0].mxu0
  %v1105 = vadd.f32 0.0, %v1104
  %v1106 = vpop.f32.mrb[0].mxu0
  %v1107 = vpop.f32.mrb[0].mxu0
  %v1108 = vadd.f32 0.0, %v1107
  %v1109 = vpop.f32.mrb[0].mxu0
  %1110 = vmatprep.mubr.bf16.mxu0 %v598
  %1111 = vmatmul.mubr.bf16.gmra.mrb[0].mxu0 %v597
  %v1112 = vpop.f32.mrb[0].mxu0
  %v1113 = vadd.f32 0.0, %v1112
  %v1114 = vpop.f32.mrb[0].mxu0
  %v1115 = vpop.f32.mrb[0].mxu0
  %v1116 = vadd.f32 0.0, %v1115
  %v1117 = vpop.f32.mrb[0].mxu0
  %1118 = vmatprep.mubr.bf16.mxu0 %v601
  %1119 = vmatmul.mubr.bf16.gmra.mrb[0].mxu0 %v600
  %v1120 = vpop.f32.mrb[0].mxu0
  %v1121 = vadd.f32 0.0, %v1120
  %v1122 = vpop.f32.mrb[0].mxu0
  %v1123 = vpop.f32.mrb[0].mxu0
  %v1124 = vadd.f32 0.0, %v1123
  %v1125 = vpop.f32.mrb[0].mxu0
  %1126 = vmatprep.mubr.bf16.mxu0 %v604
  %1127 = vmatmul.mubr.bf16.gmra.mrb[0].mxu0 %v603
  %v1128 = vpop.f32.mrb[0].mxu0
  %v1129 = vadd.f32 0.0, %v1128
  %v1130 = vpop.f32.mrb[0].mxu0
  %v1131 = vpop.f32.mrb[0].mxu0
  %v1132 = vadd.f32 0.0, %v1131
  %v1133 = vpop.f32.mrb[0].mxu0
  %1134 = vdwg.mxu0
  %1135 = vmatprep.subr.bf16.mxu0 0
  %1136 = vmatpush1.bf16.msra.mxu0 %v814
  %1137 = vmatprep.subr.bf16.mxu0 0
  %1138 = vmatpush1.bf16.msra.mxu0 %v815
  %1139 = vmatprep.subr.bf16.mxu0 0
  %1140 = vmatpush1.bf16.msra.mxu0 %v816
  %1141 = vmatprep.subr.bf16.mxu0 0
  %1142 = vmatpush1.bf16.msra.mxu0 %v817
  %1143 = vmatprep.subr.bf16.mxu0 0
  %1144 = vmatpush1.bf16.msra.mxu0 %v818
  %1145 = vmatprep.subr.bf16.mxu0 0
  %1146 = vmatpush1.bf16.msra.mxu0 %v819
  %1147 = vmatprep.subr.bf16.mxu0 0
  %1148 = vmatpush1.bf16.msra.mxu0 %v820
  %1149 = vmatprep.subr.bf16.mxu0 0
  %1150 = vmatpush1.bf16.msra.mxu0 %v821
  %1151 = vmatprep.subr.bf16.mxu0 0
  %1152 = vmatpush1.bf16.msra.mxu0 0
  %1153 = vmatprep.subr.bf16.mxu0 0
  %1154 = vmatpush1.bf16.msra.mxu0 0
  %1155 = vmatprep.subr.bf16.mxu0 0
  %1156 = vmatpush1.bf16.msra.mxu0 0
  %1157 = vmatprep.subr.bf16.mxu0 0
  %1158 = vmatpush1.bf16.msra.mxu0 0
  %1159 = vmatprep.subr.bf16.mxu0 0
  %1160 = vmatpush1.bf16.msra.mxu0 0
  %1161 = vmatprep.subr.bf16.mxu0 0
  %1162 = vmatpush1.bf16.msra.mxu0 0
  %1163 = vmatprep.subr.bf16.mxu0 0
  %1164 = vmatpush1.bf16.msra.mxu0 0
  %1165 = vmatprep.subr.bf16.mxu0 0
  %1166 = vmatpush1.bf16.msra.mxu0 0
  %1167 = vmatprep.mubr.bf16.mxu0 0
  %1168 = vmatmul.mubr.bf16.gmra.mrb[0].mxu0 %v512
  %v1169 = vpop.f32.mrb[0].mxu0
  %v1170 = vadd.f32 %v881, %v1169
  %v1171 = vpop.f32.mrb[0].mxu0
  %v1172 = vpop.f32.mrb[0].mxu0
  %v1173 = vadd.f32 %v884, %v1172
  %v1174 = vpop.f32.mrb[0].mxu0
  %1175 = vmatprep.mubr.bf16.mxu0 0
  %1176 = vmatmul.mubr.bf16.gmra.mrb[0].mxu0 %v515
  %v1177 = vpop.f32.mrb[0].mxu0
  %v1178 = vadd.f32 %v889, %v1177
  %v1179 = vpop.f32.mrb[0].mxu0
  %v1180 = vpop.f32.mrb[0].mxu0
  %v1181 = vadd.f32 %v892, %v1180
  %v1182 = vpop.f32.mrb[0].mxu0
  %1183 = vmatprep.mubr.bf16.mxu0 0
  %1184 = vmatmul.mubr.bf16.gmra.mrb[0].mxu0 %v518
  %v1185 = vpop.f32.mrb[0].mxu0
  %v1186 = vadd.f32 %v897, %v1185
  %v1187 = vpop.f32.mrb[0].mxu0
  %v1188 = vpop.f32.mrb[0].mxu0
  %v1189 = vadd.f32 %v900, %v1188
  %v1190 = vpop.f32.mrb[0].mxu0
  %1191 = vmatprep.mubr.bf16.mxu0 0
  %1192 = vmatmul.mubr.bf16.gmra.mrb[0].mxu0 %v521
  %v1193 = vpop.f32.mrb[0].mxu0
  %v1194 = vadd.f32 %v905, %v1193
  %v1195 = vpop.f32.mrb[0].mxu0
  %v1196 = vpop.f32.mrb[0].mxu0
  %v1197 = vadd.f32 %v908, %v1196
  %v1198 = vpop.f32.mrb[0].mxu0
  %1199 = vmatprep.mubr.bf16.mxu0 0
  %1200 = vmatmul.mubr.bf16.gmra.mrb[0].mxu0 %v524
  %v1201 = vpop.f32.mrb[0].mxu0
  %v1202 = vadd.f32 %v913, %v1201
  %v1203 = vpop.f32.mrb[0].mxu0
  %v1204 = vpop.f32.mrb[0].mxu0
  %v1205 = vadd.f32 %v916, %v1204
  %v1206 = vpop.f32.mrb[0].mxu0
  %1207 = vmatprep.mubr.bf16.mxu0 0
  %1208 = vmatmul.mubr.bf16.gmra.mrb[0].mxu0 %v527
  %v1209 = vpop.f32.mrb[0].mxu0
  %v1210 = vadd.f32 %v921, %v1209
  %v1211 = vpop.f32.mrb[0].mxu0
  %v1212 = vpop.f32.mrb[0].mxu0
  %v1213 = vadd.f32 %v924, %v1212
  %v1214 = vpop.f32.mrb[0].mxu0
  %1215 = vmatprep.mubr.bf16.mxu0 0
  %1216 = vmatmul.mubr.bf16.gmra.mrb[0].mxu0 %v530
  %v1217 = vpop.f32.mrb[0].mxu0
  %v1218 = vadd.f32 %v929, %v1217
  %v1219 = vpop.f32.mrb[0].mxu0
  %v1220 = vpop.f32.mrb[0].mxu0
  %v1221 = vadd.f32 %v932, %v1220
  %v1222 = vpop.f32.mrb[0].mxu0
  %1223 = vmatprep.mubr.bf16.mxu0 0
  %1224 = vmatmul.mubr.bf16.gmra.mrb[0].mxu0 %v533
  %v1225 = vpop.f32.mrb[0].mxu0
  %v1226 = vadd.f32 %v937, %v1225
  %v1227 = vpop.f32.mrb[0].mxu0
  %v1228 = vpop.f32.mrb[0].mxu0
  %v1229 = vadd.f32 %v940, %v1228
  %v1230 = vpop.f32.mrb[0].mxu0
  %1231 = vmatprep.mubr.bf16.mxu0 0
  %1232 = vmatmul.mubr.bf16.gmra.mrb[0].mxu0 %v536
  %v1233 = vpop.f32.mrb[0].mxu0
  %v1234 = vadd.f32 %v945, %v1233
  %v1235 = vpop.f32.mrb[0].mxu0
  %v1236 = vpop.f32.mrb[0].mxu0
  %v1237 = vadd.f32 %v948, %v1236
  %v1238 = vpop.f32.mrb[0].mxu0
  %1239 = vmatprep.mubr.bf16.mxu0 0
  %1240 = vmatmul.mubr.bf16.gmra.mrb[0].mxu0 %v539
  %v1241 = vpop.f32.mrb[0].mxu0
  %v1242 = vadd.f32 %v953, %v1241
  %v1243 = vpop.f32.mrb[0].mxu0
  %v1244 = vpop.f32.mrb[0].mxu0
  %v1245 = vadd.f32 %v956, %v1244
  %v1246 = vpop.f32.mrb[0].mxu0
  %1247 = vmatprep.mubr.bf16.mxu0 0
  %1248 = vmatmul.mubr.bf16.gmra.mrb[0].mxu0 %v542
  %v1249 = vpop.f32.mrb[0].mxu0
  %v1250 = vadd.f32 %v961, %v1249
  %v1251 = vpop.f32.mrb[0].mxu0
  %v1252 = vpop.f32.mrb[0].mxu0
  %v1253 = vadd.f32 %v964, %v1252
  %v1254 = vpop.f32.mrb[0].mxu0
  %1255 = vmatprep.mubr.bf16.mxu0 0
  %1256 = vmatmul.mubr.bf16.gmra.mrb[0].mxu0 %v545
  %v1257 = vpop.f32.mrb[0].mxu0
  %v1258 = vadd.f32 %v969, %v1257
  %v1259 = vpop.f32.mrb[0].mxu0
  %v1260 = vpop.f32.mrb[0].mxu0
  %v1261 = vadd.f32 %v972, %v1260
  %v1262 = vpop.f32.mrb[0].mxu0
  %1263 = vmatprep.mubr.bf16.mxu0 0
  %1264 = vmatmul.mubr.bf16.gmra.mrb[0].mxu0 %v548
  %v1265 = vpop.f32.mrb[0].mxu0
  %v1266 = vadd.f32 %v977, %v1265
  %v1267 = vpop.f32.mrb[0].mxu0
  %v1268 = vpop.f32.mrb[0].mxu0
  %v1269 = vadd.f32 %v980, %v1268
  %v1270 = vpop.f32.mrb[0].mxu0
  %1271 = vmatprep.mubr.bf16.mxu0 0
  %1272 = vmatmul.mubr.bf16.gmra.mrb[0].mxu0 %v551
  %v1273 = vpop.f32.mrb[0].mxu0
  %v1274 = vadd.f32 %v985, %v1273
  %v1275 = vpop.f32.mrb[0].mxu0
  %v1276 = vpop.f32.mrb[0].mxu0
  %v1277 = vadd.f32 %v988, %v1276
  %v1278 = vpop.f32.mrb[0].mxu0
  %1279 = vmatprep.mubr.bf16.mxu0 0
  %1280 = vmatmul.mubr.bf16.gmra.mrb[0].mxu0 %v554
  %v1281 = vpop.f32.mrb[0].mxu0
  %v1282 = vadd.f32 %v993, %v1281
  %v1283 = vpop.f32.mrb[0].mxu0
  %v1284 = vpop.f32.mrb[0].mxu0
  %v1285 = vadd.f32 %v996, %v1284
  %v1286 = vpop.f32.mrb[0].mxu0
  %1287 = vmatprep.mubr.bf16.mxu0 0
  %1288 = vmatmul.mubr.bf16.gmra.mrb[0].mxu0 %v557
  %v1289 = vpop.f32.mrb[0].mxu0
  %v1290 = vadd.f32 %v1001, %v1289
  %v1291 = vpop.f32.mrb[0].mxu0
  %v1292 = vpop.f32.mrb[0].mxu0
  %v1293 = vadd.f32 %v1004, %v1292
  %v1294 = vpop.f32.mrb[0].mxu0
  %1295 = vmatprep.mubr.bf16.mxu0 0
  %1296 = vmatmul.mubr.bf16.gmra.mrb[0].mxu0 %v560
  %v1297 = vpop.f32.mrb[0].mxu0
  %v1298 = vadd.f32 %v1009, %v1297
  %v1299 = vpop.f32.mrb[0].mxu0
  %v1300 = vpop.f32.mrb[0].mxu0
  %v1301 = vadd.f32 %v1012, %v1300
  %v1302 = vpop.f32.mrb[0].mxu0
  %1303 = vmatprep.mubr.bf16.mxu0 0
  %1304 = vmatmul.mubr.bf16.gmra.mrb[0].mxu0 %v563
  %v1305 = vpop.f32.mrb[0].mxu0
  %v1306 = vadd.f32 %v1017, %v1305
  %v1307 = vpop.f32.mrb[0].mxu0
  %v1308 = vpop.f32.mrb[0].mxu0
  %v1309 = vadd.f32 %v1020, %v1308
  %v1310 = vpop.f32.mrb[0].mxu0
  %1311 = vmatprep.mubr.bf16.mxu0 0
  %1312 = vmatmul.mubr.bf16.gmra.mrb[0].mxu0 %v566
  %v1313 = vpop.f32.mrb[0].mxu0
  %v1314 = vadd.f32 %v1025, %v1313
  %v1315 = vpop.f32.mrb[0].mxu0
  %v1316 = vpop.f32.mrb[0].mxu0
  %v1317 = vadd.f32 %v1028, %v1316
  %v1318 = vpop.f32.mrb[0].mxu0
  %1319 = vmatprep.mubr.bf16.mxu0 0
  %1320 = vmatmul.mubr.bf16.gmra.mrb[0].mxu0 %v569
  %v1321 = vpop.f32.mrb[0].mxu0
  %v1322 = vadd.f32 %v1033, %v1321
  %v1323 = vpop.f32.mrb[0].mxu0
  %v1324 = vpop.f32.mrb[0].mxu0
  %v1325 = vadd.f32 %v1036, %v1324
  %v1326 = vpop.f32.mrb[0].mxu0
  %1327 = vmatprep.mubr.bf16.mxu0 0
  %1328 = vmatmul.mubr.bf16.gmra.mrb[0].mxu0 %v572
  %v1329 = vpop.f32.mrb[0].mxu0
  %v1330 = vadd.f32 %v1041, %v1329
  %v1331 = vpop.f32.mrb[0].mxu0
  %v1332 = vpop.f32.mrb[0].mxu0
  %v1333 = vadd.f32 %v1044, %v1332
  %v1334 = vpop.f32.mrb[0].mxu0
  %1335 = vmatprep.mubr.bf16.mxu0 0
  %1336 = vmatmul.mubr.bf16.gmra.mrb[0].mxu0 %v575
  %v1337 = vpop.f32.mrb[0].mxu0
  %v1338 = vadd.f32 %v1049, %v1337
  %v1339 = vpop.f32.mrb[0].mxu0
  %v1340 = vpop.f32.mrb[0].mxu0
  %v1341 = vadd.f32 %v1052, %v1340
  %v1342 = vpop.f32.mrb[0].mxu0
  %1343 = vmatprep.mubr.bf16.mxu0 0
  %1344 = vmatmul.mubr.bf16.gmra.mrb[0].mxu0 %v578
  %v1345 = vpop.f32.mrb[0].mxu0
  %v1346 = vadd.f32 %v1057, %v1345
  %v1347 = vpop.f32.mrb[0].mxu0
  %v1348 = vpop.f32.mrb[0].mxu0
  %v1349 = vadd.f32 %v1060, %v1348
  %v1350 = vpop.f32.mrb[0].mxu0
  %1351 = vmatprep.mubr.bf16.mxu0 0
  %1352 = vmatmul.mubr.bf16.gmra.mrb[0].mxu0 %v581
  %v1353 = vpop.f32.mrb[0].mxu0
  %v1354 = vadd.f32 %v1065, %v1353
  %v1355 = vpop.f32.mrb[0].mxu0
  %v1356 = vpop.f32.mrb[0].mxu0
  %v1357 = vadd.f32 %v1068, %v1356
  %v1358 = vpop.f32.mrb[0].mxu0
  %1359 = vmatprep.mubr.bf16.mxu0 0
  %1360 = vmatmul.mubr.bf16.gmra.mrb[0].mxu0 %v584
  %v1361 = vpop.f32.mrb[0].mxu0
  %v1362 = vadd.f32 %v1073, %v1361
  %v1363 = vpop.f32.mrb[0].mxu0
  %v1364 = vpop.f32.mrb[0].mxu0
  %v1365 = vadd.f32 %v1076, %v1364
  %v1366 = vpop.f32.mrb[0].mxu0
  %1367 = vmatprep.mubr.bf16.mxu0 0
  %1368 = vmatmul.mubr.bf16.gmra.mrb[0].mxu0 %v587
  %v1369 = vpop.f32.mrb[0].mxu0
  %v1370 = vadd.f32 %v1081, %v1369
  %v1371 = vpop.f32.mrb[0].mxu0
  %v1372 = vpop.f32.mrb[0].mxu0
  %v1373 = vadd.f32 %v1084, %v1372
  %v1374 = vpop.f32.mrb[0].mxu0
  %1375 = vmatprep.mubr.bf16.mxu0 0
  %1376 = vmatmul.mubr.bf16.gmra.mrb[0].mxu0 %v590
  %v1377 = vpop.f32.mrb[0].mxu0
  %v1378 = vadd.f32 %v1089, %v1377
  %v1379 = vpop.f32.mrb[0].mxu0
  %v1380 = vpop.f32.mrb[0].mxu0
  %v1381 = vadd.f32 %v1092, %v1380
  %v1382 = vpop.f32.mrb[0].mxu0
  %1383 = vmatprep.mubr.bf16.mxu0 0
  %1384 = vmatmul.mubr.bf16.gmra.mrb[0].mxu0 %v593
  %v1385 = vpop.f32.mrb[0].mxu0
  %v1386 = vadd.f32 %v1097, %v1385
  %v1387 = vpop.f32.mrb[0].mxu0
  %v1388 = vpop.f32.mrb[0].mxu0
  %v1389 = vadd.f32 %v1100, %v1388
  %v1390 = vpop.f32.mrb[0].mxu0
  %1391 = vmatprep.mubr.bf16.mxu0 0
  %1392 = vmatmul.mubr.bf16.gmra.mrb[0].mxu0 %v596
  %v1393 = vpop.f32.mrb[0].mxu0
  %v1394 = vadd.f32 %v1105, %v1393
  %v1395 = vpop.f32.mrb[0].mxu0
  %v1396 = vpop.f32.mrb[0].mxu0
  %v1397 = vadd.f32 %v1108, %v1396
  %v1398 = vpop.f32.mrb[0].mxu0
  %1399 = vmatprep.mubr.bf16.mxu0 0
  %1400 = vmatmul.mubr.bf16.gmra.mrb[0].mxu0 %v599
  %v1401 = vpop.f32.mrb[0].mxu0
  %v1402 = vadd.f32 %v1113, %v1401
  %v1403 = vpop.f32.mrb[0].mxu0
  %v1404 = vpop.f32.mrb[0].mxu0
  %v1405 = vadd.f32 %v1116, %v1404
  %v1406 = vpop.f32.mrb[0].mxu0
  %1407 = vmatprep.mubr.bf16.mxu0 0
  %1408 = vmatmul.mubr.bf16.gmra.mrb[0].mxu0 %v602
  %v1409 = vpop.f32.mrb[0].mxu0
  %v1410 = vadd.f32 %v1121, %v1409
  %v1411 = vpop.f32.mrb[0].mxu0
  %v1412 = vpop.f32.mrb[0].mxu0
  %v1413 = vadd.f32 %v1124, %v1412
  %v1414 = vpop.f32.mrb[0].mxu0
  %1415 = vmatprep.mubr.bf16.mxu0 0
  %1416 = vmatmul.mubr.bf16.gmra.mrb[0].mxu0 %v605
  %v1417 = vpop.f32.mrb[0].mxu0
  %v1418 = vadd.f32 %v1129, %v1417
  %v1419 = vpop.f32.mrb[0].mxu0
  %v1420 = vpop.f32.mrb[0].mxu0
  %v1421 = vadd.f32 %v1132, %v1420
  %v1422 = vpop.f32.mrb[0].mxu0
  %1423 = vdwg.mxu0
  %v1424 = vadd.f32 %v1170, %v1173
  %v1425 = vadd.f32 %v1424, %v1178
  %v1426 = vadd.f32 %v1425, %v1181
  %v1427 = vadd.f32 %v1426, %v1186
  %v1428 = vadd.f32 %v1427, %v1189
  %v1429 = vadd.f32 %v1428, %v1194
  %v1430 = vadd.f32 %v1429, %v1197
  %v1431 = vadd.f32 %v1430, %v1202
  %v1432 = vadd.f32 %v1431, %v1205
  %v1433 = vadd.f32 %v1432, %v1210
  %v1434 = vadd.f32 %v1433, %v1213
  %v1435 = vadd.f32 %v1434, %v1218
  %v1436 = vadd.f32 %v1435, %v1221
  %v1437 = vadd.f32 %v1436, %v1226
  %v1438 = vadd.f32 %v1437, %v1229
  %v1439 = vadd.f32 %v1438, %v1234
  %v1440 = vadd.f32 %v1439, %v1237
  %v1441 = vadd.f32 %v1440, %v1242
  %v1442 = vadd.f32 %v1441, %v1245
  %v1443 = vadd.f32 %v1442, %v1250
  %v1444 = vadd.f32 %v1443, %v1253
  %v1445 = vadd.f32 %v1444, %v1258
  %v1446 = vadd.f32 %v1445, %v1261
  %v1447 = vadd.f32 %v1446, %v1266
  %v1448 = vadd.f32 %v1447, %v1269
  %v1449 = vadd.f32 %v1448, %v1274
  %v1450 = vadd.f32 %v1449, %v1277
  %v1451 = vadd.f32 %v1450, %v1282
  %v1452 = vadd.f32 %v1451, %v1285
  %v1453 = vadd.f32 %v1452, %v1290
  %v1454 = vadd.f32 %v1453, %v1293
  %v1455 = vadd.f32 %v1454, %v1298
  %v1456 = vadd.f32 %v1455, %v1301
  %v1457 = vadd.f32 %v1456, %v1306
  %v1458 = vadd.f32 %v1457, %v1309
  %v1459 = vadd.f32 %v1458, %v1314
  %v1460 = vadd.f32 %v1459, %v1317
  %v1461 = vadd.f32 %v1460, %v1322
  %v1462 = vadd.f32 %v1461, %v1325
  %v1463 = vadd.f32 %v1462, %v1330
  %v1464 = vadd.f32 %v1463, %v1333
  %v1465 = vadd.f32 %v1464, %v1338
  %v1466 = vadd.f32 %v1465, %v1341
  %v1467 = vadd.f32 %v1466, %v1346
  %v1468 = vadd.f32 %v1467, %v1349
  %v1469 = vadd.f32 %v1468, %v1354
  %v1470 = vadd.f32 %v1469, %v1357
  %v1471 = vadd.f32 %v1470, %v1362
  %v1472 = vadd.f32 %v1471, %v1365
  %v1473 = vadd.f32 %v1472, %v1370
  %v1474 = vadd.f32 %v1473, %v1373
  %v1475 = vadd.f32 %v1474, %v1378
  %v1476 = vadd.f32 %v1475, %v1381
  %v1477 = vadd.f32 %v1476, %v1386
  %v1478 = vadd.f32 %v1477, %v1389
  %v1479 = vadd.f32 %v1478, %v1394
  %v1480 = vadd.f32 %v1479, %v1397
  %v1481 = vadd.f32 %v1480, %v1402
  %v1482 = vadd.f32 %v1481, %v1405
  %v1483 = vadd.f32 %v1482, %v1410
  %v1484 = vadd.f32 %v1483, %v1413
  %v1485 = vadd.f32 %v1484, %v1418
  %v1486 = vadd.f32 %v1485, %v1421
  %v1487 = vrot.slane %v1486, 4
  %v1488 = vadd.f32 %v1486, %v1487
  %v1489 = vrot.slane %v1488, 2
  %v1490 = vadd.f32 %v1488, %v1489
  %v1491 = vrot.slane %v1490, 1
  %v1492 = vadd.f32 %v1490, %v1491
  %1493 = vst [vmem:[%s2] sm:$0x1] %v1492
  %v1494 = vmul.f32 %v1170, %v1170
  %v1495 = vmul.f32 %v1173, %v1173
  %v1496 = vmul.f32 %v1178, %v1178
  %v1497 = vmul.f32 %v1181, %v1181
  %v1498 = vmul.f32 %v1186, %v1186
  %v1499 = vmul.f32 %v1189, %v1189
  %v1500 = vmul.f32 %v1194, %v1194
  %v1501 = vmul.f32 %v1197, %v1197
  %v1502 = vmul.f32 %v1202, %v1202
  %v1503 = vmul.f32 %v1205, %v1205
  %v1504 = vmul.f32 %v1210, %v1210
  %v1505 = vmul.f32 %v1213, %v1213
  %v1506 = vmul.f32 %v1218, %v1218
  %v1507 = vmul.f32 %v1221, %v1221
  %v1508 = vmul.f32 %v1226, %v1226
  %v1509 = vmul.f32 %v1229, %v1229
  %v1510 = vmul.f32 %v1234, %v1234
  %v1511 = vmul.f32 %v1237, %v1237
  %v1512 = vmul.f32 %v1242, %v1242
  %v1513 = vmul.f32 %v1245, %v1245
  %v1514 = vmul.f32 %v1250, %v1250
  %v1515 = vmul.f32 %v1253, %v1253
  %v1516 = vmul.f32 %v1258, %v1258
  %v1517 = vmul.f32 %v1261, %v1261
  %v1518 = vmul.f32 %v1266, %v1266
  %v1519 = vmul.f32 %v1269, %v1269
  %v1520 = vmul.f32 %v1274, %v1274
  %v1521 = vmul.f32 %v1277, %v1277
  %v1522 = vmul.f32 %v1282, %v1282
  %v1523 = vmul.f32 %v1285, %v1285
  %v1524 = vmul.f32 %v1290, %v1290
  %v1525 = vmul.f32 %v1293, %v1293
  %v1526 = vmul.f32 %v1298, %v1298
  %v1527 = vmul.f32 %v1301, %v1301
  %v1528 = vmul.f32 %v1306, %v1306
  %v1529 = vmul.f32 %v1309, %v1309
  %v1530 = vmul.f32 %v1314, %v1314
  %v1531 = vmul.f32 %v1317, %v1317
  %v1532 = vmul.f32 %v1322, %v1322
  %v1533 = vmul.f32 %v1325, %v1325
  %v1534 = vmul.f32 %v1330, %v1330
  %v1535 = vmul.f32 %v1333, %v1333
  %v1536 = vmul.f32 %v1338, %v1338
  %v1537 = vmul.f32 %v1341, %v1341
  %v1538 = vmul.f32 %v1346, %v1346
  %v1539 = vmul.f32 %v1349, %v1349
  %v1540 = vmul.f32 %v1354, %v1354
  %v1541 = vmul.f32 %v1357, %v1357
  %v1542 = vmul.f32 %v1362, %v1362
  %v1543 = vmul.f32 %v1365, %v1365
  %v1544 = vmul.f32 %v1370, %v1370
  %v1545 = vmul.f32 %v1373, %v1373
  %v1546 = vmul.f32 %v1378, %v1378
  %v1547 = vmul.f32 %v1381, %v1381
  %v1548 = vmul.f32 %v1386, %v1386
  %v1549 = vmul.f32 %v1389, %v1389
  %v1550 = vmul.f32 %v1394, %v1394
  %v1551 = vmul.f32 %v1397, %v1397
  %v1552 = vmul.f32 %v1402, %v1402
  %v1553 = vmul.f32 %v1405, %v1405
  %v1554 = vmul.f32 %v1410, %v1410
  %v1555 = vmul.f32 %v1413, %v1413
  %v1556 = vmul.f32 %v1418, %v1418
  %v1557 = vmul.f32 %v1421, %v1421
  %v1558 = vadd.f32 %v1494, %v1495
  %v1559 = vadd.f32 %v1558, %v1496
  %v1560 = vadd.f32 %v1559, %v1497
  %v1561 = vadd.f32 %v1560, %v1498
  %v1562 = vadd.f32 %v1561, %v1499
  %v1563 = vadd.f32 %v1562, %v1500
  %v1564 = vadd.f32 %v1563, %v1501
  %v1565 = vadd.f32 %v1564, %v1502
  %v1566 = vadd.f32 %v1565, %v1503
  %v1567 = vadd.f32 %v1566, %v1504
  %v1568 = vadd.f32 %v1567, %v1505
  %v1569 = vadd.f32 %v1568, %v1506
  %v1570 = vadd.f32 %v1569, %v1507
  %v1571 = vadd.f32 %v1570, %v1508
  %v1572 = vadd.f32 %v1571, %v1509
  %v1573 = vadd.f32 %v1572, %v1510
  %v1574 = vadd.f32 %v1573, %v1511
  %v1575 = vadd.f32 %v1574, %v1512
  %v1576 = vadd.f32 %v1575, %v1513
  %v1577 = vadd.f32 %v1576, %v1514
  %v1578 = vadd.f32 %v1577, %v1515
  %v1579 = vadd.f32 %v1578, %v1516
  %v1580 = vadd.f32 %v1579, %v1517
  %v1581 = vadd.f32 %v1580, %v1518
  %v1582 = vadd.f32 %v1581, %v1519
  %v1583 = vadd.f32 %v1582, %v1520
  %v1584 = vadd.f32 %v1583, %v1521
  %v1585 = vadd.f32 %v1584, %v1522
  %v1586 = vadd.f32 %v1585, %v1523
  %v1587 = vadd.f32 %v1586, %v1524
  %v1588 = vadd.f32 %v1587, %v1525
  %v1589 = vadd.f32 %v1588, %v1526
  %v1590 = vadd.f32 %v1589, %v1527
  %v1591 = vadd.f32 %v1590, %v1528
  %v1592 = vadd.f32 %v1591, %v1529
  %v1593 = vadd.f32 %v1592, %v1530
  %v1594 = vadd.f32 %v1593, %v1531
  %v1595 = vadd.f32 %v1594, %v1532
  %v1596 = vadd.f32 %v1595, %v1533
  %v1597 = vadd.f32 %v1596, %v1534
  %v1598 = vadd.f32 %v1597, %v1535
  %v1599 = vadd.f32 %v1598, %v1536
  %v1600 = vadd.f32 %v1599, %v1537
  %v1601 = vadd.f32 %v1600, %v1538
  %v1602 = vadd.f32 %v1601, %v1539
  %v1603 = vadd.f32 %v1602, %v1540
  %v1604 = vadd.f32 %v1603, %v1541
  %v1605 = vadd.f32 %v1604, %v1542
  %v1606 = vadd.f32 %v1605, %v1543
  %v1607 = vadd.f32 %v1606, %v1544
  %v1608 = vadd.f32 %v1607, %v1545
  %v1609 = vadd.f32 %v1608, %v1546
  %v1610 = vadd.f32 %v1609, %v1547
  %v1611 = vadd.f32 %v1610, %v1548
  %v1612 = vadd.f32 %v1611, %v1549
  %v1613 = vadd.f32 %v1612, %v1550
  %v1614 = vadd.f32 %v1613, %v1551
  %v1615 = vadd.f32 %v1614, %v1552
  %v1616 = vadd.f32 %v1615, %v1553
  %v1617 = vadd.f32 %v1616, %v1554
  %v1618 = vadd.f32 %v1617, %v1555
  %v1619 = vadd.f32 %v1618, %v1556
  %v1620 = vadd.f32 %v1619, %v1557
  %v1621 = vrot.slane %v1620, 4
  %v1622 = vadd.f32 %v1620, %v1621
  %v1623 = vrot.slane %v1622, 2
  %v1624 = vadd.f32 %v1622, %v1623
  %v1625 = vrot.slane %v1624, 1
  %v1626 = vadd.f32 %v1624, %v1625
  %1627 = vst [vmem:[%s3] sm:$0x1] %v1626
  // Predicated region
  $region10: #{double_conv_forward.6} parent=0 // pred_check
    _
  $region11: #{double_conv_forward.6} parent=0 // pred_check_branch
    %1629 = sbr.rel (0) target = $region13
  $region12: #{double_conv_forward.6} parent=0 // pred_region
    _
  $region13: #{double_conv_forward.6} parent=0 // pred_fallthru
    _
  // Predicated region
  $region14: #{double_conv_forward.6} parent=0 // pred_check
    _
  $region15: #{double_conv_forward.6} parent=0 // pred_check_branch
    %1631 = sbr.rel (0) target = $region17
  $region16: #{double_conv_forward.6} parent=0 // pred_region
    _
  $region17: #{double_conv_forward.6} parent=0 // pred_fallthru
    _
  // Predicated region
  $region18: #{double_conv_forward.6} parent=0 // pred_check
    _
  $region19: #{double_conv_forward.6} parent=0 // pred_check_branch
    %1633 = sbr.rel (0) target = $region21
  $region20: #{double_conv_forward.6} parent=0 // pred_region
    _
  $region21: #{double_conv_forward.6} parent=0 // pred_fallthru
    _
  // Predicated region
  $region22: #{double_conv_forward.6} parent=0 // pred_check
    _
  $region23: #{double_conv_forward.6} parent=0 // pred_check_branch
    %1635 = sbr.rel (0) target = $region25
  $region24: #{double_conv_forward.6} parent=0 // pred_region
    _
  $region25: #{double_conv_forward.6} parent=0 // pred_fallthru
    _

// kernel: double_conv_forward.7
$region0: #{double_conv_forward.7}
  #allocation0 [shape = 'u32[]', space=smem, size = 0x4, offset = 0x4, fixed_abs, tag = 'smem constant byte address 0x4 - core index']
  #allocation1 [shape = 'u32[144,128]{1,0:T(1,128)}', space=vmem, size = 0x12000, scoped, tag = 'internal scratch']
  %s0 = inlined_call_operand.vmem [shape: bf16[512,384], index: 0, kind: input, shape index: {}]
  %s1 = inlined_call_operand.vmem [shape: bf16[384,128], index: 1, kind: input, shape index: {}]
  %s2 = inlined_call_operand.vmem [shape: f32[1,128], index: 2, kind: input, shape index: {}]
  %s3 = inlined_call_operand.vmem [shape: f32[1,128], index: 3, kind: input, shape index: {}]
  %s4 = inlined_call_operand.vmem [shape: f32[512,128], index: 4, kind: output, shape index: {}]
  %s5 = sld [smem:[#allocation0]]
  $region26: #{double_conv_forward.7} parent=0
    _
  %s7 = ssub.s32 1, %s5
  %s8 = scalar_select 0, %s7, %s5
  // Predicated region
  $region2: #{double_conv_forward.7} parent=0 // pred_check
    _
  $region3: #{double_conv_forward.7} parent=0 // pred_check_branch
    %10 = sbr.rel (0) target = $region5
  $region4: #{double_conv_forward.7} parent=0 // pred_region
    _
  $region5: #{double_conv_forward.7} parent=0 // pred_fallthru
    _
  // Predicated region
  $region6: #{double_conv_forward.7} parent=0 // pred_check
    _
  $region7: #{double_conv_forward.7} parent=0 // pred_check_branch
    %12 = sbr.rel (0) target = $region9
  $region8: #{double_conv_forward.7} parent=0 // pred_region
    _
  $region9: #{double_conv_forward.7} parent=0 // pred_fallthru
    _
  // Predicated region
  $region10: #{double_conv_forward.7} parent=0 // pred_check
    _
  $region11: #{double_conv_forward.7} parent=0 // pred_check_branch
    %14 = sbr.rel (0) target = $region13
  $region12: #{double_conv_forward.7} parent=0 // pred_region
    _
  $region13: #{double_conv_forward.7} parent=0 // pred_fallthru
    _
  // Predicated region
  $region14: #{double_conv_forward.7} parent=0 // pred_check
    _
  $region15: #{double_conv_forward.7} parent=0 // pred_check_branch
    %16 = sbr.rel (0) target = $region17
  $region16: #{double_conv_forward.7} parent=0 // pred_region
    _
  $region17: #{double_conv_forward.7} parent=0 // pred_fallthru
    _
  %v18 = vld [vmem:[%s0] sm:$0xff]
  %v19 = vld [vmem:[%s0 + $0x8] sm:$0xf]
  %v20 = vld [vmem:[%s0 + $0xc] sm:$0xff]
  %v21 = vld [vmem:[%s0 + $0x14] sm:$0xf]
  %v22 = vld [vmem:[%s0 + $0x18] sm:$0xff]
  %v23 = vld [vmem:[%s0 + $0x20] sm:$0xf]
  %v24 = vld [vmem:[%s0 + $0x24] sm:$0xff]
  %v25 = vld [vmem:[%s0 + $0x2c] sm:$0xf]
  %v26 = vld [vmem:[%s0 + $0x30] sm:$0xff]
  %v27 = vld [vmem:[%s0 + $0x38] sm:$0xf]
  %v28 = vld [vmem:[%s0 + $0x3c] sm:$0xff]
  %v29 = vld [vmem:[%s0 + $0x44] sm:$0xf]
  %v30 = vld [vmem:[%s0 + $0x48] sm:$0xff]
  %v31 = vld [vmem:[%s0 + $0x50] sm:$0xf]
  %v32 = vld [vmem:[%s0 + $0x54] sm:$0xff]
  %v33 = vld [vmem:[%s0 + $0x5c] sm:$0xf]
  %v34 = vld [vmem:[%s0 + $0x60] sm:$0xff]
  %v35 = vld [vmem:[%s0 + $0x68] sm:$0xf]
  %v36 = vld [vmem:[%s0 + $0x6c] sm:$0xff]
  %v37 = vld [vmem:[%s0 + $0x74] sm:$0xf]
  %v38 = vld [vmem:[%s0 + $0x78] sm:$0xff]
  %v39 = vld [vmem:[%s0 + $0x80] sm:$0xf]
  %v40 = vld [vmem:[%s0 + $0x84] sm:$0xff]
  %v41 = vld [vmem:[%s0 + $0x8c] sm:$0xf]
  %v42 = vld [vmem:[%s0 + $0x90] sm:$0xff]
  %v43 = vld [vmem:[%s0 + $0x98] sm:$0xf]
  %v44 = vld [vmem:[%s0 + $0x9c] sm:$0xff]
  %v45 = vld [vmem:[%s0 + $0xa4] sm:$0xf]
  %v46 = vld [vmem:[%s0 + $0xa8] sm:$0xff]
  %v47 = vld [vmem:[%s0 + $0xb0] sm:$0xf]
  %v48 = vld [vmem:[%s0 + $0xb4] sm:$0xff]
  %v49 = vld [vmem:[%s0 + $0xbc] sm:$0xf]
  %v50 = vld [vmem:[%s0 + $0xc0] sm:$0xff]
  %v51 = vld [vmem:[%s0 + $0xc8] sm:$0xf]
  %v52 = vld [vmem:[%s0 + $0xcc] sm:$0xff]
  %v53 = vld [vmem:[%s0 + $0xd4] sm:$0xf]
  %v54 = vld [vmem:[%s0 + $0xd8] sm:$0xff]
  %v55 = vld [vmem:[%s0 + $0xe0] sm:$0xf]
  %v56 = vld [vmem:[%s0 + $0xe4] sm:$0xff]
  %v57 = vld [vmem:[%s0 + $0xec] sm:$0xf]
  %v58 = vld [vmem:[%s0 + $0xf0] sm:$0xff]
  %v59 = vld [vmem:[%s0 + $0xf8] sm:$0xf]
  %v60 = vld [vmem:[%s0 + $0xfc] sm:$0xff]
  %v61 = vld [vmem:[%s0 + $0x104] sm:$0xf]
  %v62 = vld [vmem:[%s0 + $0x108] sm:$0xff]
  %v63 = vld [vmem:[%s0 + $0x110] sm:$0xf]
  %v64 = vld [vmem:[%s0 + $0x114] sm:$0xff]
  %v65 = vld [vmem:[%s0 + $0x11c] sm:$0xf]
  %v66 = vld [vmem:[%s0 + $0x120] sm:$0xff]
  %v67 = vld [vmem:[%s0 + $0x128] sm:$0xf]
  %v68 = vld [vmem:[%s0 + $0x12c] sm:$0xff]
  %v69 = vld [vmem:[%s0 + $0x134] sm:$0xf]
  %v70 = vld [vmem:[%s0 + $0x138] sm:$0xff]
  %v71 = vld [vmem:[%s0 + $0x140] sm:$0xf]
  %v72 = vld [vmem:[%s0 + $0x144] sm:$0xff]
  %v73 = vld [vmem:[%s0 + $0x14c] sm:$0xf]
  %v74 = vld [vmem:[%s0 + $0x150] sm:$0xff]
  %v75 = vld [vmem:[%s0 + $0x158] sm:$0xf]
  %v76 = vld [vmem:[%s0 + $0x15c] sm:$0xff]
  %v77 = vld [vmem:[%s0 + $0x164] sm:$0xf]
  %v78 = vld [vmem:[%s0 + $0x168] sm:$0xff]
  %v79 = vld [vmem:[%s0 + $0x170] sm:$0xf]
  %v80 = vld [vmem:[%s0 + $0x174] sm:$0xff]
  %v81 = vld [vmem:[%s0 + $0x17c] sm:$0xf]
  %v82 = vld [vmem:[%s0 + $0x180] sm:$0xff]
  %v83 = vld [vmem:[%s0 + $0x188] sm:$0xf]
  %v84 = vld [vmem:[%s0 + $0x18c] sm:$0xff]
  %v85 = vld [vmem:[%s0 + $0x194] sm:$0xf]
  %v86 = vld [vmem:[%s0 + $0x198] sm:$0xff]
  %v87 = vld [vmem:[%s0 + $0x1a0] sm:$0xf]
  %v88 = vld [vmem:[%s0 + $0x1a4] sm:$0xff]
  %v89 = vld [vmem:[%s0 + $0x1ac] sm:$0xf]
  %v90 = vld [vmem:[%s0 + $0x1b0] sm:$0xff]
  %v91 = vld [vmem:[%s0 + $0x1b8] sm:$0xf]
  %v92 = vld [vmem:[%s0 + $0x1bc] sm:$0xff]
  %v93 = vld [vmem:[%s0 + $0x1c4] sm:$0xf]
  %v94 = vld [vmem:[%s0 + $0x1c8] sm:$0xff]
  %v95 = vld [vmem:[%s0 + $0x1d0] sm:$0xf]
  %v96 = vld [vmem:[%s0 + $0x1d4] sm:$0xff]
  %v97 = vld [vmem:[%s0 + $0x1dc] sm:$0xf]
  %v98 = vld [vmem:[%s0 + $0x1e0] sm:$0xff]
  %v99 = vld [vmem:[%s0 + $0x1e8] sm:$0xf]
  %v100 = vld [vmem:[%s0 + $0x1ec] sm:$0xff]
  %v101 = vld [vmem:[%s0 + $0x1f4] sm:$0xf]
  %v102 = vld [vmem:[%s0 + $0x1f8] sm:$0xff]
  %v103 = vld [vmem:[%s0 + $0x200] sm:$0xf]
  %v104 = vld [vmem:[%s0 + $0x204] sm:$0xff]
  %v105 = vld [vmem:[%s0 + $0x20c] sm:$0xf]
  %v106 = vld [vmem:[%s0 + $0x210] sm:$0xff]
  %v107 = vld [vmem:[%s0 + $0x218] sm:$0xf]
  %v108 = vld [vmem:[%s0 + $0x21c] sm:$0xff]
  %v109 = vld [vmem:[%s0 + $0x224] sm:$0xf]
  %v110 = vld [vmem:[%s0 + $0x228] sm:$0xff]
  %v111 = vld [vmem:[%s0 + $0x230] sm:$0xf]
  %v112 = vld [vmem:[%s0 + $0x234] sm:$0xff]
  %v113 = vld [vmem:[%s0 + $0x23c] sm:$0xf]
  %v114 = vld [vmem:[%s0 + $0x240] sm:$0xff]
  %v115 = vld [vmem:[%s0 + $0x248] sm:$0xf]
  %v116 = vld [vmem:[%s0 + $0x24c] sm:$0xff]
  %v117 = vld [vmem:[%s0 + $0x254] sm:$0xf]
  %v118 = vld [vmem:[%s0 + $0x258] sm:$0xff]
  %v119 = vld [vmem:[%s0 + $0x260] sm:$0xf]
  %v120 = vld [vmem:[%s0 + $0x264] sm:$0xff]
  %v121 = vld [vmem:[%s0 + $0x26c] sm:$0xf]
  %v122 = vld [vmem:[%s0 + $0x270] sm:$0xff]
  %v123 = vld [vmem:[%s0 + $0x278] sm:$0xf]
  %v124 = vld [vmem:[%s0 + $0x27c] sm:$0xff]
  %v125 = vld [vmem:[%s0 + $0x284] sm:$0xf]
  %v126 = vld [vmem:[%s0 + $0x288] sm:$0xff]
  %v127 = vld [vmem:[%s0 + $0x290] sm:$0xf]
  %v128 = vld [vmem:[%s0 + $0x294] sm:$0xff]
  %v129 = vld [vmem:[%s0 + $0x29c] sm:$0xf]
  %v130 = vld [vmem:[%s0 + $0x2a0] sm:$0xff]
  %v131 = vld [vmem:[%s0 + $0x2a8] sm:$0xf]
  %v132 = vld [vmem:[%s0 + $0x2ac] sm:$0xff]
  %v133 = vld [vmem:[%s0 + $0x2b4] sm:$0xf]
  %v134 = vld [vmem:[%s0 + $0x2b8] sm:$0xff]
  %v135 = vld [vmem:[%s0 + $0x2c0] sm:$0xf]
  %v136 = vld [vmem:[%s0 + $0x2c4] sm:$0xff]
  %v137 = vld [vmem:[%s0 + $0x2cc] sm:$0xf]
  %v138 = vld [vmem:[%s0 + $0x2d0] sm:$0xff]
  %v139 = vld [vmem:[%s0 + $0x2d8] sm:$0xf]
  %v140 = vld [vmem:[%s0 + $0x2dc] sm:$0xff]
  %v141 = vld [vmem:[%s0 + $0x2e4] sm:$0xf]
  %v142 = vld [vmem:[%s0 + $0x2e8] sm:$0xff]
  %v143 = vld [vmem:[%s0 + $0x2f0] sm:$0xf]
  %v144 = vld [vmem:[%s0 + $0x2f4] sm:$0xff]
  %v145 = vld [vmem:[%s0 + $0x2fc] sm:$0xf]
  %v146 = vld [vmem:[%s1] sm:$0xf]
  %v147 = vld [vmem:[%s1 + $0x4] sm:$0xf]
  %v148 = vld [vmem:[%s1 + $0x8] sm:$0xf]
  %v149 = vld [vmem:[%s1 + $0xc] sm:$0xf]
  %v150 = vld [vmem:[%s1 + $0x10] sm:$0xf]
  %v151 = vld [vmem:[%s1 + $0x14] sm:$0xf]
  %v152 = vld [vmem:[%s1 + $0x18] sm:$0xf]
  %v153 = vld [vmem:[%s1 + $0x1c] sm:$0xf]
  %v154 = vld [vmem:[%s1 + $0x20] sm:$0xf]
  %v155 = vld [vmem:[%s1 + $0x24] sm:$0xf]
  %v156 = vld [vmem:[%s1 + $0x28] sm:$0xf]
  %v157 = vld [vmem:[%s1 + $0x2c] sm:$0xf]
  %v158 = vld [vmem:[%s1 + $0x30] sm:$0xf]
  %v159 = vld [vmem:[%s1 + $0x34] sm:$0xf]
  %v160 = vld [vmem:[%s1 + $0x38] sm:$0xf]
  %v161 = vld [vmem:[%s1 + $0x3c] sm:$0xf]
  %v162 = vld [vmem:[%s1 + $0x40] sm:$0xf]
  %v163 = vld [vmem:[%s1 + $0x44] sm:$0xf]
  %v164 = vld [vmem:[%s1 + $0x48] sm:$0xf]
  %v165 = vld [vmem:[%s1 + $0x4c] sm:$0xf]
  %v166 = vld [vmem:[%s1 + $0x50] sm:$0xf]
  %v167 = vld [vmem:[%s1 + $0x54] sm:$0xf]
  %v168 = vld [vmem:[%s1 + $0x58] sm:$0xf]
  %v169 = vld [vmem:[%s1 + $0x5c] sm:$0xf]
  %v170 = vld [vmem:[%s1 + $0x60] sm:$0xf]
  %v171 = vld [vmem:[%s1 + $0x64] sm:$0xf]
  %v172 = vld [vmem:[%s1 + $0x68] sm:$0xf]
  %v173 = vld [vmem:[%s1 + $0x6c] sm:$0xf]
  %v174 = vld [vmem:[%s1 + $0x70] sm:$0xf]
  %v175 = vld [vmem:[%s1 + $0x74] sm:$0xf]
  %v176 = vld [vmem:[%s1 + $0x78] sm:$0xf]
  %v177 = vld [vmem:[%s1 + $0x7c] sm:$0xf]
  %v178 = vld [vmem:[%s1 + $0x80] sm:$0xf]
  %v179 = vld [vmem:[%s1 + $0x84] sm:$0xf]
  %v180 = vld [vmem:[%s1 + $0x88] sm:$0xf]
  %v181 = vld [vmem:[%s1 + $0x8c] sm:$0xf]
  %v182 = vld [vmem:[%s1 + $0x90] sm:$0xf]
  %v183 = vld [vmem:[%s1 + $0x94] sm:$0xf]
  %v184 = vld [vmem:[%s1 + $0x98] sm:$0xf]
  %v185 = vld [vmem:[%s1 + $0x9c] sm:$0xf]
  %v186 = vld [vmem:[%s1 + $0xa0] sm:$0xf]
  %v187 = vld [vmem:[%s1 + $0xa4] sm:$0xf]
  %v188 = vld [vmem:[%s1 + $0xa8] sm:$0xf]
  %v189 = vld [vmem:[%s1 + $0xac] sm:$0xf]
  %v190 = vld [vmem:[%s1 + $0xb0] sm:$0xf]
  %v191 = vld [vmem:[%s1 + $0xb4] sm:$0xf]
  %v192 = vld [vmem:[%s1 + $0xb8] sm:$0xf]
  %v193 = vld [vmem:[%s1 + $0xbc] sm:$0xf]
  %v322 = vunpack.c.l.b16 %v18
  %v323 = vunpack.c.h.b16 %v18
  %v324 = vunpack.c.l.b16 %v19
  %v325 = vunpack.c.l.b16 %v20
  %v326 = vunpack.c.h.b16 %v20
  %v327 = vunpack.c.l.b16 %v21
  %v328 = vunpack.c.l.b16 %v22
  %v329 = vunpack.c.h.b16 %v22
  %v330 = vunpack.c.l.b16 %v23
  %v331 = vunpack.c.l.b16 %v24
  %v332 = vunpack.c.h.b16 %v24
  %v333 = vunpack.c.l.b16 %v25
  %v334 = vunpack.c.l.b16 %v26
  %v335 = vunpack.c.h.b16 %v26
  %v336 = vunpack.c.l.b16 %v27
  %v337 = vunpack.c.l.b16 %v28
  %v338 = vunpack.c.h.b16 %v28
  %v339 = vunpack.c.l.b16 %v29
  %v340 = vunpack.c.l.b16 %v30
  %v341 = vunpack.c.h.b16 %v30
  %v342 = vunpack.c.l.b16 %v31
  %v343 = vunpack.c.l.b16 %v32
  %v344 = vunpack.c.h.b16 %v32
  %v345 = vunpack.c.l.b16 %v33
  %v346 = vunpack.c.l.b16 %v34
  %v347 = vunpack.c.h.b16 %v34
  %v348 = vunpack.c.l.b16 %v35
  %v349 = vunpack.c.l.b16 %v36
  %v350 = vunpack.c.h.b16 %v36
  %v351 = vunpack.c.l.b16 %v37
  %v352 = vunpack.c.l.b16 %v38
  %v353 = vunpack.c.h.b16 %v38
  %v354 = vunpack.c.l.b16 %v39
  %v355 = vunpack.c.l.b16 %v40
  %v356 = vunpack.c.h.b16 %v40
  %v357 = vunpack.c.l.b16 %v41
  %v358 = vunpack.c.l.b16 %v42
  %v359 = vunpack.c.h.b16 %v42
  %v360 = vunpack.c.l.b16 %v43
  %v361 = vunpack.c.l.b16 %v44
  %v362 = vunpack.c.h.b16 %v44
  %v363 = vunpack.c.l.b16 %v45
  %v364 = vunpack.c.l.b16 %v46
  %v365 = vunpack.c.h.b16 %v46
  %v366 = vunpack.c.l.b16 %v47
  %v367 = vunpack.c.l.b16 %v48
  %v368 = vunpack.c.h.b16 %v48
  %v369 = vunpack.c.l.b16 %v49
  %v370 = vunpack.c.l.b16 %v50
  %v371 = vunpack.c.h.b16 %v50
  %v372 = vunpack.c.l.b16 %v51
  %v373 = vunpack.c.l.b16 %v52
  %v374 = vunpack.c.h.b16 %v52
  %v375 = vunpack.c.l.b16 %v53
  %v376 = vunpack.c.l.b16 %v54
  %v377 = vunpack.c.h.b16 %v54
  %v378 = vunpack.c.l.b16 %v55
  %v379 = vunpack.c.l.b16 %v56
  %v380 = vunpack.c.h.b16 %v56
  %v381 = vunpack.c.l.b16 %v57
  %v382 = vunpack.c.l.b16 %v58
  %v383 = vunpack.c.h.b16 %v58
  %v384 = vunpack.c.l.b16 %v59
  %v385 = vunpack.c.l.b16 %v60
  %v386 = vunpack.c.h.b16 %v60
  %v387 = vunpack.c.l.b16 %v61
  %v388 = vunpack.c.l.b16 %v62
  %v389 = vunpack.c.h.b16 %v62
  %v390 = vunpack.c.l.b16 %v63
  %v391 = vunpack.c.l.b16 %v64
  %v392 = vunpack.c.h.b16 %v64
  %v393 = vunpack.c.l.b16 %v65
  %v394 = vunpack.c.l.b16 %v66
  %v395 = vunpack.c.h.b16 %v66
  %v396 = vunpack.c.l.b16 %v67
  %v397 = vunpack.c.l.b16 %v68
  %v398 = vunpack.c.h.b16 %v68
  %v399 = vunpack.c.l.b16 %v69
  %v400 = vunpack.c.l.b16 %v70
  %v401 = vunpack.c.h.b16 %v70
  %v402 = vunpack.c.l.b16 %v71
  %v403 = vunpack.c.l.b16 %v72
  %v404 = vunpack.c.h.b16 %v72
  %v405 = vunpack.c.l.b16 %v73
  %v406 = vunpack.c.l.b16 %v74
  %v407 = vunpack.c.h.b16 %v74
  %v408 = vunpack.c.l.b16 %v75
  %v409 = vunpack.c.l.b16 %v76
  %v410 = vunpack.c.h.b16 %v76
  %v411 = vunpack.c.l.b16 %v77
  %v412 = vunpack.c.l.b16 %v78
  %v413 = vunpack.c.h.b16 %v78
  %v414 = vunpack.c.l.b16 %v79
  %v415 = vunpack.c.l.b16 %v80
  %v416 = vunpack.c.h.b16 %v80
  %v417 = vunpack.c.l.b16 %v81
  %v418 = vunpack.c.l.b16 %v82
  %v419 = vunpack.c.h.b16 %v82
  %v420 = vunpack.c.l.b16 %v83
  %v421 = vunpack.c.l.b16 %v84
  %v422 = vunpack.c.h.b16 %v84
  %v423 = vunpack.c.l.b16 %v85
  %v424 = vunpack.c.l.b16 %v86
  %v425 = vunpack.c.h.b16 %v86
  %v426 = vunpack.c.l.b16 %v87
  %v427 = vunpack.c.l.b16 %v88
  %v428 = vunpack.c.h.b16 %v88
  %v429 = vunpack.c.l.b16 %v89
  %v430 = vunpack.c.l.b16 %v90
  %v431 = vunpack.c.h.b16 %v90
  %v432 = vunpack.c.l.b16 %v91
  %v433 = vunpack.c.l.b16 %v92
  %v434 = vunpack.c.h.b16 %v92
  %v435 = vunpack.c.l.b16 %v93
  %v436 = vunpack.c.l.b16 %v94
  %v437 = vunpack.c.h.b16 %v94
  %v438 = vunpack.c.l.b16 %v95
  %v439 = vunpack.c.l.b16 %v96
  %v440 = vunpack.c.h.b16 %v96
  %v441 = vunpack.c.l.b16 %v97
  %v442 = vunpack.c.l.b16 %v98
  %v443 = vunpack.c.h.b16 %v98
  %v444 = vunpack.c.l.b16 %v99
  %v445 = vunpack.c.l.b16 %v100
  %v446 = vunpack.c.h.b16 %v100
  %v447 = vunpack.c.l.b16 %v101
  %v448 = vunpack.c.l.b16 %v102
  %v449 = vunpack.c.h.b16 %v102
  %v450 = vunpack.c.l.b16 %v103
  %v451 = vunpack.c.l.b16 %v104
  %v452 = vunpack.c.h.b16 %v104
  %v453 = vunpack.c.l.b16 %v105
  %v454 = vunpack.c.l.b16 %v106
  %v455 = vunpack.c.h.b16 %v106
  %v456 = vunpack.c.l.b16 %v107
  %v457 = vunpack.c.l.b16 %v108
  %v458 = vunpack.c.h.b16 %v108
  %v459 = vunpack.c.l.b16 %v109
  %v460 = vunpack.c.l.b16 %v110
  %v461 = vunpack.c.h.b16 %v110
  %v462 = vunpack.c.l.b16 %v111
  %v463 = vunpack.c.l.b16 %v112
  %v464 = vunpack.c.h.b16 %v112
  %v465 = vunpack.c.l.b16 %v113
  %v466 = vunpack.c.l.b16 %v114
  %v467 = vunpack.c.h.b16 %v114
  %v468 = vunpack.c.l.b16 %v115
  %v469 = vunpack.c.l.b16 %v116
  %v470 = vunpack.c.h.b16 %v116
  %v471 = vunpack.c.l.b16 %v117
  %v472 = vunpack.c.l.b16 %v118
  %v473 = vunpack.c.h.b16 %v118
  %v474 = vunpack.c.l.b16 %v119
  %v475 = vunpack.c.l.b16 %v120
  %v476 = vunpack.c.h.b16 %v120
  %v477 = vunpack.c.l.b16 %v121
  %v478 = vunpack.c.l.b16 %v122
  %v479 = vunpack.c.h.b16 %v122
  %v480 = vunpack.c.l.b16 %v123
  %v481 = vunpack.c.l.b16 %v124
  %v482 = vunpack.c.h.b16 %v124
  %v483 = vunpack.c.l.b16 %v125
  %v484 = vunpack.c.l.b16 %v126
  %v485 = vunpack.c.h.b16 %v126
  %v486 = vunpack.c.l.b16 %v127
  %v487 = vunpack.c.l.b16 %v128
  %v488 = vunpack.c.h.b16 %v128
  %v489 = vunpack.c.l.b16 %v129
  %v490 = vunpack.c.l.b16 %v130
  %v491 = vunpack.c.h.b16 %v130
  %v492 = vunpack.c.l.b16 %v131
  %v493 = vunpack.c.l.b16 %v132
  %v494 = vunpack.c.h.b16 %v132
  %v495 = vunpack.c.l.b16 %v133
  %v496 = vunpack.c.l.b16 %v134
  %v497 = vunpack.c.h.b16 %v134
  %v498 = vunpack.c.l.b16 %v135
  %v499 = vunpack.c.l.b16 %v136
  %v500 = vunpack.c.h.b16 %v136
  %v501 = vunpack.c.l.b16 %v137
  %v502 = vunpack.c.l.b16 %v138
  %v503 = vunpack.c.h.b16 %v138
  %v504 = vunpack.c.l.b16 %v139
  %v505 = vunpack.c.l.b16 %v140
  %v506 = vunpack.c.h.b16 %v140
  %v507 = vunpack.c.l.b16 %v141
  %v508 = vunpack.c.l.b16 %v142
  %v509 = vunpack.c.h.b16 %v142
  %v510 = vunpack.c.l.b16 %v143
  %v511 = vunpack.c.l.b16 %v144
  %v512 = vunpack.c.h.b16 %v144
  %v513 = vunpack.c.l.b16 %v145
  %v514 = vpack.c.b16 %v325, %v322
  %v515 = vpack.c.b16 %v326, %v323
  %v516 = vpack.c.b16 %v327, %v324
  %v517 = vpack.c.b16 %v331, %v328
  %v518 = vpack.c.b16 %v332, %v329
  %v519 = vpack.c.b16 %v333, %v330
  %v520 = vpack.c.b16 %v337, %v334
  %v521 = vpack.c.b16 %v338, %v335
  %v522 = vpack.c.b16 %v339, %v336
  %v523 = vpack.c.b16 %v343, %v340
  %v524 = vpack.c.b16 %v344, %v341
  %v525 = vpack.c.b16 %v345, %v342
  %v526 = vpack.c.b16 %v349, %v346
  %v527 = vpack.c.b16 %v350, %v347
  %v528 = vpack.c.b16 %v351, %v348
  %v529 = vpack.c.b16 %v355, %v352
  %v530 = vpack.c.b16 %v356, %v353
  %v531 = vpack.c.b16 %v357, %v354
  %v532 = vpack.c.b16 %v361, %v358
  %v533 = vpack.c.b16 %v362, %v359
  %v534 = vpack.c.b16 %v363, %v360
  %v535 = vpack.c.b16 %v367, %v364
  %v536 = vpack.c.b16 %v368, %v365
  %v537 = vpack.c.b16 %v369, %v366
  %v538 = vpack.c.b16 %v373, %v370
  %v539 = vpack.c.b16 %v374, %v371
  %v540 = vpack.c.b16 %v375, %v372
  %v541 = vpack.c.b16 %v379, %v376
  %v542 = vpack.c.b16 %v380, %v377
  %v543 = vpack.c.b16 %v381, %v378
  %v544 = vpack.c.b16 %v385, %v382
  %v545 = vpack.c.b16 %v386, %v383
  %v546 = vpack.c.b16 %v387, %v384
  %v547 = vpack.c.b16 %v391, %v388
  %v548 = vpack.c.b16 %v392, %v389
  %v549 = vpack.c.b16 %v393, %v390
  %v550 = vpack.c.b16 %v397, %v394
  %v551 = vpack.c.b16 %v398, %v395
  %v552 = vpack.c.b16 %v399, %v396
  %v553 = vpack.c.b16 %v403, %v400
  %v554 = vpack.c.b16 %v404, %v401
  %v555 = vpack.c.b16 %v405, %v402
  %v556 = vpack.c.b16 %v409, %v406
  %v557 = vpack.c.b16 %v410, %v407
  %v558 = vpack.c.b16 %v411, %v408
  %v559 = vpack.c.b16 %v415, %v412
  %v560 = vpack.c.b16 %v416, %v413
  %v561 = vpack.c.b16 %v417, %v414
  %v562 = vpack.c.b16 %v421, %v418
  %v563 = vpack.c.b16 %v422, %v419
  %v564 = vpack.c.b16 %v423, %v420
  %v565 = vpack.c.b16 %v427, %v424
  %v566 = vpack.c.b16 %v428, %v425
  %v567 = vpack.c.b16 %v429, %v426
  %v568 = vpack.c.b16 %v433, %v430
  %v569 = vpack.c.b16 %v434, %v431
  %v570 = vpack.c.b16 %v435, %v432
  %v571 = vpack.c.b16 %v439, %v436
  %v572 = vpack.c.b16 %v440, %v437
  %v573 = vpack.c.b16 %v441, %v438
  %v574 = vpack.c.b16 %v445, %v442
  %v575 = vpack.c.b16 %v446, %v443
  %v576 = vpack.c.b16 %v447, %v444
  %v577 = vpack.c.b16 %v451, %v448
  %v578 = vpack.c.b16 %v452, %v449
  %v579 = vpack.c.b16 %v453, %v450
  %v580 = vpack.c.b16 %v457, %v454
  %v581 = vpack.c.b16 %v458, %v455
  %v582 = vpack.c.b16 %v459, %v456
  %v583 = vpack.c.b16 %v463, %v460
  %v584 = vpack.c.b16 %v464, %v461
  %v585 = vpack.c.b16 %v465, %v462
  %v586 = vpack.c.b16 %v469, %v466
  %v587 = vpack.c.b16 %v470, %v467
  %v588 = vpack.c.b16 %v471, %v468
  %v589 = vpack.c.b16 %v475, %v472
  %v590 = vpack.c.b16 %v476, %v473
  %v591 = vpack.c.b16 %v477, %v474
  %v592 = vpack.c.b16 %v481, %v478
  %v593 = vpack.c.b16 %v482, %v479
  %v594 = vpack.c.b16 %v483, %v480
  %v595 = vpack.c.b16 %v487, %v484
  %v596 = vpack.c.b16 %v488, %v485
  %v597 = vpack.c.b16 %v489, %v486
  %v598 = vpack.c.b16 %v493, %v490
  %v599 = vpack.c.b16 %v494, %v491
  %v600 = vpack.c.b16 %v495, %v492
  %v601 = vpack.c.b16 %v499, %v496
  %v602 = vpack.c.b16 %v500, %v497
  %v603 = vpack.c.b16 %v501, %v498
  %v604 = vpack.c.b16 %v505, %v502
  %v605 = vpack.c.b16 %v506, %v503
  %v606 = vpack.c.b16 %v507, %v504
  %v607 = vpack.c.b16 %v511, %v508
  %v608 = vpack.c.b16 %v512, %v509
  %v609 = vpack.c.b16 %v513, %v510
  %v754 = vunpack.c.l.b16 %v146
  %v755 = vunpack.c.l.b16 %v147
  %v756 = vunpack.c.l.b16 %v148
  %v757 = vunpack.c.l.b16 %v149
  %v758 = vunpack.c.l.b16 %v150
  %v759 = vunpack.c.l.b16 %v151
  %v760 = vunpack.c.l.b16 %v152
  %v761 = vunpack.c.l.b16 %v153
  %v762 = vunpack.c.l.b16 %v154
  %v763 = vunpack.c.l.b16 %v155
  %v764 = vunpack.c.l.b16 %v156
  %v765 = vunpack.c.l.b16 %v157
  %v766 = vunpack.c.l.b16 %v158
  %v767 = vunpack.c.l.b16 %v159
  %v768 = vunpack.c.l.b16 %v160
  %v769 = vunpack.c.l.b16 %v161
  %v770 = vunpack.c.l.b16 %v162
  %v771 = vunpack.c.l.b16 %v163
  %v772 = vunpack.c.l.b16 %v164
  %v773 = vunpack.c.l.b16 %v165
  %v774 = vunpack.c.l.b16 %v166
  %v775 = vunpack.c.l.b16 %v167
  %v776 = vunpack.c.l.b16 %v168
  %v777 = vunpack.c.l.b16 %v169
  %v778 = vunpack.c.l.b16 %v170
  %v779 = vunpack.c.l.b16 %v171
  %v780 = vunpack.c.l.b16 %v172
  %v781 = vunpack.c.l.b16 %v173
  %v782 = vunpack.c.l.b16 %v174
  %v783 = vunpack.c.l.b16 %v175
  %v784 = vunpack.c.l.b16 %v176
  %v785 = vunpack.c.l.b16 %v177
  %v786 = vunpack.c.l.b16 %v178
  %v787 = vunpack.c.l.b16 %v179
  %v788 = vunpack.c.l.b16 %v180
  %v789 = vunpack.c.l.b16 %v181
  %v790 = vunpack.c.l.b16 %v182
  %v791 = vunpack.c.l.b16 %v183
  %v792 = vunpack.c.l.b16 %v184
  %v793 = vunpack.c.l.b16 %v185
  %v794 = vunpack.c.l.b16 %v186
  %v795 = vunpack.c.l.b16 %v187
  %v796 = vunpack.c.l.b16 %v188
  %v797 = vunpack.c.l.b16 %v189
  %v798 = vunpack.c.l.b16 %v190
  %v799 = vunpack.c.l.b16 %v191
  %v800 = vunpack.c.l.b16 %v192
  %v801 = vunpack.c.l.b16 %v193
  %v802 = vpack.c.b16 %v755, %v754
  %v803 = vpack.c.b16 %v757, %v756
  %v804 = vpack.c.b16 %v759, %v758
  %v805 = vpack.c.b16 %v761, %v760
  %v806 = vpack.c.b16 %v763, %v762
  %v807 = vpack.c.b16 %v765, %v764
  %v808 = vpack.c.b16 %v767, %v766
  %v809 = vpack.c.b16 %v769, %v768
  %v810 = vpack.c.b16 %v771, %v770
  %v811 = vpack.c.b16 %v773, %v772
  %v812 = vpack.c.b16 %v775, %v774
  %v813 = vpack.c.b16 %v777, %v776
  %v814 = vpack.c.b16 %v779, %v778
  %v815 = vpack.c.b16 %v781, %v780
  %v816 = vpack.c.b16 %v783, %v782
  %v817 = vpack.c.b16 %v785, %v784
  %v818 = vpack.c.b16 %v787, %v786
  %v819 = vpack.c.b16 %v789, %v788
  %v820 = vpack.c.b16 %v791, %v790
  %v821 = vpack.c.b16 %v793, %v792
  %v822 = vpack.c.b16 %v795, %v794
  %v823 = vpack.c.b16 %v797, %v796
  %v824 = vpack.c.b16 %v799, %v798
  %v825 = vpack.c.b16 %v801, %v800
  %850 = vmatprep.subr.bf16.mxu0 0
  %851 = vmatpush1.bf16.msra.mxu0 %v802
  %852 = vmatprep.subr.bf16.mxu0 0
  %853 = vmatpush1.bf16.msra.mxu0 %v803
  %854 = vmatprep.subr.bf16.mxu0 0
  %855 = vmatpush1.bf16.msra.mxu0 %v804
  %856 = vmatprep.subr.bf16.mxu0 0
  %857 = vmatpush1.bf16.msra.mxu0 %v805
  %858 = vmatprep.subr.bf16.mxu0 0
  %859 = vmatpush1.bf16.msra.mxu0 %v806
  %860 = vmatprep.subr.bf16.mxu0 0
  %861 = vmatpush1.bf16.msra.mxu0 %v807
  %862 = vmatprep.subr.bf16.mxu0 0
  %863 = vmatpush1.bf16.msra.mxu0 %v808
  %864 = vmatprep.subr.bf16.mxu0 0
  %865 = vmatpush1.bf16.msra.mxu0 %v809
  %866 = vmatprep.subr.bf16.mxu0 0
  %867 = vmatpush1.bf16.msra.mxu0 %v810
  %868 = vmatprep.subr.bf16.mxu0 0
  %869 = vmatpush1.bf16.msra.mxu0 %v811
  %870 = vmatprep.subr.bf16.mxu0 0
  %871 = vmatpush1.bf16.msra.mxu0 %v812
  %872 = vmatprep.subr.bf16.mxu0 0
  %873 = vmatpush1.bf16.msra.mxu0 %v813
  %874 = vmatprep.subr.bf16.mxu0 0
  %875 = vmatpush1.bf16.msra.mxu0 %v814
  %876 = vmatprep.subr.bf16.mxu0 0
  %877 = vmatpush1.bf16.msra.mxu0 %v815
  %878 = vmatprep.subr.bf16.mxu0 0
  %879 = vmatpush1.bf16.msra.mxu0 %v816
  %880 = vmatprep.subr.bf16.mxu0 0
  %881 = vmatpush1.bf16.msra.mxu0 %v817
  %882 = vmatprep.mubr.bf16.mxu0 %v515
  %883 = vmatmul.mubr.bf16.gmra.mrb[0].mxu0 %v514
  %v884 = vpop.f32.mrb[0].mxu0
  %v885 = vadd.f32 0.0, %v884
  %v886 = vpop.f32.mrb[0].mxu0
  %v887 = vpop.f32.mrb[0].mxu0
  %v888 = vadd.f32 0.0, %v887
  %v889 = vpop.f32.mrb[0].mxu0
  %890 = vmatprep.mubr.bf16.mxu0 %v518
  %891 = vmatmul.mubr.bf16.gmra.mrb[0].mxu0 %v517
  %v892 = vpop.f32.mrb[0].mxu0
  %v893 = vadd.f32 0.0, %v892
  %v894 = vpop.f32.mrb[0].mxu0
  %v895 = vpop.f32.mrb[0].mxu0
  %v896 = vadd.f32 0.0, %v895
  %v897 = vpop.f32.mrb[0].mxu0
  %898 = vmatprep.mubr.bf16.mxu0 %v521
  %899 = vmatmul.mubr.bf16.gmra.mrb[0].mxu0 %v520
  %v900 = vpop.f32.mrb[0].mxu0
  %v901 = vadd.f32 0.0, %v900
  %v902 = vpop.f32.mrb[0].mxu0
  %v903 = vpop.f32.mrb[0].mxu0
  %v904 = vadd.f32 0.0, %v903
  %v905 = vpop.f32.mrb[0].mxu0
  %906 = vmatprep.mubr.bf16.mxu0 %v524
  %907 = vmatmul.mubr.bf16.gmra.mrb[0].mxu0 %v523
  %v908 = vpop.f32.mrb[0].mxu0
  %v909 = vadd.f32 0.0, %v908
  %v910 = vpop.f32.mrb[0].mxu0
  %v911 = vpop.f32.mrb[0].mxu0
  %v912 = vadd.f32 0.0, %v911
  %v913 = vpop.f32.mrb[0].mxu0
  %914 = vmatprep.mubr.bf16.mxu0 %v527
  %915 = vmatmul.mubr.bf16.gmra.mrb[0].mxu0 %v526
  %v916 = vpop.f32.mrb[0].mxu0
  %v917 = vadd.f32 0.0, %v916
  %v918 = vpop.f32.mrb[0].mxu0
  %v919 = vpop.f32.mrb[0].mxu0
  %v920 = vadd.f32 0.0, %v919
  %v921 = vpop.f32.mrb[0].mxu0
  %922 = vmatprep.mubr.bf16.mxu0 %v530
  %923 = vmatmul.mubr.bf16.gmra.mrb[0].mxu0 %v529
  %v924 = vpop.f32.mrb[0].mxu0
  %v925 = vadd.f32 0.0, %v924
  %v926 = vpop.f32.mrb[0].mxu0
  %v927 = vpop.f32.mrb[0].mxu0
  %v928 = vadd.f32 0.0, %v927
  %v929 = vpop.f32.mrb[0].mxu0
  %930 = vmatprep.mubr.bf16.mxu0 %v533
  %931 = vmatmul.mubr.bf16.gmra.mrb[0].mxu0 %v532
  %v932 = vpop.f32.mrb[0].mxu0
  %v933 = vadd.f32 0.0, %v932
  %v934 = vpop.f32.mrb[0].mxu0
  %v935 = vpop.f32.mrb[0].mxu0
  %v936 = vadd.f32 0.0, %v935
  %v937 = vpop.f32.mrb[0].mxu0
  %938 = vmatprep.mubr.bf16.mxu0 %v536
  %939 = vmatmul.mubr.bf16.gmra.mrb[0].mxu0 %v535
  %v940 = vpop.f32.mrb[0].mxu0
  %v941 = vadd.f32 0.0, %v940
  %v942 = vpop.f32.mrb[0].mxu0
  %v943 = vpop.f32.mrb[0].mxu0
  %v944 = vadd.f32 0.0, %v943
  %v945 = vpop.f32.mrb[0].mxu0
  %946 = vmatprep.mubr.bf16.mxu0 %v539
  %947 = vmatmul.mubr.bf16.gmra.mrb[0].mxu0 %v538
  %v948 = vpop.f32.mrb[0].mxu0
  %v949 = vadd.f32 0.0, %v948
  %v950 = vpop.f32.mrb[0].mxu0
  %v951 = vpop.f32.mrb[0].mxu0
  %v952 = vadd.f32 0.0, %v951
  %v953 = vpop.f32.mrb[0].mxu0
  %954 = vmatprep.mubr.bf16.mxu0 %v542
  %955 = vmatmul.mubr.bf16.gmra.mrb[0].mxu0 %v541
  %v956 = vpop.f32.mrb[0].mxu0
  %v957 = vadd.f32 0.0, %v956
  %v958 = vpop.f32.mrb[0].mxu0
  %v959 = vpop.f32.mrb[0].mxu0
  %v960 = vadd.f32 0.0, %v959
  %v961 = vpop.f32.mrb[0].mxu0
  %962 = vmatprep.mubr.bf16.mxu0 %v545
  %963 = vmatmul.mubr.bf16.gmra.mrb[0].mxu0 %v544
  %v964 = vpop.f32.mrb[0].mxu0
  %v965 = vadd.f32 0.0, %v964
  %v966 = vpop.f32.mrb[0].mxu0
  %v967 = vpop.f32.mrb[0].mxu0
  %v968 = vadd.f32 0.0, %v967
  %v969 = vpop.f32.mrb[0].mxu0
  %970 = vmatprep.mubr.bf16.mxu0 %v548
  %971 = vmatmul.mubr.bf16.gmra.mrb[0].mxu0 %v547
  %v972 = vpop.f32.mrb[0].mxu0
  %v973 = vadd.f32 0.0, %v972
  %v974 = vpop.f32.mrb[0].mxu0
  %v975 = vpop.f32.mrb[0].mxu0
  %v976 = vadd.f32 0.0, %v975
  %v977 = vpop.f32.mrb[0].mxu0
  %978 = vmatprep.mubr.bf16.mxu0 %v551
  %979 = vmatmul.mubr.bf16.gmra.mrb[0].mxu0 %v550
  %v980 = vpop.f32.mrb[0].mxu0
  %v981 = vadd.f32 0.0, %v980
  %v982 = vpop.f32.mrb[0].mxu0
  %v983 = vpop.f32.mrb[0].mxu0
  %v984 = vadd.f32 0.0, %v983
  %v985 = vpop.f32.mrb[0].mxu0
  %986 = vmatprep.mubr.bf16.mxu0 %v554
  %987 = vmatmul.mubr.bf16.gmra.mrb[0].mxu0 %v553
  %v988 = vpop.f32.mrb[0].mxu0
  %v989 = vadd.f32 0.0, %v988
  %v990 = vpop.f32.mrb[0].mxu0
  %v991 = vpop.f32.mrb[0].mxu0
  %v992 = vadd.f32 0.0, %v991
  %v993 = vpop.f32.mrb[0].mxu0
  %994 = vmatprep.mubr.bf16.mxu0 %v557
  %995 = vmatmul.mubr.bf16.gmra.mrb[0].mxu0 %v556
  %v996 = vpop.f32.mrb[0].mxu0
  %v997 = vadd.f32 0.0, %v996
  %v998 = vpop.f32.mrb[0].mxu0
  %v999 = vpop.f32.mrb[0].mxu0
  %v1000 = vadd.f32 0.0, %v999
  %v1001 = vpop.f32.mrb[0].mxu0
  %1002 = vmatprep.mubr.bf16.mxu0 %v560
  %1003 = vmatmul.mubr.bf16.gmra.mrb[0].mxu0 %v559
  %v1004 = vpop.f32.mrb[0].mxu0
  %v1005 = vadd.f32 0.0, %v1004
  %v1006 = vpop.f32.mrb[0].mxu0
  %v1007 = vpop.f32.mrb[0].mxu0
  %v1008 = vadd.f32 0.0, %v1007
  %v1009 = vpop.f32.mrb[0].mxu0
  %1010 = vmatprep.mubr.bf16.mxu0 %v563
  %1011 = vmatmul.mubr.bf16.gmra.mrb[0].mxu0 %v562
  %v1012 = vpop.f32.mrb[0].mxu0
  %v1013 = vadd.f32 0.0, %v1012
  %v1014 = vpop.f32.mrb[0].mxu0
  %v1015 = vpop.f32.mrb[0].mxu0
  %v1016 = vadd.f32 0.0, %v1015
  %v1017 = vpop.f32.mrb[0].mxu0
  %1018 = vmatprep.mubr.bf16.mxu0 %v566
  %1019 = vmatmul.mubr.bf16.gmra.mrb[0].mxu0 %v565
  %v1020 = vpop.f32.mrb[0].mxu0
  %v1021 = vadd.f32 0.0, %v1020
  %v1022 = vpop.f32.mrb[0].mxu0
  %v1023 = vpop.f32.mrb[0].mxu0
  %v1024 = vadd.f32 0.0, %v1023
  %v1025 = vpop.f32.mrb[0].mxu0
  %1026 = vmatprep.mubr.bf16.mxu0 %v569
  %1027 = vmatmul.mubr.bf16.gmra.mrb[0].mxu0 %v568
  %v1028 = vpop.f32.mrb[0].mxu0
  %v1029 = vadd.f32 0.0, %v1028
  %v1030 = vpop.f32.mrb[0].mxu0
  %v1031 = vpop.f32.mrb[0].mxu0
  %v1032 = vadd.f32 0.0, %v1031
  %v1033 = vpop.f32.mrb[0].mxu0
  %1034 = vmatprep.mubr.bf16.mxu0 %v572
  %1035 = vmatmul.mubr.bf16.gmra.mrb[0].mxu0 %v571
  %v1036 = vpop.f32.mrb[0].mxu0
  %v1037 = vadd.f32 0.0, %v1036
  %v1038 = vpop.f32.mrb[0].mxu0
  %v1039 = vpop.f32.mrb[0].mxu0
  %v1040 = vadd.f32 0.0, %v1039
  %v1041 = vpop.f32.mrb[0].mxu0
  %1042 = vmatprep.mubr.bf16.mxu0 %v575
  %1043 = vmatmul.mubr.bf16.gmra.mrb[0].mxu0 %v574
  %v1044 = vpop.f32.mrb[0].mxu0
  %v1045 = vadd.f32 0.0, %v1044
  %v1046 = vpop.f32.mrb[0].mxu0
  %v1047 = vpop.f32.mrb[0].mxu0
  %v1048 = vadd.f32 0.0, %v1047
  %v1049 = vpop.f32.mrb[0].mxu0
  %1050 = vmatprep.mubr.bf16.mxu0 %v578
  %1051 = vmatmul.mubr.bf16.gmra.mrb[0].mxu0 %v577
  %v1052 = vpop.f32.mrb[0].mxu0
  %v1053 = vadd.f32 0.0, %v1052
  %v1054 = vpop.f32.mrb[0].mxu0
  %v1055 = vpop.f32.mrb[0].mxu0
  %v1056 = vadd.f32 0.0, %v1055
  %v1057 = vpop.f32.mrb[0].mxu0
  %1058 = vmatprep.mubr.bf16.mxu0 %v581
  %1059 = vmatmul.mubr.bf16.gmra.mrb[0].mxu0 %v580
  %v1060 = vpop.f32.mrb[0].mxu0
  %v1061 = vadd.f32 0.0, %v1060
  %v1062 = vpop.f32.mrb[0].mxu0
  %v1063 = vpop.f32.mrb[0].mxu0
  %v1064 = vadd.f32 0.0, %v1063
  %v1065 = vpop.f32.mrb[0].mxu0
  %1066 = vmatprep.mubr.bf16.mxu0 %v584
  %1067 = vmatmul.mubr.bf16.gmra.mrb[0].mxu0 %v583
  %v1068 = vpop.f32.mrb[0].mxu0
  %v1069 = vadd.f32 0.0, %v1068
  %v1070 = vpop.f32.mrb[0].mxu0
  %v1071 = vpop.f32.mrb[0].mxu0
  %v1072 = vadd.f32 0.0, %v1071
  %v1073 = vpop.f32.mrb[0].mxu0
  %1074 = vmatprep.mubr.bf16.mxu0 %v587
  %1075 = vmatmul.mubr.bf16.gmra.mrb[0].mxu0 %v586
  %v1076 = vpop.f32.mrb[0].mxu0
  %v1077 = vadd.f32 0.0, %v1076
  %v1078 = vpop.f32.mrb[0].mxu0
  %v1079 = vpop.f32.mrb[0].mxu0
  %v1080 = vadd.f32 0.0, %v1079
  %v1081 = vpop.f32.mrb[0].mxu0
  %1082 = vmatprep.mubr.bf16.mxu0 %v590
  %1083 = vmatmul.mubr.bf16.gmra.mrb[0].mxu0 %v589
  %v1084 = vpop.f32.mrb[0].mxu0
  %v1085 = vadd.f32 0.0, %v1084
  %v1086 = vpop.f32.mrb[0].mxu0
  %v1087 = vpop.f32.mrb[0].mxu0
  %v1088 = vadd.f32 0.0, %v1087
  %v1089 = vpop.f32.mrb[0].mxu0
  %1090 = vmatprep.mubr.bf16.mxu0 %v593
  %1091 = vmatmul.mubr.bf16.gmra.mrb[0].mxu0 %v592
  %v1092 = vpop.f32.mrb[0].mxu0
  %v1093 = vadd.f32 0.0, %v1092
  %v1094 = vpop.f32.mrb[0].mxu0
  %v1095 = vpop.f32.mrb[0].mxu0
  %v1096 = vadd.f32 0.0, %v1095
  %v1097 = vpop.f32.mrb[0].mxu0
  %1098 = vmatprep.mubr.bf16.mxu0 %v596
  %1099 = vmatmul.mubr.bf16.gmra.mrb[0].mxu0 %v595
  %v1100 = vpop.f32.mrb[0].mxu0
  %v1101 = vadd.f32 0.0, %v1100
  %v1102 = vpop.f32.mrb[0].mxu0
  %v1103 = vpop.f32.mrb[0].mxu0
  %v1104 = vadd.f32 0.0, %v1103
  %v1105 = vpop.f32.mrb[0].mxu0
  %1106 = vmatprep.mubr.bf16.mxu0 %v599
  %1107 = vmatmul.mubr.bf16.gmra.mrb[0].mxu0 %v598
  %v1108 = vpop.f32.mrb[0].mxu0
  %v1109 = vadd.f32 0.0, %v1108
  %v1110 = vpop.f32.mrb[0].mxu0
  %v1111 = vpop.f32.mrb[0].mxu0
  %v1112 = vadd.f32 0.0, %v1111
  %v1113 = vpop.f32.mrb[0].mxu0
  %1114 = vmatprep.mubr.bf16.mxu0 %v602
  %1115 = vmatmul.mubr.bf16.gmra.mrb[0].mxu0 %v601
  %v1116 = vpop.f32.mrb[0].mxu0
  %v1117 = vadd.f32 0.0, %v1116
  %v1118 = vpop.f32.mrb[0].mxu0
  %v1119 = vpop.f32.mrb[0].mxu0
  %v1120 = vadd.f32 0.0, %v1119
  %v1121 = vpop.f32.mrb[0].mxu0
  %1122 = vmatprep.mubr.bf16.mxu0 %v605
  %1123 = vmatmul.mubr.bf16.gmra.mrb[0].mxu0 %v604
  %v1124 = vpop.f32.mrb[0].mxu0
  %v1125 = vadd.f32 0.0, %v1124
  %v1126 = vpop.f32.mrb[0].mxu0
  %v1127 = vpop.f32.mrb[0].mxu0
  %v1128 = vadd.f32 0.0, %v1127
  %v1129 = vpop.f32.mrb[0].mxu0
  %1130 = vmatprep.mubr.bf16.mxu0 %v608
  %1131 = vmatmul.mubr.bf16.gmra.mrb[0].mxu0 %v607
  %v1132 = vpop.f32.mrb[0].mxu0
  %v1133 = vadd.f32 0.0, %v1132
  %v1134 = vpop.f32.mrb[0].mxu0
  %v1135 = vpop.f32.mrb[0].mxu0
  %v1136 = vadd.f32 0.0, %v1135
  %v1137 = vpop.f32.mrb[0].mxu0
  %1138 = vdwg.mxu0
  %1139 = vmatprep.subr.bf16.mxu0 0
  %1140 = vmatpush1.bf16.msra.mxu0 %v818
  %1141 = vmatprep.subr.bf16.mxu0 0
  %1142 = vmatpush1.bf16.msra.mxu0 %v819
  %1143 = vmatprep.subr.bf16.mxu0 0
  %1144 = vmatpush1.bf16.msra.mxu0 %v820
  %1145 = vmatprep.subr.bf16.mxu0 0
  %1146 = vmatpush1.bf16.msra.mxu0 %v821
  %1147 = vmatprep.subr.bf16.mxu0 0
  %1148 = vmatpush1.bf16.msra.mxu0 %v822
  %1149 = vmatprep.subr.bf16.mxu0 0
  %1150 = vmatpush1.bf16.msra.mxu0 %v823
  %1151 = vmatprep.subr.bf16.mxu0 0
  %1152 = vmatpush1.bf16.msra.mxu0 %v824
  %1153 = vmatprep.subr.bf16.mxu0 0
  %1154 = vmatpush1.bf16.msra.mxu0 %v825
  %1155 = vmatprep.subr.bf16.mxu0 0
  %1156 = vmatpush1.bf16.msra.mxu0 0
  %1157 = vmatprep.subr.bf16.mxu0 0
  %1158 = vmatpush1.bf16.msra.mxu0 0
  %1159 = vmatprep.subr.bf16.mxu0 0
  %1160 = vmatpush1.bf16.msra.mxu0 0
  %1161 = vmatprep.subr.bf16.mxu0 0
  %1162 = vmatpush1.bf16.msra.mxu0 0
  %1163 = vmatprep.subr.bf16.mxu0 0
  %1164 = vmatpush1.bf16.msra.mxu0 0
  %1165 = vmatprep.subr.bf16.mxu0 0
  %1166 = vmatpush1.bf16.msra.mxu0 0
  %1167 = vmatprep.subr.bf16.mxu0 0
  %1168 = vmatpush1.bf16.msra.mxu0 0
  %1169 = vmatprep.subr.bf16.mxu0 0
  %1170 = vmatpush1.bf16.msra.mxu0 0
  %1171 = vmatprep.mubr.bf16.mxu0 0
  %1172 = vmatmul.mubr.bf16.gmra.mrb[0].mxu0 %v516
  %v1173 = vpop.f32.mrb[0].mxu0
  %v1174 = vadd.f32 %v885, %v1173
  %v1175 = vpop.f32.mrb[0].mxu0
  %v1176 = vpop.f32.mrb[0].mxu0
  %v1177 = vadd.f32 %v888, %v1176
  %v1178 = vpop.f32.mrb[0].mxu0
  %1179 = vmatprep.mubr.bf16.mxu0 0
  %1180 = vmatmul.mubr.bf16.gmra.mrb[0].mxu0 %v519
  %v1181 = vpop.f32.mrb[0].mxu0
  %v1182 = vadd.f32 %v893, %v1181
  %v1183 = vpop.f32.mrb[0].mxu0
  %v1184 = vpop.f32.mrb[0].mxu0
  %v1185 = vadd.f32 %v896, %v1184
  %v1186 = vpop.f32.mrb[0].mxu0
  %1187 = vmatprep.mubr.bf16.mxu0 0
  %1188 = vmatmul.mubr.bf16.gmra.mrb[0].mxu0 %v522
  %v1189 = vpop.f32.mrb[0].mxu0
  %v1190 = vadd.f32 %v901, %v1189
  %v1191 = vpop.f32.mrb[0].mxu0
  %v1192 = vpop.f32.mrb[0].mxu0
  %v1193 = vadd.f32 %v904, %v1192
  %v1194 = vpop.f32.mrb[0].mxu0
  %1195 = vmatprep.mubr.bf16.mxu0 0
  %1196 = vmatmul.mubr.bf16.gmra.mrb[0].mxu0 %v525
  %v1197 = vpop.f32.mrb[0].mxu0
  %v1198 = vadd.f32 %v909, %v1197
  %v1199 = vpop.f32.mrb[0].mxu0
  %v1200 = vpop.f32.mrb[0].mxu0
  %v1201 = vadd.f32 %v912, %v1200
  %v1202 = vpop.f32.mrb[0].mxu0
  %1203 = vmatprep.mubr.bf16.mxu0 0
  %1204 = vmatmul.mubr.bf16.gmra.mrb[0].mxu0 %v528
  %v1205 = vpop.f32.mrb[0].mxu0
  %v1206 = vadd.f32 %v917, %v1205
  %v1207 = vpop.f32.mrb[0].mxu0
  %v1208 = vpop.f32.mrb[0].mxu0
  %v1209 = vadd.f32 %v920, %v1208
  %v1210 = vpop.f32.mrb[0].mxu0
  %1211 = vmatprep.mubr.bf16.mxu0 0
  %1212 = vmatmul.mubr.bf16.gmra.mrb[0].mxu0 %v531
  %v1213 = vpop.f32.mrb[0].mxu0
  %v1214 = vadd.f32 %v925, %v1213
  %v1215 = vpop.f32.mrb[0].mxu0
  %v1216 = vpop.f32.mrb[0].mxu0
  %v1217 = vadd.f32 %v928, %v1216
  %v1218 = vpop.f32.mrb[0].mxu0
  %1219 = vmatprep.mubr.bf16.mxu0 0
  %1220 = vmatmul.mubr.bf16.gmra.mrb[0].mxu0 %v534
  %v1221 = vpop.f32.mrb[0].mxu0
  %v1222 = vadd.f32 %v933, %v1221
  %v1223 = vpop.f32.mrb[0].mxu0
  %v1224 = vpop.f32.mrb[0].mxu0
  %v1225 = vadd.f32 %v936, %v1224
  %v1226 = vpop.f32.mrb[0].mxu0
  %1227 = vmatprep.mubr.bf16.mxu0 0
  %1228 = vmatmul.mubr.bf16.gmra.mrb[0].mxu0 %v537
  %v1229 = vpop.f32.mrb[0].mxu0
  %v1230 = vadd.f32 %v941, %v1229
  %v1231 = vpop.f32.mrb[0].mxu0
  %v1232 = vpop.f32.mrb[0].mxu0
  %v1233 = vadd.f32 %v944, %v1232
  %v1234 = vpop.f32.mrb[0].mxu0
  %1235 = vmatprep.mubr.bf16.mxu0 0
  %1236 = vmatmul.mubr.bf16.gmra.mrb[0].mxu0 %v540
  %v1237 = vpop.f32.mrb[0].mxu0
  %v1238 = vadd.f32 %v949, %v1237
  %v1239 = vpop.f32.mrb[0].mxu0
  %v1240 = vpop.f32.mrb[0].mxu0
  %v1241 = vadd.f32 %v952, %v1240
  %v1242 = vpop.f32.mrb[0].mxu0
  %1243 = vmatprep.mubr.bf16.mxu0 0
  %1244 = vmatmul.mubr.bf16.gmra.mrb[0].mxu0 %v543
  %v1245 = vpop.f32.mrb[0].mxu0
  %v1246 = vadd.f32 %v957, %v1245
  %v1247 = vpop.f32.mrb[0].mxu0
  %v1248 = vpop.f32.mrb[0].mxu0
  %v1249 = vadd.f32 %v960, %v1248
  %v1250 = vpop.f32.mrb[0].mxu0
  %1251 = vmatprep.mubr.bf16.mxu0 0
  %1252 = vmatmul.mubr.bf16.gmra.mrb[0].mxu0 %v546
  %v1253 = vpop.f32.mrb[0].mxu0
  %v1254 = vadd.f32 %v965, %v1253
  %v1255 = vpop.f32.mrb[0].mxu0
  %v1256 = vpop.f32.mrb[0].mxu0
  %v1257 = vadd.f32 %v968, %v1256
  %v1258 = vpop.f32.mrb[0].mxu0
  %1259 = vmatprep.mubr.bf16.mxu0 0
  %1260 = vmatmul.mubr.bf16.gmra.mrb[0].mxu0 %v549
  %v1261 = vpop.f32.mrb[0].mxu0
  %v1262 = vadd.f32 %v973, %v1261
  %v1263 = vpop.f32.mrb[0].mxu0
  %v1264 = vpop.f32.mrb[0].mxu0
  %v1265 = vadd.f32 %v976, %v1264
  %v1266 = vpop.f32.mrb[0].mxu0
  %1267 = vmatprep.mubr.bf16.mxu0 0
  %1268 = vmatmul.mubr.bf16.gmra.mrb[0].mxu0 %v552
  %v1269 = vpop.f32.mrb[0].mxu0
  %v1270 = vadd.f32 %v981, %v1269
  %v1271 = vpop.f32.mrb[0].mxu0
  %v1272 = vpop.f32.mrb[0].mxu0
  %v1273 = vadd.f32 %v984, %v1272
  %v1274 = vpop.f32.mrb[0].mxu0
  %1275 = vmatprep.mubr.bf16.mxu0 0
  %1276 = vmatmul.mubr.bf16.gmra.mrb[0].mxu0 %v555
  %v1277 = vpop.f32.mrb[0].mxu0
  %v1278 = vadd.f32 %v989, %v1277
  %v1279 = vpop.f32.mrb[0].mxu0
  %v1280 = vpop.f32.mrb[0].mxu0
  %v1281 = vadd.f32 %v992, %v1280
  %v1282 = vpop.f32.mrb[0].mxu0
  %1283 = vmatprep.mubr.bf16.mxu0 0
  %1284 = vmatmul.mubr.bf16.gmra.mrb[0].mxu0 %v558
  %v1285 = vpop.f32.mrb[0].mxu0
  %v1286 = vadd.f32 %v997, %v1285
  %v1287 = vpop.f32.mrb[0].mxu0
  %v1288 = vpop.f32.mrb[0].mxu0
  %v1289 = vadd.f32 %v1000, %v1288
  %v1290 = vpop.f32.mrb[0].mxu0
  %1291 = vmatprep.mubr.bf16.mxu0 0
  %1292 = vmatmul.mubr.bf16.gmra.mrb[0].mxu0 %v561
  %v1293 = vpop.f32.mrb[0].mxu0
  %v1294 = vadd.f32 %v1005, %v1293
  %v1295 = vpop.f32.mrb[0].mxu0
  %v1296 = vpop.f32.mrb[0].mxu0
  %v1297 = vadd.f32 %v1008, %v1296
  %v1298 = vpop.f32.mrb[0].mxu0
  %1299 = vmatprep.mubr.bf16.mxu0 0
  %1300 = vmatmul.mubr.bf16.gmra.mrb[0].mxu0 %v564
  %v1301 = vpop.f32.mrb[0].mxu0
  %v1302 = vadd.f32 %v1013, %v1301
  %v1303 = vpop.f32.mrb[0].mxu0
  %v1304 = vpop.f32.mrb[0].mxu0
  %v1305 = vadd.f32 %v1016, %v1304
  %v1306 = vpop.f32.mrb[0].mxu0
  %1307 = vmatprep.mubr.bf16.mxu0 0
  %1308 = vmatmul.mubr.bf16.gmra.mrb[0].mxu0 %v567
  %v1309 = vpop.f32.mrb[0].mxu0
  %v1310 = vadd.f32 %v1021, %v1309
  %v1311 = vpop.f32.mrb[0].mxu0
  %v1312 = vpop.f32.mrb[0].mxu0
  %v1313 = vadd.f32 %v1024, %v1312
  %v1314 = vpop.f32.mrb[0].mxu0
  %1315 = vmatprep.mubr.bf16.mxu0 0
  %1316 = vmatmul.mubr.bf16.gmra.mrb[0].mxu0 %v570
  %v1317 = vpop.f32.mrb[0].mxu0
  %v1318 = vadd.f32 %v1029, %v1317
  %v1319 = vpop.f32.mrb[0].mxu0
  %v1320 = vpop.f32.mrb[0].mxu0
  %v1321 = vadd.f32 %v1032, %v1320
  %v1322 = vpop.f32.mrb[0].mxu0
  %1323 = vmatprep.mubr.bf16.mxu0 0
  %1324 = vmatmul.mubr.bf16.gmra.mrb[0].mxu0 %v573
  %v1325 = vpop.f32.mrb[0].mxu0
  %v1326 = vadd.f32 %v1037, %v1325
  %v1327 = vpop.f32.mrb[0].mxu0
  %v1328 = vpop.f32.mrb[0].mxu0
  %v1329 = vadd.f32 %v1040, %v1328
  %v1330 = vpop.f32.mrb[0].mxu0
  %1331 = vmatprep.mubr.bf16.mxu0 0
  %1332 = vmatmul.mubr.bf16.gmra.mrb[0].mxu0 %v576
  %v1333 = vpop.f32.mrb[0].mxu0
  %v1334 = vadd.f32 %v1045, %v1333
  %v1335 = vpop.f32.mrb[0].mxu0
  %v1336 = vpop.f32.mrb[0].mxu0
  %v1337 = vadd.f32 %v1048, %v1336
  %v1338 = vpop.f32.mrb[0].mxu0
  %1339 = vmatprep.mubr.bf16.mxu0 0
  %1340 = vmatmul.mubr.bf16.gmra.mrb[0].mxu0 %v579
  %v1341 = vpop.f32.mrb[0].mxu0
  %v1342 = vadd.f32 %v1053, %v1341
  %v1343 = vpop.f32.mrb[0].mxu0
  %v1344 = vpop.f32.mrb[0].mxu0
  %v1345 = vadd.f32 %v1056, %v1344
  %v1346 = vpop.f32.mrb[0].mxu0
  %1347 = vmatprep.mubr.bf16.mxu0 0
  %1348 = vmatmul.mubr.bf16.gmra.mrb[0].mxu0 %v582
  %v1349 = vpop.f32.mrb[0].mxu0
  %v1350 = vadd.f32 %v1061, %v1349
  %v1351 = vpop.f32.mrb[0].mxu0
  %v1352 = vpop.f32.mrb[0].mxu0
  %v1353 = vadd.f32 %v1064, %v1352
  %v1354 = vpop.f32.mrb[0].mxu0
  %1355 = vmatprep.mubr.bf16.mxu0 0
  %1356 = vmatmul.mubr.bf16.gmra.mrb[0].mxu0 %v585
  %v1357 = vpop.f32.mrb[0].mxu0
  %v1358 = vadd.f32 %v1069, %v1357
  %v1359 = vpop.f32.mrb[0].mxu0
  %v1360 = vpop.f32.mrb[0].mxu0
  %v1361 = vadd.f32 %v1072, %v1360
  %v1362 = vpop.f32.mrb[0].mxu0
  %1363 = vmatprep.mubr.bf16.mxu0 0
  %1364 = vmatmul.mubr.bf16.gmra.mrb[0].mxu0 %v588
  %v1365 = vpop.f32.mrb[0].mxu0
  %v1366 = vadd.f32 %v1077, %v1365
  %v1367 = vpop.f32.mrb[0].mxu0
  %v1368 = vpop.f32.mrb[0].mxu0
  %v1369 = vadd.f32 %v1080, %v1368
  %v1370 = vpop.f32.mrb[0].mxu0
  %1371 = vmatprep.mubr.bf16.mxu0 0
  %1372 = vmatmul.mubr.bf16.gmra.mrb[0].mxu0 %v591
  %v1373 = vpop.f32.mrb[0].mxu0
  %v1374 = vadd.f32 %v1085, %v1373
  %v1375 = vpop.f32.mrb[0].mxu0
  %v1376 = vpop.f32.mrb[0].mxu0
  %v1377 = vadd.f32 %v1088, %v1376
  %v1378 = vpop.f32.mrb[0].mxu0
  %1379 = vmatprep.mubr.bf16.mxu0 0
  %1380 = vmatmul.mubr.bf16.gmra.mrb[0].mxu0 %v594
  %v1381 = vpop.f32.mrb[0].mxu0
  %v1382 = vadd.f32 %v1093, %v1381
  %v1383 = vpop.f32.mrb[0].mxu0
  %v1384 = vpop.f32.mrb[0].mxu0
  %v1385 = vadd.f32 %v1096, %v1384
  %v1386 = vpop.f32.mrb[0].mxu0
  %1387 = vmatprep.mubr.bf16.mxu0 0
  %1388 = vmatmul.mubr.bf16.gmra.mrb[0].mxu0 %v597
  %v1389 = vpop.f32.mrb[0].mxu0
  %v1390 = vadd.f32 %v1101, %v1389
  %v1391 = vpop.f32.mrb[0].mxu0
  %v1392 = vpop.f32.mrb[0].mxu0
  %v1393 = vadd.f32 %v1104, %v1392
  %v1394 = vpop.f32.mrb[0].mxu0
  %1395 = vmatprep.mubr.bf16.mxu0 0
  %1396 = vmatmul.mubr.bf16.gmra.mrb[0].mxu0 %v600
  %v1397 = vpop.f32.mrb[0].mxu0
  %v1398 = vadd.f32 %v1109, %v1397
  %v1399 = vpop.f32.mrb[0].mxu0
  %v1400 = vpop.f32.mrb[0].mxu0
  %v1401 = vadd.f32 %v1112, %v1400
  %v1402 = vpop.f32.mrb[0].mxu0
  %1403 = vmatprep.mubr.bf16.mxu0 0
  %1404 = vmatmul.mubr.bf16.gmra.mrb[0].mxu0 %v603
  %v1405 = vpop.f32.mrb[0].mxu0
  %v1406 = vadd.f32 %v1117, %v1405
  %v1407 = vpop.f32.mrb[0].mxu0
  %v1408 = vpop.f32.mrb[0].mxu0
  %v1409 = vadd.f32 %v1120, %v1408
  %v1410 = vpop.f32.mrb[0].mxu0
  %1411 = vmatprep.mubr.bf16.mxu0 0
  %1412 = vmatmul.mubr.bf16.gmra.mrb[0].mxu0 %v606
  %v1413 = vpop.f32.mrb[0].mxu0
  %v1414 = vadd.f32 %v1125, %v1413
  %v1415 = vpop.f32.mrb[0].mxu0
  %v1416 = vpop.f32.mrb[0].mxu0
  %v1417 = vadd.f32 %v1128, %v1416
  %v1418 = vpop.f32.mrb[0].mxu0
  %1419 = vmatprep.mubr.bf16.mxu0 0
  %1420 = vmatmul.mubr.bf16.gmra.mrb[0].mxu0 %v609
  %v1421 = vpop.f32.mrb[0].mxu0
  %v1422 = vadd.f32 %v1133, %v1421
  %v1423 = vpop.f32.mrb[0].mxu0
  %v1424 = vpop.f32.mrb[0].mxu0
  %v1425 = vadd.f32 %v1136, %v1424
  %v1426 = vpop.f32.mrb[0].mxu0
  %1427 = vdwg.mxu0
  %v1428 = vld [vmem:[%s2] sm:$0x1]
  %v1430 = vlaneseq
  %v1431 = vshrl.u32 %v1430, 7
  %v1432 = vsub.s32 0, %v1431
  %v1433 = vrot.slane %v1428, %v1432
  %v1435 = vmul.f32 %v1174, %v1433
  %v1436 = vmul.f32 %v1177, %v1433
  %v1437 = vmul.f32 %v1182, %v1433
  %v1438 = vmul.f32 %v1185, %v1433
  %v1439 = vmul.f32 %v1190, %v1433
  %v1440 = vmul.f32 %v1193, %v1433
  %v1441 = vmul.f32 %v1198, %v1433
  %v1442 = vmul.f32 %v1201, %v1433
  %v1443 = vmul.f32 %v1206, %v1433
  %v1444 = vmul.f32 %v1209, %v1433
  %v1445 = vmul.f32 %v1214, %v1433
  %v1446 = vmul.f32 %v1217, %v1433
  %v1447 = vmul.f32 %v1222, %v1433
  %v1448 = vmul.f32 %v1225, %v1433
  %v1449 = vmul.f32 %v1230, %v1433
  %v1450 = vmul.f32 %v1233, %v1433
  %v1451 = vmul.f32 %v1238, %v1433
  %v1452 = vmul.f32 %v1241, %v1433
  %v1453 = vmul.f32 %v1246, %v1433
  %v1454 = vmul.f32 %v1249, %v1433
  %v1455 = vmul.f32 %v1254, %v1433
  %v1456 = vmul.f32 %v1257, %v1433
  %v1457 = vmul.f32 %v1262, %v1433
  %v1458 = vmul.f32 %v1265, %v1433
  %v1459 = vmul.f32 %v1270, %v1433
  %v1460 = vmul.f32 %v1273, %v1433
  %v1461 = vmul.f32 %v1278, %v1433
  %v1462 = vmul.f32 %v1281, %v1433
  %v1463 = vmul.f32 %v1286, %v1433
  %v1464 = vmul.f32 %v1289, %v1433
  %v1465 = vmul.f32 %v1294, %v1433
  %v1466 = vmul.f32 %v1297, %v1433
  %v1467 = vmul.f32 %v1302, %v1433
  %v1468 = vmul.f32 %v1305, %v1433
  %v1469 = vmul.f32 %v1310, %v1433
  %v1470 = vmul.f32 %v1313, %v1433
  %v1471 = vmul.f32 %v1318, %v1433
  %v1472 = vmul.f32 %v1321, %v1433
  %v1473 = vmul.f32 %v1326, %v1433
  %v1474 = vmul.f32 %v1329, %v1433
  %v1475 = vmul.f32 %v1334, %v1433
  %v1476 = vmul.f32 %v1337, %v1433
  %v1477 = vmul.f32 %v1342, %v1433
  %v1478 = vmul.f32 %v1345, %v1433
  %v1479 = vmul.f32 %v1350, %v1433
  %v1480 = vmul.f32 %v1353, %v1433
  %v1481 = vmul.f32 %v1358, %v1433
  %v1482 = vmul.f32 %v1361, %v1433
  %v1483 = vmul.f32 %v1366, %v1433
  %v1484 = vmul.f32 %v1369, %v1433
  %v1485 = vmul.f32 %v1374, %v1433
  %v1486 = vmul.f32 %v1377, %v1433
  %v1487 = vmul.f32 %v1382, %v1433
  %v1488 = vmul.f32 %v1385, %v1433
  %v1489 = vmul.f32 %v1390, %v1433
  %v1490 = vmul.f32 %v1393, %v1433
  %v1491 = vmul.f32 %v1398, %v1433
  %v1492 = vmul.f32 %v1401, %v1433
  %v1493 = vmul.f32 %v1406, %v1433
  %v1494 = vmul.f32 %v1409, %v1433
  %v1495 = vmul.f32 %v1414, %v1433
  %v1496 = vmul.f32 %v1417, %v1433
  %v1497 = vmul.f32 %v1422, %v1433
  %v1498 = vmul.f32 %v1425, %v1433
  %v1499 = vld [vmem:[%s3] sm:$0x1]
  %v1501 = vlaneseq
  %v1502 = vshrl.u32 %v1501, 7
  %v1503 = vsub.s32 0, %v1502
  %v1504 = vrot.slane %v1499, %v1503
  %v1506 = vadd.f32 %v1435, %v1504
  %v1507 = vadd.f32 %v1436, %v1504
  %v1508 = vadd.f32 %v1437, %v1504
  %v1509 = vadd.f32 %v1438, %v1504
  %v1510 = vadd.f32 %v1439, %v1504
  %v1511 = vadd.f32 %v1440, %v1504
  %v1512 = vadd.f32 %v1441, %v1504
  %v1513 = vadd.f32 %v1442, %v1504
  %v1514 = vadd.f32 %v1443, %v1504
  %v1515 = vadd.f32 %v1444, %v1504
  %v1516 = vadd.f32 %v1445, %v1504
  %v1517 = vadd.f32 %v1446, %v1504
  %v1518 = vadd.f32 %v1447, %v1504
  %v1519 = vadd.f32 %v1448, %v1504
  %v1520 = vadd.f32 %v1449, %v1504
  %v1521 = vadd.f32 %v1450, %v1504
  %v1522 = vadd.f32 %v1451, %v1504
  %v1523 = vadd.f32 %v1452, %v1504
  %v1524 = vadd.f32 %v1453, %v1504
  %v1525 = vadd.f32 %v1454, %v1504
  %v1526 = vadd.f32 %v1455, %v1504
  %v1527 = vadd.f32 %v1456, %v1504
  %v1528 = vadd.f32 %v1457, %v1504
  %v1529 = vadd.f32 %v1458, %v1504
  %v1530 = vadd.f32 %v1459, %v1504
  %v1531 = vadd.f32 %v1460, %v1504
  %v1532 = vadd.f32 %v1461, %v1504
  %v1533 = vadd.f32 %v1462, %v1504
  %v1534 = vadd.f32 %v1463, %v1504
  %v1535 = vadd.f32 %v1464, %v1504
  %v1536 = vadd.f32 %v1465, %v1504
  %v1537 = vadd.f32 %v1466, %v1504
  %v1538 = vadd.f32 %v1467, %v1504
  %v1539 = vadd.f32 %v1468, %v1504
  %v1540 = vadd.f32 %v1469, %v1504
  %v1541 = vadd.f32 %v1470, %v1504
  %v1542 = vadd.f32 %v1471, %v1504
  %v1543 = vadd.f32 %v1472, %v1504
  %v1544 = vadd.f32 %v1473, %v1504
  %v1545 = vadd.f32 %v1474, %v1504
  %v1546 = vadd.f32 %v1475, %v1504
  %v1547 = vadd.f32 %v1476, %v1504
  %v1548 = vadd.f32 %v1477, %v1504
  %v1549 = vadd.f32 %v1478, %v1504
  %v1550 = vadd.f32 %v1479, %v1504
  %v1551 = vadd.f32 %v1480, %v1504
  %v1552 = vadd.f32 %v1481, %v1504
  %v1553 = vadd.f32 %v1482, %v1504
  %v1554 = vadd.f32 %v1483, %v1504
  %v1555 = vadd.f32 %v1484, %v1504
  %v1556 = vadd.f32 %v1485, %v1504
  %v1557 = vadd.f32 %v1486, %v1504
  %v1558 = vadd.f32 %v1487, %v1504
  %v1559 = vadd.f32 %v1488, %v1504
  %v1560 = vadd.f32 %v1489, %v1504
  %v1561 = vadd.f32 %v1490, %v1504
  %v1562 = vadd.f32 %v1491, %v1504
  %v1563 = vadd.f32 %v1492, %v1504
  %v1564 = vadd.f32 %v1493, %v1504
  %v1565 = vadd.f32 %v1494, %v1504
  %v1566 = vadd.f32 %v1495, %v1504
  %v1567 = vadd.f32 %v1496, %v1504
  %v1568 = vadd.f32 %v1497, %v1504
  %v1569 = vadd.f32 %v1498, %v1504
  %v1570 = vmax.f32 %v1506, 0.0
  %v1571 = vmax.f32 %v1507, 0.0
  %v1572 = vmax.f32 %v1508, 0.0
  %v1573 = vmax.f32 %v1509, 0.0
  %v1574 = vmax.f32 %v1510, 0.0
  %v1575 = vmax.f32 %v1511, 0.0
  %v1576 = vmax.f32 %v1512, 0.0
  %v1577 = vmax.f32 %v1513, 0.0
  %v1578 = vmax.f32 %v1514, 0.0
  %v1579 = vmax.f32 %v1515, 0.0
  %v1580 = vmax.f32 %v1516, 0.0
  %v1581 = vmax.f32 %v1517, 0.0
  %v1582 = vmax.f32 %v1518, 0.0
  %v1583 = vmax.f32 %v1519, 0.0
  %v1584 = vmax.f32 %v1520, 0.0
  %v1585 = vmax.f32 %v1521, 0.0
  %v1586 = vmax.f32 %v1522, 0.0
  %v1587 = vmax.f32 %v1523, 0.0
  %v1588 = vmax.f32 %v1524, 0.0
  %v1589 = vmax.f32 %v1525, 0.0
  %v1590 = vmax.f32 %v1526, 0.0
  %v1591 = vmax.f32 %v1527, 0.0
  %v1592 = vmax.f32 %v1528, 0.0
  %v1593 = vmax.f32 %v1529, 0.0
  %v1594 = vmax.f32 %v1530, 0.0
  %v1595 = vmax.f32 %v1531, 0.0
  %v1596 = vmax.f32 %v1532, 0.0
  %v1597 = vmax.f32 %v1533, 0.0
  %v1598 = vmax.f32 %v1534, 0.0
  %v1599 = vmax.f32 %v1535, 0.0
  %v1600 = vmax.f32 %v1536, 0.0
  %v1601 = vmax.f32 %v1537, 0.0
  %v1602 = vmax.f32 %v1538, 0.0
  %v1603 = vmax.f32 %v1539, 0.0
  %v1604 = vmax.f32 %v1540, 0.0
  %v1605 = vmax.f32 %v1541, 0.0
  %v1606 = vmax.f32 %v1542, 0.0
  %v1607 = vmax.f32 %v1543, 0.0
  %v1608 = vmax.f32 %v1544, 0.0
  %v1609 = vmax.f32 %v1545, 0.0
  %v1610 = vmax.f32 %v1546, 0.0
  %v1611 = vmax.f32 %v1547, 0.0
  %v1612 = vmax.f32 %v1548, 0.0
  %v1613 = vmax.f32 %v1549, 0.0
  %v1614 = vmax.f32 %v1550, 0.0
  %v1615 = vmax.f32 %v1551, 0.0
  %v1616 = vmax.f32 %v1552, 0.0
  %v1617 = vmax.f32 %v1553, 0.0
  %v1618 = vmax.f32 %v1554, 0.0
  %v1619 = vmax.f32 %v1555, 0.0
  %v1620 = vmax.f32 %v1556, 0.0
  %v1621 = vmax.f32 %v1557, 0.0
  %v1622 = vmax.f32 %v1558, 0.0
  %v1623 = vmax.f32 %v1559, 0.0
  %v1624 = vmax.f32 %v1560, 0.0
  %v1625 = vmax.f32 %v1561, 0.0
  %v1626 = vmax.f32 %v1562, 0.0
  %v1627 = vmax.f32 %v1563, 0.0
  %v1628 = vmax.f32 %v1564, 0.0
  %v1629 = vmax.f32 %v1565, 0.0
  %v1630 = vmax.f32 %v1566, 0.0
  %v1631 = vmax.f32 %v1567, 0.0
  %v1632 = vmax.f32 %v1568, 0.0
  %v1633 = vmax.f32 %v1569, 0.0
  %1634 = vst [vmem:[%s4] sm:$0xff] %v1570
  %1635 = vst [vmem:[%s4 + $0x8] sm:$0xff] %v1571
  %1636 = vst [vmem:[%s4 + $0x10] sm:$0xff] %v1572
  %1637 = vst [vmem:[%s4 + $0x18] sm:$0xff] %v1573
  %1638 = vst [vmem:[%s4 + $0x20] sm:$0xff] %v1574
  %1639 = vst [vmem:[%s4 + $0x28] sm:$0xff] %v1575
  %1640 = vst [vmem:[%s4 + $0x30] sm:$0xff] %v1576
  %1641 = vst [vmem:[%s4 + $0x38] sm:$0xff] %v1577
  %1642 = vst [vmem:[%s4 + $0x40] sm:$0xff] %v1578
  %1643 = vst [vmem:[%s4 + $0x48] sm:$0xff] %v1579
  %1644 = vst [vmem:[%s4 + $0x50] sm:$0xff] %v1580
  %1645 = vst [vmem:[%s4 + $0x58] sm:$0xff] %v1581
  %1646 = vst [vmem:[%s4 + $0x60] sm:$0xff] %v1582
  %1647 = vst [vmem:[%s4 + $0x68] sm:$0xff] %v1583
  %1648 = vst [vmem:[%s4 + $0x70] sm:$0xff] %v1584
  %1649 = vst [vmem:[%s4 + $0x78] sm:$0xff] %v1585
  %1650 = vst [vmem:[%s4 + $0x80] sm:$0xff] %v1586
  %1651 = vst [vmem:[%s4 + $0x88] sm:$0xff] %v1587
  %1652 = vst [vmem:[%s4 + $0x90] sm:$0xff] %v1588
  %1653 = vst [vmem:[%s4 + $0x98] sm:$0xff] %v1589
  %1654 = vst [vmem:[%s4 + $0xa0] sm:$0xff] %v1590
  %1655 = vst [vmem:[%s4 + $0xa8] sm:$0xff] %v1591
  %1656 = vst [vmem:[%s4 + $0xb0] sm:$0xff] %v1592
  %1657 = vst [vmem:[%s4 + $0xb8] sm:$0xff] %v1593
  %1658 = vst [vmem:[%s4 + $0xc0] sm:$0xff] %v1594
  %1659 = vst [vmem:[%s4 + $0xc8] sm:$0xff] %v1595
  %1660 = vst [vmem:[%s4 + $0xd0] sm:$0xff] %v1596
  %1661 = vst [vmem:[%s4 + $0xd8] sm:$0xff] %v1597
  %1662 = vst [vmem:[%s4 + $0xe0] sm:$0xff] %v1598
  %1663 = vst [vmem:[%s4 + $0xe8] sm:$0xff] %v1599
  %1664 = vst [vmem:[%s4 + $0xf0] sm:$0xff] %v1600
  %1665 = vst [vmem:[%s4 + $0xf8] sm:$0xff] %v1601
  %1666 = vst [vmem:[%s4 + $0x100] sm:$0xff] %v1602
  %1667 = vst [vmem:[%s4 + $0x108] sm:$0xff] %v1603
  %1668 = vst [vmem:[%s4 + $0x110] sm:$0xff] %v1604
  %1669 = vst [vmem:[%s4 + $0x118] sm:$0xff] %v1605
  %1670 = vst [vmem:[%s4 + $0x120] sm:$0xff] %v1606
  %1671 = vst [vmem:[%s4 + $0x128] sm:$0xff] %v1607
  %1672 = vst [vmem:[%s4 + $0x130] sm:$0xff] %v1608
  %1673 = vst [vmem:[%s4 + $0x138] sm:$0xff] %v1609
  %1674 = vst [vmem:[%s4 + $0x140] sm:$0xff] %v1610
  %1675 = vst [vmem:[%s4 + $0x148] sm:$0xff] %v1611
  %1676 = vst [vmem:[%s4 + $0x150] sm:$0xff] %v1612
  %1677 = vst [vmem:[%s4 + $0x158] sm:$0xff] %v1613
  %1678 = vst [vmem:[%s4 + $0x160] sm:$0xff] %v1614
  %1679 = vst [vmem:[%s4 + $0x168] sm:$0xff] %v1615
  %1680 = vst [vmem:[%s4 + $0x170] sm:$0xff] %v1616
  %1681 = vst [vmem:[%s4 + $0x178] sm:$0xff] %v1617
  %1682 = vst [vmem:[%s4 + $0x180] sm:$0xff] %v1618
  %1683 = vst [vmem:[%s4 + $0x188] sm:$0xff] %v1619
  %1684 = vst [vmem:[%s4 + $0x190] sm:$0xff] %v1620
  %1685 = vst [vmem:[%s4 + $0x198] sm:$0xff] %v1621
  %1686 = vst [vmem:[%s4 + $0x1a0] sm:$0xff] %v1622
  %1687 = vst [vmem:[%s4 + $0x1a8] sm:$0xff] %v1623
  %1688 = vst [vmem:[%s4 + $0x1b0] sm:$0xff] %v1624
  %1689 = vst [vmem:[%s4 + $0x1b8] sm:$0xff] %v1625
  %1690 = vst [vmem:[%s4 + $0x1c0] sm:$0xff] %v1626
  %1691 = vst [vmem:[%s4 + $0x1c8] sm:$0xff] %v1627
  %1692 = vst [vmem:[%s4 + $0x1d0] sm:$0xff] %v1628
  %1693 = vst [vmem:[%s4 + $0x1d8] sm:$0xff] %v1629
  %1694 = vst [vmem:[%s4 + $0x1e0] sm:$0xff] %v1630
  %1695 = vst [vmem:[%s4 + $0x1e8] sm:$0xff] %v1631
  %1696 = vst [vmem:[%s4 + $0x1f0] sm:$0xff] %v1632
  %1697 = vst [vmem:[%s4 + $0x1f8] sm:$0xff] %v1633
  // Predicated region
  $region18: #{double_conv_forward.7} parent=0 // pred_check
    _
  $region19: #{double_conv_forward.7} parent=0 // pred_check_branch
    %1699 = sbr.rel (0) target = $region21
  $region20: #{double_conv_forward.7} parent=0 // pred_region
    _
  $region21: #{double_conv_forward.7} parent=0 // pred_fallthru
    _
  // Predicated region
  $region22: #{double_conv_forward.7} parent=0 // pred_check
    _
  $region23: #{double_conv_forward.7} parent=0 // pred_check_branch
    %1701 = sbr.rel (0) target = $region25
  $region24: #{double_conv_forward.7} parent=0 // pred_region
    _
  $region25: #{double_conv_forward.7} parent=0 // pred_fallthru
    _

</llo_original>
